<compile_context>
chip_gen: v7x
topology: tpu7x:2x2x1
jax: 0.10.0
libtpu: 0.0.40
codegen_flags: <defaults>
</compile_context>

<pallas_src>
import jax
import jax.numpy as jnp
from jax import lax
from jax.experimental import pallas as pl
from jax.experimental.pallas import tpu as pltpu

EPS = 1e-5
NUM_K = 16                     # conv-bank kernel sizes 1..16
NUM_HW = 4                     # highway layers
BLK = 8                        # LSTM steps buffered per aligned output store
MXU_DTYPE = jnp.bfloat16       # matmul-input dtype (f32 accumulation)
VMEM_LIMIT_BYTES = 40 * 1024 * 1024


def _vmem_specs(n):
    return [pl.BlockSpec(memory_space=pltpu.MemorySpace.VMEM) for _ in range(n)]


def _vmem_out():
    return pl.BlockSpec(memory_space=pltpu.MemorySpace.VMEM)


def _mdot(a, w):
    """MXU matmul: cast LHS to the (pre-cast) weight dtype, accumulate in f32."""
    return jnp.dot(a.astype(w.dtype), w, preferred_element_type=jnp.float32)


# ---------------------------------------------------------------------------
# Kernel 1: fused prenet + grouped conv bank + maxpool/postnet + highway +
#           bidirectional-LSTM input projections, all resident in VMEM.
# ---------------------------------------------------------------------------
def encoder_core_kernel(emb_ref, w1_ref, b1_ref, w2_ref, b2_ref,
                        wA_ref, wBlo_ref, wBhi_ref, bA_ref, bB_ref, bnA_ref, bnB_ref,
                        wp1A_ref, wp1B_ref, bp1_ref, bnp1_ref,
                        wp2_ref, bp2_ref,
                        hww_ref, hwb_ref,
                        wih_ref, bih_ref,
                        zxf_ref, zxb_ref):
    S = emb_ref.shape[0]
    H2 = b2_ref.shape[1]
    HC = 8 * H2                                    # half of the 16*H2 bank channels

    # --- prenet: Linear -> ReLU -> (dropout=id) -> Linear -> ReLU -> (dropout=id) ----
    x = emb_ref[...]
    h = jnp.maximum(_mdot(x, w1_ref[...]) + b1_ref[...], 0.0)
    po6 = jnp.maximum(_mdot(h, w2_ref[...]) + b2_ref[...], 0.0)              # (S, H2)

    # --- conv bank (look-forward convs k=1..16, zero pad at the end) -----------------
    # Two dense groups: A = convs 1-8 (taps 0-7), B = convs 9-16 (taps 0-15).
    xp = jnp.concatenate([po6, jnp.zeros((NUM_K, H2), jnp.float32)], axis=0)  # (S+16, H2)
    blk0 = jnp.concatenate([xp[j:j + S, :] for j in range(0, 8)], axis=1)     # (S, 8*H2)
    blk1 = jnp.concatenate([xp[j:j + S, :] for j in range(8, 16)], axis=1)    # (S, 8*H2)
    blk0b = blk0.astype(MXU_DTYPE)                 # cast hoisted: blk0 feeds 2 matmuls
    blk1b = blk1.astype(MXU_DTYPE)

    yA = jnp.dot(blk0b, wA_ref[...], preferred_element_type=jnp.float32) + bA_ref[...]
    yB = (jnp.dot(blk0b, wBlo_ref[...], preferred_element_type=jnp.float32)
          + jnp.dot(blk1b, wBhi_ref[...], preferred_element_type=jnp.float32)
          + bB_ref[...])
    # conv -> ReLU -> BatchNorm (eval running stats folded to per-channel scale/shift)
    cboA = jnp.maximum(yA, 0.0) * bnA_ref[0:1, :] + bnA_ref[1:2, :]           # (S, 8*H2)
    cboB = jnp.maximum(yB, 0.0) * bnB_ref[0:1, :] + bnB_ref[1:2, :]           # (S, 8*H2)

    # --- MaxPool1d(2, stride=1, padding=1)[:, :, 1:]  ==  max(x[t], x[t+1]) ----------
    neg = jnp.full((1, HC), -jnp.inf, jnp.float32)
    cpA = jnp.concatenate([cboA, neg], axis=0)
    cpB = jnp.concatenate([cboB, neg], axis=0)
    mpA = jnp.maximum(cpA[0:S, :], cpA[1:S + 1, :])                           # (S, 8*H2)
    mpB = jnp.maximum(cpB[0:S, :], cpB[1:S + 1, :])

    def tap_mm(xpad, w_ref, j):
        return jnp.dot(xpad[j:j + S, :].astype(MXU_DTYPE), w_ref[j],
                       preferred_element_type=jnp.float32)

    # --- cnp1 (3-tap, look-forward) as per-tap accumulated matmuls (no 48*H2 buffer) -
    zpad = jnp.zeros((2, HC), jnp.float32)
    mpAp = jnp.concatenate([mpA, zpad], axis=0)                               # (S+2, 8*H2)
    mpBp = jnp.concatenate([mpB, zpad], axis=0)
    oc1 = tap_mm(mpAp, wp1A_ref, 0) + tap_mm(mpBp, wp1B_ref, 0)
    for j in (1, 2):
        oc1 = oc1 + tap_mm(mpAp, wp1A_ref, j) + tap_mm(mpBp, wp1B_ref, j)
    oc1 = oc1 + bp1_ref[...]
    # ReLU -> bnp1 (eval affine)
    ocbn1 = jnp.maximum(oc1, 0.0) * bnp1_ref[0:1, :] + bnp1_ref[1:2, :]       # (S, H2)

    # --- cnp2 (3-tap, bnp2 folded into weights/bias) + residual with po6 -------------
    op = jnp.concatenate([ocbn1, jnp.zeros((2, H2), jnp.float32)], axis=0)    # (S+2, H2)
    oc2 = tap_mm(op, wp2_ref, 0)
    for j in (1, 2):
        oc2 = oc2 + tap_mm(op, wp2_ref, j)
    ocbn2 = oc2 + bp2_ref[...] + po6                                          # (S, H2)

    # --- 4-layer highway: gate|nonlinear|linear fused into one matmul per layer ------
    xh = ocbn2
    for l in range(NUM_HW):
        z = _mdot(xh, hww_ref[l]) + hwb_ref[l]                                # (S, 3*H2)
        g = jax.nn.sigmoid(z[:, 0:H2])
        nl = jnp.maximum(z[:, H2:2 * H2], 0.0)
        xh = g * nl + (1.0 - g) * z[:, 2 * H2:3 * H2]

    # --- bidirectional LSTM input projections (fwd|bwd fused, biases folded in) ------
    zall = _mdot(xh, wih_ref[...]) + bih_ref[...]                             # (S, 8*H2)
    zxf_ref[...] = zall[:, 0:4 * H2]
    zxb_ref[...] = zall[:, 4 * H2:8 * H2]


def encoder_core(emb, p):
    S = emb.shape[0]
    H2 = p["b2"].shape[1]
    return pl.pallas_call(
        encoder_core_kernel,
        out_shape=(jax.ShapeDtypeStruct((S, 4 * H2), jnp.float32),
                   jax.ShapeDtypeStruct((S, 4 * H2), jnp.float32)),
        in_specs=_vmem_specs(22),
        out_specs=(_vmem_out(), _vmem_out()),
        compiler_params=pltpu.CompilerParams(vmem_limit_bytes=VMEM_LIMIT_BYTES),
    )(emb, p["w1t"], p["b1"], p["w2t"], p["b2"],
      p["wA"], p["wBlo"], p["wBhi"], p["bA"], p["bB"], p["bnA"], p["bnB"],
      p["wp1A"], p["wp1B"], p["bp1"], p["bnp1"],
      p["wp2"], p["bp2"],
      p["hww"], p["hwb"],
      p["wih"], p["bih"])


# ---------------------------------------------------------------------------
# Kernel 2: bidirectional LSTM recurrence, both directions fused into one
# serial loop (independent chains share the MXU via a block-diagonal
# (1,2H)@(2H,8H) matmul).  Outputs are buffered 8 steps at a time and stored
# as aligned (8,H) blocks directly into the final (S, 2H) layout.
# PyTorch gate order i, f, g, o.
# ---------------------------------------------------------------------------
def bilstm_kernel(zxf_ref, zxb_ref, h0_ref, c0_ref, whh_ref,
                  out_ref, hn_ref, cn_ref):
    S = zxf_ref.shape[0]
    H = h0_ref.shape[1]
    G4 = 4 * H
    whh = whh_ref[...]                              # (2H, 8H) bf16, loaded once

    def gates(z, c_prev):
        i = jax.nn.sigmoid(z[:, 0:H])
        f = jax.nn.sigmoid(z[:, H:2 * H])
        g = jnp.tanh(z[:, 2 * H:3 * H])
        o = jax.nn.sigmoid(z[:, 3 * H:4 * H])
        c = f * c_prev + i * g
        return o * jnp.tanh(c), c

    def one_step(zf_row, zb_row, h, c):
        # h = [hf | hb], c = [cf | cb]  (1, 2H) f32
        zrow = jnp.concatenate([zf_row, zb_row], axis=1)          # (1, 8H)
        z = zrow + jnp.dot(h.astype(MXU_DTYPE), whh,
                           preferred_element_type=jnp.float32)
        hf, cf = gates(z[:, 0:G4], c[:, 0:H])
        hb, cb = gates(z[:, G4:2 * G4], c[:, H:2 * H])
        return hf, hb, jnp.concatenate([hf, hb], axis=1), jnp.concatenate([cf, cb], axis=1)

    NB, REM = S // BLK, S % BLK

    def block_step(b, carry):
        h, c = carry
        base_f = pl.multiple_of(b * BLK, BLK)
        base_b = S - (b + 1) * BLK                  # bwd block covers rows [base_b, base_b+BLK)
        if REM == 0:
            base_b = pl.multiple_of(base_b, BLK)
        zf_blk = zxf_ref[pl.ds(base_f, BLK), :]     # (BLK, 4H) aligned loads
        zb_blk = zxb_ref[pl.ds(base_b, BLK), :]
        hf_rows = [None] * BLK
        hb_rows = [None] * BLK
        for i in range(BLK):                        # unrolled: LLO sees the whole block
            hf, hb, h, c = one_step(zf_blk[i:i + 1, :],
                                    zb_blk[BLK - 1 - i:BLK - i, :], h, c)
            hf_rows[i] = hf
            hb_rows[BLK - 1 - i] = hb
        out_ref[pl.ds(base_f, BLK), pl.ds(0, H)] = jnp.concatenate(hf_rows, axis=0)
        out_ref[pl.ds(base_b, BLK), pl.ds(H, H)] = jnp.concatenate(hb_rows, axis=0)
        return h, c

    h = jnp.concatenate([h0_ref[0:1, :], h0_ref[1:2, :]], axis=1)   # (1, 2H)
    c = jnp.concatenate([c0_ref[0:1, :], c0_ref[1:2, :]], axis=1)
    unroll = True if NB <= 2 else None
    h, c = lax.fori_loop(0, NB, block_step, (h, c), unroll=unroll)

    # tail (S % 8 steps): per-row stores
    for r in range(REM):
        tf = NB * BLK + r
        tb = REM - 1 - r
        hf, hb, h, c = one_step(zxf_ref[pl.ds(tf, 1), :],
                                zxb_ref[pl.ds(tb, 1), :], h, c)
        out_ref[pl.ds(tf, 1), pl.ds(0, H)] = hf
        out_ref[pl.ds(tb, 1), pl.ds(H, H)] = hb

    hn_ref[0:1, :] = h[:, 0:H]
    hn_ref[1:2, :] = h[:, H:2 * H]
    cn_ref[0:1, :] = c[:, 0:H]
    cn_ref[1:2, :] = c[:, H:2 * H]


def bilstm(zxf, zxb, h0, c0, whhblk):
    S = zxf.shape[0]
    H = h0.shape[1]
    return pl.pallas_call(
        bilstm_kernel,
        out_shape=(
            jax.ShapeDtypeStruct((S, 2 * H), jnp.float32),   # [fwd | bwd] per time step
            jax.ShapeDtypeStruct((2, H), jnp.float32),       # hn
            jax.ShapeDtypeStruct((2, H), jnp.float32),       # cn
        ),
        in_specs=_vmem_specs(5),
        out_specs=(_vmem_out(), _vmem_out(), _vmem_out()),
        compiler_params=pltpu.CompilerParams(vmem_limit_bytes=VMEM_LIMIT_BYTES),
    )(zxf, zxb, h0, c0, whhblk)


# ---------------------------------------------------------------------------
# Parameter construction (deterministic; faithful shapes/semantics, with matmul
# weights pre-transposed to (in, out), conv weights packed into the grouped
# im2col layout, and eval-mode BatchNorm folded to scale/shift (bnp2 into cnp2).
# ---------------------------------------------------------------------------
def init_params(key, vocab, H1, H2):
    keys = iter(jax.random.split(key, 256))

    def nrm(shape, scale=0.1):
        return scale * jax.random.normal(next(keys), shape, dtype=jnp.float32)

    HC = 8 * H2
    p = {}
    p["emb"] = nrm((vocab, H1))
    p["w1t"] = nrm((H1, H1)).astype(MXU_DTYPE)
    p["b1"] = nrm((1, H1))
    p["w2t"] = nrm((H1, H2)).astype(MXU_DTYPE)
    p["b2"] = nrm((1, H2))

    # conv bank: cn_k = Conv1d(H2, H2, k, padding=k-1) + BatchNorm1d, k = 1..16.
    # Grouped packing: A = convs 1-8 over taps 0-7; B = convs 9-16 over taps 0-7 (lo)
    # and 8-15 (hi).  Row block j = tap j, column block = conv index within group.
    wA = jnp.zeros((HC, HC), jnp.float32)
    wBlo = jnp.zeros((HC, HC), jnp.float32)
    wBhi = jnp.zeros((HC, HC), jnp.float32)
    bias, scale, shift = [], [], []
    for k in range(1, NUM_K + 1):
        wk = nrm((H2, H2, k))                                   # torch layout (out, in, k)
        col = ((k - 1) % 8) * H2
        for j in range(k):
            blkW = wk[:, :, j].T
            if k <= 8:
                wA = wA.at[j * H2:(j + 1) * H2, col:col + H2].set(blkW)
            elif j < 8:
                wBlo = wBlo.at[j * H2:(j + 1) * H2, col:col + H2].set(blkW)
            else:
                wBhi = wBhi.at[(j - 8) * H2:(j - 7) * H2, col:col + H2].set(blkW)
        bias.append(nrm((H2,)))
        gamma = 1.0 + nrm((H2,)); beta = nrm((H2,))
        mean = nrm((H2,)); var = 1.0 + jnp.abs(nrm((H2,)))
        sc = gamma * lax.rsqrt(var + EPS)                       # BN after ReLU -> affine
        scale.append(sc); shift.append(beta - mean * sc)
    p["wA"] = wA.astype(MXU_DTYPE)
    p["wBlo"] = wBlo.astype(MXU_DTYPE)
    p["wBhi"] = wBhi.astype(MXU_DTYPE)
    p["bA"] = jnp.concatenate(bias[:8]).reshape(1, HC)
    p["bB"] = jnp.concatenate(bias[8:]).reshape(1, HC)
    p["bnA"] = jnp.stack([jnp.concatenate(scale[:8]), jnp.concatenate(shift[:8])])
    p["bnB"] = jnp.stack([jnp.concatenate(scale[8:]), jnp.concatenate(shift[8:])])

    # cnp1 (3-tap over 16*H2 channels) + bnp1 (kept as affine: exact at the zero-pad tail)
    wp1 = nrm((H2, 2 * HC, 3))                                  # (out, in, k)
    p["wp1A"] = jnp.stack([wp1[:, 0:HC, j].T for j in range(3)]).astype(MXU_DTYPE)
    p["wp1B"] = jnp.stack([wp1[:, HC:2 * HC, j].T for j in range(3)]).astype(MXU_DTYPE)
    p["bp1"] = nrm((1, H2))
    g = 1.0 + nrm((H2,)); be = nrm((H2,)); mu = nrm((H2,)); var = 1.0 + jnp.abs(nrm((H2,)))
    s1 = g * lax.rsqrt(var + EPS)
    p["bnp1"] = jnp.stack([s1, be - mu * s1])                   # (2, H2)

    # cnp2 (3-tap) + bnp2: no ReLU in between -> fold BN fully into weights and bias.
    wp2 = nrm((H2, H2, 3)); bp2 = nrm((1, H2))
    g = 1.0 + nrm((H2,)); be = nrm((H2,)); mu = nrm((H2,)); var = 1.0 + jnp.abs(nrm((H2,)))
    s2 = g * lax.rsqrt(var + EPS)
    p["wp2"] = jnp.stack([wp2[:, :, j].T * s2[None, :] for j in range(3)]).astype(MXU_DTYPE)
    p["bp2"] = bp2 * s2[None, :] + (be - mu * s2)[None, :]

    # Highway: 4 layers; gate|nonlinear|linear Linear(H2, H2) fused to (H2, 3*H2).
    hww, hwb = [], []
    for _ in range(NUM_HW):
        wg = nrm((H2, H2)); bg = nrm((H2,))                     # torch Linear weight (out, in)
        wn = nrm((H2, H2)); bn = nrm((H2,))
        wl = nrm((H2, H2)); bl = nrm((H2,))
        hww.append(jnp.concatenate([wg.T, wn.T, wl.T], axis=1))
        hwb.append(jnp.concatenate([bg, bn, bl]).reshape(1, 3 * H2))
    p["hww"] = jnp.stack(hww).astype(MXU_DTYPE)                 # (4, H2, 3*H2)
    p["hwb"] = jnp.stack(hwb)                                   # (4, 1, 3*H2)

    # Bidirectional LSTM(H2, H2): input projections fwd|bwd fused to (H2, 8*H2) with
    # b_ih + b_hh folded in; recurrent weights packed block-diagonally (2*H2, 8*H2).
    wih_f = nrm((4 * H2, H2), 0.01); wih_b = nrm((4 * H2, H2), 0.01)
    whh_f = nrm((4 * H2, H2), 0.01); whh_b = nrm((4 * H2, H2), 0.01)
    bih_f = nrm((4 * H2,), 0.01); bhh_f = nrm((4 * H2,), 0.01)
    bih_b = nrm((4 * H2,), 0.01); bhh_b = nrm((4 * H2,), 0.01)
    p["wih"] = jnp.concatenate([wih_f.T, wih_b.T], axis=1).astype(MXU_DTYPE)
    p["bih"] = jnp.concatenate([bih_f + bhh_f, bih_b + bhh_b]).reshape(1, 8 * H2)
    whhblk = jnp.zeros((2 * H2, 8 * H2), jnp.float32)
    whhblk = whhblk.at[0:H2, 0:4 * H2].set(whh_f.T)
    whhblk = whhblk.at[H2:2 * H2, 4 * H2:8 * H2].set(whh_b.T)
    p["whhblk"] = whhblk.astype(MXU_DTYPE)
    return p


# ---------------------------------------------------------------------------
# Full forward: input (S, 1) int tokens, hidden = (h0, c0) each (2, 1, H2)
# ---------------------------------------------------------------------------
def encoder_cbhl_forward(p, tokens, hidden):
    h0, c0 = hidden
    S = tokens.shape[0]
    H2 = p["b2"].shape[1]

    # embedding(input.transpose(0, 1)).squeeze(0) -> (S, H1)   (gather, JAX glue)
    emb = p["emb"][tokens.reshape(-1)]

    # fused prenet + conv bank + postnet + highway + LSTM input projections
    zxf, zxb = encoder_core(emb, p)                             # (S, 4*H2) x 2

    # fused bidirectional LSTM recurrence -> final (S, 2*H2) layout directly
    out, hn, cn = bilstm(zxf, zxb, h0[:, 0, :], c0[:, 0, :], p["whhblk"])

    output = out.reshape(S, 1, 2 * H2)
    return output, (hn.reshape(2, 1, H2), cn.reshape(2, 1, H2))


if __name__ == "__main__":
    VOCAB, H1, H2, S = 50, 32, 32, 8
    key = jax.random.PRNGKey(0)
    k_param, k_tok = jax.random.split(key)
    params = init_params(k_param, VOCAB, H1, H2)

    tokens = jax.random.randint(k_tok, (S, 1), 0, VOCAB, dtype=jnp.int32)
    hidden = (jnp.zeros((2, 1, H2), jnp.float32),               # initHidden()
              jnp.zeros((2, 1, H2), jnp.float32))

    fwd = jax.jit(encoder_cbhl_forward)
    output, (hn, cn) = fwd(params, tokens, hidden)
    jax.block_until_ready((output, hn, cn))
    assert output.shape == (S, 1, 2 * H2)
    assert hn.shape == (2, 1, H2) and cn.shape == (2, 1, H2)
    assert bool(jnp.isfinite(output).all())
    print("KERNEL_OK")
</pallas_src>

<mosaic_0001>
module attributes {stable_mosaic.version = 11 : i64} {
  func.func @encoder_core_kernel(%arg0: memref<8x32xf32, #tpu.memory_space<vmem>>, %arg1: memref<32x32xbf16, #tpu.memory_space<vmem>>, %arg2: memref<1x32xf32, #tpu.memory_space<vmem>>, %arg3: memref<32x32xbf16, #tpu.memory_space<vmem>>, %arg4: memref<1x32xf32, #tpu.memory_space<vmem>>, %arg5: memref<256x256xbf16, #tpu.memory_space<vmem>>, %arg6: memref<256x256xbf16, #tpu.memory_space<vmem>>, %arg7: memref<256x256xbf16, #tpu.memory_space<vmem>>, %arg8: memref<1x256xf32, #tpu.memory_space<vmem>>, %arg9: memref<1x256xf32, #tpu.memory_space<vmem>>, %arg10: memref<2x256xf32, #tpu.memory_space<vmem>>, %arg11: memref<2x256xf32, #tpu.memory_space<vmem>>, %arg12: memref<3x256x32xbf16, #tpu.memory_space<vmem>>, %arg13: memref<3x256x32xbf16, #tpu.memory_space<vmem>>, %arg14: memref<1x32xf32, #tpu.memory_space<vmem>>, %arg15: memref<2x32xf32, #tpu.memory_space<vmem>>, %arg16: memref<3x32x32xbf16, #tpu.memory_space<vmem>>, %arg17: memref<1x32xf32, #tpu.memory_space<vmem>>, %arg18: memref<4x32x96xbf16, #tpu.memory_space<vmem>>, %arg19: memref<4x1x96xf32, #tpu.memory_space<vmem>>, %arg20: memref<32x256xbf16, #tpu.memory_space<vmem>>, %arg21: memref<1x256xf32, #tpu.memory_space<vmem>>, %arg22: memref<8x128xf32, #tpu.memory_space<vmem>>, %arg23: memref<8x128xf32, #tpu.memory_space<vmem>>) attributes {dimension_semantics = [], scalar_prefetch = 0 : i64, scratch_operands = 0 : i64, tpu.core_type = #tpu.core_type<tc>} {
    %c0 = arith.constant 0 : index
    %c0_0 = arith.constant 0 : index
    %0 = vector.load %arg0[%c0, %c0_0] : memref<8x32xf32, #tpu.memory_space<vmem>>, vector<8x32xf32>
    %c0_1 = arith.constant 0 : index
    %c0_2 = arith.constant 0 : index
    %1 = vector.load %arg1[%c0_1, %c0_2] : memref<32x32xbf16, #tpu.memory_space<vmem>>, vector<32x32xbf16>
    %2 = arith.truncf %0 : vector<8x32xf32> to vector<8x32xbf16>
    %cst = arith.constant dense<0.000000e+00> : vector<8x32xf32>
    %3 = tpu.matmul %2, %1, %cst {dimension_numbers = #tpu.dot_dimension_numbers<[1], [0], [0], [1], [0, 0, 1, 1], [], []>} : vector<8x32xbf16>, vector<32x32xbf16>, vector<8x32xf32> -> vector<8x32xf32>
    %c0_3 = arith.constant 0 : index
    %c0_4 = arith.constant 0 : index
    %4 = vector.load %arg2[%c0_3, %c0_4] : memref<1x32xf32, #tpu.memory_space<vmem>>, vector<1x32xf32>
    %5 = vector.broadcast %4 : vector<1x32xf32> to vector<8x32xf32>
    %6 = arith.addf %3, %5 : vector<8x32xf32>
    %cst_5 = arith.constant 0.000000e+00 : f32
    %7 = vector.broadcast %cst_5 : f32 to vector<8x32xf32>
    %8 = arith.maximumf %6, %7 : vector<8x32xf32>
    %c0_6 = arith.constant 0 : index
    %c0_7 = arith.constant 0 : index
    %9 = vector.load %arg3[%c0_6, %c0_7] : memref<32x32xbf16, #tpu.memory_space<vmem>>, vector<32x32xbf16>
    %10 = arith.truncf %8 : vector<8x32xf32> to vector<8x32xbf16>
    %cst_8 = arith.constant dense<0.000000e+00> : vector<8x32xf32>
    %11 = tpu.matmul %10, %9, %cst_8 {dimension_numbers = #tpu.dot_dimension_numbers<[1], [0], [0], [1], [0, 0, 1, 1], [], []>} : vector<8x32xbf16>, vector<32x32xbf16>, vector<8x32xf32> -> vector<8x32xf32>
    %c0_9 = arith.constant 0 : index
    %c0_10 = arith.constant 0 : index
    %12 = vector.load %arg4[%c0_9, %c0_10] : memref<1x32xf32, #tpu.memory_space<vmem>>, vector<1x32xf32>
    %13 = vector.broadcast %12 : vector<1x32xf32> to vector<8x32xf32>
    %14 = arith.addf %11, %13 : vector<8x32xf32>
    %cst_11 = arith.constant 0.000000e+00 : f32
    %15 = vector.broadcast %cst_11 : f32 to vector<8x32xf32>
    %16 = arith.maximumf %14, %15 : vector<8x32xf32>
    %cst_12 = arith.constant 0.000000e+00 : f32
    %17 = vector.broadcast %cst_12 : f32 to vector<16x32xf32>
    %18 = tpu.concatenate %16, %17 in 0 : vector<8x32xf32>, vector<16x32xf32> -> vector<24x32xf32>
    %19 = vector.extract_strided_slice %18 {offsets = [0, 0], sizes = [8, 32], strides = [1, 1]} : vector<24x32xf32> to vector<8x32xf32>
    %20 = vector.extract_strided_slice %18 {offsets = [1, 0], sizes = [8, 32], strides = [1, 1]} : vector<24x32xf32> to vector<8x32xf32>
    %21 = vector.extract_strided_slice %18 {offsets = [2, 0], sizes = [8, 32], strides = [1, 1]} : vector<24x32xf32> to vector<8x32xf32>
    %22 = vector.extract_strided_slice %18 {offsets = [3, 0], sizes = [8, 32], strides = [1, 1]} : vector<24x32xf32> to vector<8x32xf32>
    %23 = vector.extract_strided_slice %18 {offsets = [4, 0], sizes = [8, 32], strides = [1, 1]} : vector<24x32xf32> to vector<8x32xf32>
    %24 = vector.extract_strided_slice %18 {offsets = [5, 0], sizes = [8, 32], strides = [1, 1]} : vector<24x32xf32> to vector<8x32xf32>
    %25 = vector.extract_strided_slice %18 {offsets = [6, 0], sizes = [8, 32], strides = [1, 1]} : vector<24x32xf32> to vector<8x32xf32>
    %26 = vector.extract_strided_slice %18 {offsets = [7, 0], sizes = [8, 32], strides = [1, 1]} : vector<24x32xf32> to vector<8x32xf32>
    %27 = tpu.concatenate %19, %20, %21, %22, %23, %24, %25, %26 in 1 : vector<8x32xf32>, vector<8x32xf32>, vector<8x32xf32>, vector<8x32xf32>, vector<8x32xf32>, vector<8x32xf32>, vector<8x32xf32>, vector<8x32xf32> -> vector<8x256xf32>
    %28 = vector.extract_strided_slice %18 {offsets = [8, 0], sizes = [8, 32], strides = [1, 1]} : vector<24x32xf32> to vector<8x32xf32>
    %29 = vector.extract_strided_slice %18 {offsets = [9, 0], sizes = [8, 32], strides = [1, 1]} : vector<24x32xf32> to vector<8x32xf32>
    %30 = vector.extract_strided_slice %18 {offsets = [10, 0], sizes = [8, 32], strides = [1, 1]} : vector<24x32xf32> to vector<8x32xf32>
    %31 = vector.extract_strided_slice %18 {offsets = [11, 0], sizes = [8, 32], strides = [1, 1]} : vector<24x32xf32> to vector<8x32xf32>
    %32 = vector.extract_strided_slice %18 {offsets = [12, 0], sizes = [8, 32], strides = [1, 1]} : vector<24x32xf32> to vector<8x32xf32>
    %33 = vector.extract_strided_slice %18 {offsets = [13, 0], sizes = [8, 32], strides = [1, 1]} : vector<24x32xf32> to vector<8x32xf32>
    %34 = vector.extract_strided_slice %18 {offsets = [14, 0], sizes = [8, 32], strides = [1, 1]} : vector<24x32xf32> to vector<8x32xf32>
    %35 = vector.extract_strided_slice %18 {offsets = [15, 0], sizes = [8, 32], strides = [1, 1]} : vector<24x32xf32> to vector<8x32xf32>
    %36 = tpu.concatenate %28, %29, %30, %31, %32, %33, %34, %35 in 1 : vector<8x32xf32>, vector<8x32xf32>, vector<8x32xf32>, vector<8x32xf32>, vector<8x32xf32>, vector<8x32xf32>, vector<8x32xf32>, vector<8x32xf32> -> vector<8x256xf32>
    %37 = arith.truncf %27 : vector<8x256xf32> to vector<8x256xbf16>
    %38 = arith.truncf %36 : vector<8x256xf32> to vector<8x256xbf16>
    %c0_13 = arith.constant 0 : index
    %c0_14 = arith.constant 0 : index
    %39 = vector.load %arg5[%c0_13, %c0_14] : memref<256x256xbf16, #tpu.memory_space<vmem>>, vector<256x256xbf16>
    %cst_15 = arith.constant dense<0.000000e+00> : vector<8x256xf32>
    %40 = tpu.matmul %37, %39, %cst_15 {dimension_numbers = #tpu.dot_dimension_numbers<[1], [0], [0], [1], [0, 0, 1, 1], [], []>} : vector<8x256xbf16>, vector<256x256xbf16>, vector<8x256xf32> -> vector<8x256xf32>
    %c0_16 = arith.constant 0 : index
    %c0_17 = arith.constant 0 : index
    %41 = vector.load %arg8[%c0_16, %c0_17] : memref<1x256xf32, #tpu.memory_space<vmem>>, vector<1x256xf32>
    %42 = vector.broadcast %41 : vector<1x256xf32> to vector<8x256xf32>
    %43 = arith.addf %40, %42 : vector<8x256xf32>
    %c0_18 = arith.constant 0 : index
    %c0_19 = arith.constant 0 : index
    %44 = vector.load %arg6[%c0_18, %c0_19] : memref<256x256xbf16, #tpu.memory_space<vmem>>, vector<256x256xbf16>
    %cst_20 = arith.constant dense<0.000000e+00> : vector<8x256xf32>
    %45 = tpu.matmul %37, %44, %cst_20 {dimension_numbers = #tpu.dot_dimension_numbers<[1], [0], [0], [1], [0, 0, 1, 1], [], []>} : vector<8x256xbf16>, vector<256x256xbf16>, vector<8x256xf32> -> vector<8x256xf32>
    %c0_21 = arith.constant 0 : index
    %c0_22 = arith.constant 0 : index
    %46 = vector.load %arg7[%c0_21, %c0_22] : memref<256x256xbf16, #tpu.memory_space<vmem>>, vector<256x256xbf16>
    %cst_23 = arith.constant dense<0.000000e+00> : vector<8x256xf32>
    %47 = tpu.matmul %38, %46, %cst_23 {dimension_numbers = #tpu.dot_dimension_numbers<[1], [0], [0], [1], [0, 0, 1, 1], [], []>} : vector<8x256xbf16>, vector<256x256xbf16>, vector<8x256xf32> -> vector<8x256xf32>
    %48 = arith.addf %45, %47 : vector<8x256xf32>
    %c0_24 = arith.constant 0 : index
    %c0_25 = arith.constant 0 : index
    %49 = vector.load %arg9[%c0_24, %c0_25] : memref<1x256xf32, #tpu.memory_space<vmem>>, vector<1x256xf32>
    %50 = vector.broadcast %49 : vector<1x256xf32> to vector<8x256xf32>
    %51 = arith.addf %48, %50 : vector<8x256xf32>
    %cst_26 = arith.constant 0.000000e+00 : f32
    %52 = vector.broadcast %cst_26 : f32 to vector<8x256xf32>
    %53 = arith.maximumf %43, %52 : vector<8x256xf32>
    %c0_27 = arith.constant 0 : index
    %c0_28 = arith.constant 0 : index
    %54 = vector.load %arg10[%c0_27, %c0_28] : memref<2x256xf32, #tpu.memory_space<vmem>>, vector<1x256xf32>
    %55 = vector.broadcast %54 : vector<1x256xf32> to vector<8x256xf32>
    %56 = arith.mulf %53, %55 : vector<8x256xf32>
    %c1 = arith.constant 1 : index
    %c0_29 = arith.constant 0 : index
    %57 = vector.load %arg10[%c1, %c0_29] : memref<2x256xf32, #tpu.memory_space<vmem>>, vector<1x256xf32>
    %58 = vector.broadcast %57 : vector<1x256xf32> to vector<8x256xf32>
    %59 = arith.addf %56, %58 : vector<8x256xf32>
    %cst_30 = arith.constant 0.000000e+00 : f32
    %60 = vector.broadcast %cst_30 : f32 to vector<8x256xf32>
    %61 = arith.maximumf %51, %60 : vector<8x256xf32>
    %c0_31 = arith.constant 0 : index
    %c0_32 = arith.constant 0 : index
    %62 = vector.load %arg11[%c0_31, %c0_32] : memref<2x256xf32, #tpu.memory_space<vmem>>, vector<1x256xf32>
    %63 = vector.broadcast %62 : vector<1x256xf32> to vector<8x256xf32>
    %64 = arith.mulf %61, %63 : vector<8x256xf32>
    %c1_33 = arith.constant 1 : index
    %c0_34 = arith.constant 0 : index
    %65 = vector.load %arg11[%c1_33, %c0_34] : memref<2x256xf32, #tpu.memory_space<vmem>>, vector<1x256xf32>
    %66 = vector.broadcast %65 : vector<1x256xf32> to vector<8x256xf32>
    %67 = arith.addf %64, %66 : vector<8x256xf32>
    %cst_35 = arith.constant 0xFF800000 : f32
    %68 = vector.broadcast %cst_35 : f32 to vector<1x256xf32>
    %69 = tpu.concatenate %59, %68 in 0 : vector<8x256xf32>, vector<1x256xf32> -> vector<9x256xf32>
    %70 = tpu.concatenate %67, %68 in 0 : vector<8x256xf32>, vector<1x256xf32> -> vector<9x256xf32>
    %71 = vector.extract_strided_slice %69 {offsets = [0, 0], sizes = [8, 256], strides = [1, 1]} : vector<9x256xf32> to vector<8x256xf32>
    %72 = vector.extract_strided_slice %69 {offsets = [1, 0], sizes = [8, 256], strides = [1, 1]} : vector<9x256xf32> to vector<8x256xf32>
    %73 = arith.maximumf %71, %72 : vector<8x256xf32>
    %74 = vector.extract_strided_slice %70 {offsets = [0, 0], sizes = [8, 256], strides = [1, 1]} : vector<9x256xf32> to vector<8x256xf32>
    %75 = vector.extract_strided_slice %70 {offsets = [1, 0], sizes = [8, 256], strides = [1, 1]} : vector<9x256xf32> to vector<8x256xf32>
    %76 = arith.maximumf %74, %75 : vector<8x256xf32>
    %cst_36 = arith.constant 0.000000e+00 : f32
    %77 = vector.broadcast %cst_36 : f32 to vector<2x256xf32>
    %78 = tpu.concatenate %73, %77 in 0 : vector<8x256xf32>, vector<2x256xf32> -> vector<10x256xf32>
    %79 = tpu.concatenate %76, %77 in 0 : vector<8x256xf32>, vector<2x256xf32> -> vector<10x256xf32>
    %80 = vector.extract_strided_slice %78 {offsets = [0, 0], sizes = [8, 256], strides = [1, 1]} : vector<10x256xf32> to vector<8x256xf32>
    %81 = arith.truncf %80 : vector<8x256xf32> to vector<8x256xbf16>
    %c0_37 = arith.constant 0 : index
    %c0_38 = arith.constant 0 : index
    %c0_39 = arith.constant 0 : index
    %82 = vector.load %arg12[%c0_37, %c0_38, %c0_39] : memref<3x256x32xbf16, #tpu.memory_space<vmem>>, vector<1x256x32xbf16>
    %83 = vector.shape_cast %82 : vector<1x256x32xbf16> to vector<256x32xbf16>
    %cst_40 = arith.constant dense<0.000000e+00> : vector<8x32xf32>
    %84 = tpu.matmul %81, %83, %cst_40 {dimension_numbers = #tpu.dot_dimension_numbers<[1], [0], [0], [1], [0, 0, 1, 1], [], []>} : vector<8x256xbf16>, vector<256x32xbf16>, vector<8x32xf32> -> vector<8x32xf32>
    %85 = vector.extract_strided_slice %79 {offsets = [0, 0], sizes = [8, 256], strides = [1, 1]} : vector<10x256xf32> to vector<8x256xf32>
    %86 = arith.truncf %85 : vector<8x256xf32> to vector<8x256xbf16>
    %c0_41 = arith.constant 0 : index
    %c0_42 = arith.constant 0 : index
    %c0_43 = arith.constant 0 : index
    %87 = vector.load %arg13[%c0_41, %c0_42, %c0_43] : memref<3x256x32xbf16, #tpu.memory_space<vmem>>, vector<1x256x32xbf16>
    %88 = vector.shape_cast %87 : vector<1x256x32xbf16> to vector<256x32xbf16>
    %cst_44 = arith.constant dense<0.000000e+00> : vector<8x32xf32>
    %89 = tpu.matmul %86, %88, %cst_44 {dimension_numbers = #tpu.dot_dimension_numbers<[1], [0], [0], [1], [0, 0, 1, 1], [], []>} : vector<8x256xbf16>, vector<256x32xbf16>, vector<8x32xf32> -> vector<8x32xf32>
    %90 = arith.addf %84, %89 : vector<8x32xf32>
    %91 = vector.extract_strided_slice %78 {offsets = [1, 0], sizes = [8, 256], strides = [1, 1]} : vector<10x256xf32> to vector<8x256xf32>
    %92 = arith.truncf %91 : vector<8x256xf32> to vector<8x256xbf16>
    %c1_45 = arith.constant 1 : index
    %c0_46 = arith.constant 0 : index
    %c0_47 = arith.constant 0 : index
    %93 = vector.load %arg12[%c1_45, %c0_46, %c0_47] : memref<3x256x32xbf16, #tpu.memory_space<vmem>>, vector<1x256x32xbf16>
    %94 = vector.shape_cast %93 : vector<1x256x32xbf16> to vector<256x32xbf16>
    %cst_48 = arith.constant dense<0.000000e+00> : vector<8x32xf32>
    %95 = tpu.matmul %92, %94, %cst_48 {dimension_numbers = #tpu.dot_dimension_numbers<[1], [0], [0], [1], [0, 0, 1, 1], [], []>} : vector<8x256xbf16>, vector<256x32xbf16>, vector<8x32xf32> -> vector<8x32xf32>
    %96 = arith.addf %90, %95 : vector<8x32xf32>
    %97 = vector.extract_strided_slice %79 {offsets = [1, 0], sizes = [8, 256], strides = [1, 1]} : vector<10x256xf32> to vector<8x256xf32>
    %98 = arith.truncf %97 : vector<8x256xf32> to vector<8x256xbf16>
    %c1_49 = arith.constant 1 : index
    %c0_50 = arith.constant 0 : index
    %c0_51 = arith.constant 0 : index
    %99 = vector.load %arg13[%c1_49, %c0_50, %c0_51] : memref<3x256x32xbf16, #tpu.memory_space<vmem>>, vector<1x256x32xbf16>
    %100 = vector.shape_cast %99 : vector<1x256x32xbf16> to vector<256x32xbf16>
    %cst_52 = arith.constant dense<0.000000e+00> : vector<8x32xf32>
    %101 = tpu.matmul %98, %100, %cst_52 {dimension_numbers = #tpu.dot_dimension_numbers<[1], [0], [0], [1], [0, 0, 1, 1], [], []>} : vector<8x256xbf16>, vector<256x32xbf16>, vector<8x32xf32> -> vector<8x32xf32>
    %102 = arith.addf %96, %101 : vector<8x32xf32>
    %103 = vector.extract_strided_slice %78 {offsets = [2, 0], sizes = [8, 256], strides = [1, 1]} : vector<10x256xf32> to vector<8x256xf32>
    %104 = arith.truncf %103 : vector<8x256xf32> to vector<8x256xbf16>
    %c2 = arith.constant 2 : index
    %c0_53 = arith.constant 0 : index
    %c0_54 = arith.constant 0 : index
    %105 = vector.load %arg12[%c2, %c0_53, %c0_54] : memref<3x256x32xbf16, #tpu.memory_space<vmem>>, vector<1x256x32xbf16>
    %106 = vector.shape_cast %105 : vector<1x256x32xbf16> to vector<256x32xbf16>
    %cst_55 = arith.constant dense<0.000000e+00> : vector<8x32xf32>
    %107 = tpu.matmul %104, %106, %cst_55 {dimension_numbers = #tpu.dot_dimension_numbers<[1], [0], [0], [1], [0, 0, 1, 1], [], []>} : vector<8x256xbf16>, vector<256x32xbf16>, vector<8x32xf32> -> vector<8x32xf32>
    %108 = arith.addf %102, %107 : vector<8x32xf32>
    %109 = vector.extract_strided_slice %79 {offsets = [2, 0], sizes = [8, 256], strides = [1, 1]} : vector<10x256xf32> to vector<8x256xf32>
    %110 = arith.truncf %109 : vector<8x256xf32> to vector<8x256xbf16>
    %c2_56 = arith.constant 2 : index
    %c0_57 = arith.constant 0 : index
    %c0_58 = arith.constant 0 : index
    %111 = vector.load %arg13[%c2_56, %c0_57, %c0_58] : memref<3x256x32xbf16, #tpu.memory_space<vmem>>, vector<1x256x32xbf16>
    %112 = vector.shape_cast %111 : vector<1x256x32xbf16> to vector<256x32xbf16>
    %cst_59 = arith.constant dense<0.000000e+00> : vector<8x32xf32>
    %113 = tpu.matmul %110, %112, %cst_59 {dimension_numbers = #tpu.dot_dimension_numbers<[1], [0], [0], [1], [0, 0, 1, 1], [], []>} : vector<8x256xbf16>, vector<256x32xbf16>, vector<8x32xf32> -> vector<8x32xf32>
    %114 = arith.addf %108, %113 : vector<8x32xf32>
    %c0_60 = arith.constant 0 : index
    %c0_61 = arith.constant 0 : index
    %115 = vector.load %arg14[%c0_60, %c0_61] : memref<1x32xf32, #tpu.memory_space<vmem>>, vector<1x32xf32>
    %116 = vector.broadcast %115 : vector<1x32xf32> to vector<8x32xf32>
    %117 = arith.addf %114, %116 : vector<8x32xf32>
    %cst_62 = arith.constant 0.000000e+00 : f32
    %118 = vector.broadcast %cst_62 : f32 to vector<8x32xf32>
    %119 = arith.maximumf %117, %118 : vector<8x32xf32>
    %c0_63 = arith.constant 0 : index
    %c0_64 = arith.constant 0 : index
    %120 = vector.load %arg15[%c0_63, %c0_64] : memref<2x32xf32, #tpu.memory_space<vmem>>, vector<1x32xf32>
    %121 = vector.broadcast %120 : vector<1x32xf32> to vector<8x32xf32>
    %122 = arith.mulf %119, %121 : vector<8x32xf32>
    %c1_65 = arith.constant 1 : index
    %c0_66 = arith.constant 0 : index
    %123 = vector.load %arg15[%c1_65, %c0_66] : memref<2x32xf32, #tpu.memory_space<vmem>>, vector<1x32xf32>
    %124 = vector.broadcast %123 : vector<1x32xf32> to vector<8x32xf32>
    %125 = arith.addf %122, %124 : vector<8x32xf32>
    %cst_67 = arith.constant 0.000000e+00 : f32
    %126 = vector.broadcast %cst_67 : f32 to vector<2x32xf32>
    %127 = tpu.concatenate %125, %126 in 0 : vector<8x32xf32>, vector<2x32xf32> -> vector<10x32xf32>
    %128 = vector.extract_strided_slice %127 {offsets = [0, 0], sizes = [8, 32], strides = [1, 1]} : vector<10x32xf32> to vector<8x32xf32>
    %129 = arith.truncf %128 : vector<8x32xf32> to vector<8x32xbf16>
    %c0_68 = arith.constant 0 : index
    %c0_69 = arith.constant 0 : index
    %c0_70 = arith.constant 0 : index
    %130 = vector.load %arg16[%c0_68, %c0_69, %c0_70] : memref<3x32x32xbf16, #tpu.memory_space<vmem>>, vector<1x32x32xbf16>
    %131 = vector.shape_cast %130 : vector<1x32x32xbf16> to vector<32x32xbf16>
    %cst_71 = arith.constant dense<0.000000e+00> : vector<8x32xf32>
    %132 = tpu.matmul %129, %131, %cst_71 {dimension_numbers = #tpu.dot_dimension_numbers<[1], [0], [0], [1], [0, 0, 1, 1], [], []>} : vector<8x32xbf16>, vector<32x32xbf16>, vector<8x32xf32> -> vector<8x32xf32>
    %133 = vector.extract_strided_slice %127 {offsets = [1, 0], sizes = [8, 32], strides = [1, 1]} : vector<10x32xf32> to vector<8x32xf32>
    %134 = arith.truncf %133 : vector<8x32xf32> to vector<8x32xbf16>
    %c1_72 = arith.constant 1 : index
    %c0_73 = arith.constant 0 : index
    %c0_74 = arith.constant 0 : index
    %135 = vector.load %arg16[%c1_72, %c0_73, %c0_74] : memref<3x32x32xbf16, #tpu.memory_space<vmem>>, vector<1x32x32xbf16>
    %136 = vector.shape_cast %135 : vector<1x32x32xbf16> to vector<32x32xbf16>
    %cst_75 = arith.constant dense<0.000000e+00> : vector<8x32xf32>
    %137 = tpu.matmul %134, %136, %cst_75 {dimension_numbers = #tpu.dot_dimension_numbers<[1], [0], [0], [1], [0, 0, 1, 1], [], []>} : vector<8x32xbf16>, vector<32x32xbf16>, vector<8x32xf32> -> vector<8x32xf32>
    %138 = arith.addf %132, %137 : vector<8x32xf32>
    %139 = vector.extract_strided_slice %127 {offsets = [2, 0], sizes = [8, 32], strides = [1, 1]} : vector<10x32xf32> to vector<8x32xf32>
    %140 = arith.truncf %139 : vector<8x32xf32> to vector<8x32xbf16>
    %c2_76 = arith.constant 2 : index
    %c0_77 = arith.constant 0 : index
    %c0_78 = arith.constant 0 : index
    %141 = vector.load %arg16[%c2_76, %c0_77, %c0_78] : memref<3x32x32xbf16, #tpu.memory_space<vmem>>, vector<1x32x32xbf16>
    %142 = vector.shape_cast %141 : vector<1x32x32xbf16> to vector<32x32xbf16>
    %cst_79 = arith.constant dense<0.000000e+00> : vector<8x32xf32>
    %143 = tpu.matmul %140, %142, %cst_79 {dimension_numbers = #tpu.dot_dimension_numbers<[1], [0], [0], [1], [0, 0, 1, 1], [], []>} : vector<8x32xbf16>, vector<32x32xbf16>, vector<8x32xf32> -> vector<8x32xf32>
    %144 = arith.addf %138, %143 : vector<8x32xf32>
    %c0_80 = arith.constant 0 : index
    %c0_81 = arith.constant 0 : index
    %145 = vector.load %arg17[%c0_80, %c0_81] : memref<1x32xf32, #tpu.memory_space<vmem>>, vector<1x32xf32>
    %146 = vector.broadcast %145 : vector<1x32xf32> to vector<8x32xf32>
    %147 = arith.addf %144, %146 : vector<8x32xf32>
    %148 = arith.addf %147, %16 : vector<8x32xf32>
    %c0_82 = arith.constant 0 : index
    %c0_83 = arith.constant 0 : index
    %c0_84 = arith.constant 0 : index
    %149 = vector.load %arg18[%c0_82, %c0_83, %c0_84] : memref<4x32x96xbf16, #tpu.memory_space<vmem>>, vector<1x32x96xbf16>
    %150 = vector.shape_cast %149 : vector<1x32x96xbf16> to vector<32x96xbf16>
    %151 = arith.truncf %148 : vector<8x32xf32> to vector<8x32xbf16>
    %cst_85 = arith.constant dense<0.000000e+00> : vector<8x96xf32>
    %152 = tpu.matmul %151, %150, %cst_85 {dimension_numbers = #tpu.dot_dimension_numbers<[1], [0], [0], [1], [0, 0, 1, 1], [], []>} : vector<8x32xbf16>, vector<32x96xbf16>, vector<8x96xf32> -> vector<8x96xf32>
    %c0_86 = arith.constant 0 : index
    %c0_87 = arith.constant 0 : index
    %c0_88 = arith.constant 0 : index
    %153 = vector.load %arg19[%c0_86, %c0_87, %c0_88] : memref<4x1x96xf32, #tpu.memory_space<vmem>>, vector<1x1x96xf32>
    %154 = vector.shape_cast %153 : vector<1x1x96xf32> to vector<1x96xf32>
    %155 = vector.broadcast %154 : vector<1x96xf32> to vector<8x96xf32>
    %156 = arith.addf %152, %155 : vector<8x96xf32>
    %157 = vector.extract_strided_slice %156 {offsets = [0, 0], sizes = [8, 32], strides = [1, 1]} : vector<8x96xf32> to vector<8x32xf32>
    %158 = arith.negf %157 : vector<8x32xf32>
    %159 = math.exp %158 : vector<8x32xf32>
    %cst_89 = arith.constant 1.000000e+00 : f32
    %160 = vector.broadcast %cst_89 : f32 to vector<8x32xf32>
    %161 = arith.addf %160, %159 : vector<8x32xf32>
    %162 = arith.divf %160, %161 : vector<8x32xf32>
    %163 = vector.extract_strided_slice %156 {offsets = [0, 32], sizes = [8, 32], strides = [1, 1]} : vector<8x96xf32> to vector<8x32xf32>
    %cst_90 = arith.constant 0.000000e+00 : f32
    %164 = vector.broadcast %cst_90 : f32 to vector<8x32xf32>
    %165 = arith.maximumf %163, %164 : vector<8x32xf32>
    %166 = arith.mulf %162, %165 : vector<8x32xf32>
    %cst_91 = arith.constant 1.000000e+00 : f32
    %167 = vector.broadcast %cst_91 : f32 to vector<8x32xf32>
    %168 = arith.subf %167, %162 : vector<8x32xf32>
    %169 = vector.extract_strided_slice %156 {offsets = [0, 64], sizes = [8, 32], strides = [1, 1]} : vector<8x96xf32> to vector<8x32xf32>
    %170 = arith.mulf %168, %169 : vector<8x32xf32>
    %171 = arith.addf %166, %170 : vector<8x32xf32>
    %c1_92 = arith.constant 1 : index
    %c0_93 = arith.constant 0 : index
    %c0_94 = arith.constant 0 : index
    %172 = vector.load %arg18[%c1_92, %c0_93, %c0_94] : memref<4x32x96xbf16, #tpu.memory_space<vmem>>, vector<1x32x96xbf16>
    %173 = vector.shape_cast %172 : vector<1x32x96xbf16> to vector<32x96xbf16>
    %174 = arith.truncf %171 : vector<8x32xf32> to vector<8x32xbf16>
    %cst_95 = arith.constant dense<0.000000e+00> : vector<8x96xf32>
    %175 = tpu.matmul %174, %173, %cst_95 {dimension_numbers = #tpu.dot_dimension_numbers<[1], [0], [0], [1], [0, 0, 1, 1], [], []>} : vector<8x32xbf16>, vector<32x96xbf16>, vector<8x96xf32> -> vector<8x96xf32>
    %c1_96 = arith.constant 1 : index
    %c0_97 = arith.constant 0 : index
    %c0_98 = arith.constant 0 : index
    %176 = vector.load %arg19[%c1_96, %c0_97, %c0_98] : memref<4x1x96xf32, #tpu.memory_space<vmem>>, vector<1x1x96xf32>
    %177 = vector.shape_cast %176 : vector<1x1x96xf32> to vector<1x96xf32>
    %178 = vector.broadcast %177 : vector<1x96xf32> to vector<8x96xf32>
    %179 = arith.addf %175, %178 : vector<8x96xf32>
    %180 = vector.extract_strided_slice %179 {offsets = [0, 0], sizes = [8, 32], strides = [1, 1]} : vector<8x96xf32> to vector<8x32xf32>
    %181 = arith.negf %180 : vector<8x32xf32>
    %182 = math.exp %181 : vector<8x32xf32>
    %cst_99 = arith.constant 1.000000e+00 : f32
    %183 = vector.broadcast %cst_99 : f32 to vector<8x32xf32>
    %184 = arith.addf %183, %182 : vector<8x32xf32>
    %185 = arith.divf %183, %184 : vector<8x32xf32>
    %186 = vector.extract_strided_slice %179 {offsets = [0, 32], sizes = [8, 32], strides = [1, 1]} : vector<8x96xf32> to vector<8x32xf32>
    %cst_100 = arith.constant 0.000000e+00 : f32
    %187 = vector.broadcast %cst_100 : f32 to vector<8x32xf32>
    %188 = arith.maximumf %186, %187 : vector<8x32xf32>
    %189 = arith.mulf %185, %188 : vector<8x32xf32>
    %cst_101 = arith.constant 1.000000e+00 : f32
    %190 = vector.broadcast %cst_101 : f32 to vector<8x32xf32>
    %191 = arith.subf %190, %185 : vector<8x32xf32>
    %192 = vector.extract_strided_slice %179 {offsets = [0, 64], sizes = [8, 32], strides = [1, 1]} : vector<8x96xf32> to vector<8x32xf32>
    %193 = arith.mulf %191, %192 : vector<8x32xf32>
    %194 = arith.addf %189, %193 : vector<8x32xf32>
    %c2_102 = arith.constant 2 : index
    %c0_103 = arith.constant 0 : index
    %c0_104 = arith.constant 0 : index
    %195 = vector.load %arg18[%c2_102, %c0_103, %c0_104] : memref<4x32x96xbf16, #tpu.memory_space<vmem>>, vector<1x32x96xbf16>
    %196 = vector.shape_cast %195 : vector<1x32x96xbf16> to vector<32x96xbf16>
    %197 = arith.truncf %194 : vector<8x32xf32> to vector<8x32xbf16>
    %cst_105 = arith.constant dense<0.000000e+00> : vector<8x96xf32>
    %198 = tpu.matmul %197, %196, %cst_105 {dimension_numbers = #tpu.dot_dimension_numbers<[1], [0], [0], [1], [0, 0, 1, 1], [], []>} : vector<8x32xbf16>, vector<32x96xbf16>, vector<8x96xf32> -> vector<8x96xf32>
    %c2_106 = arith.constant 2 : index
    %c0_107 = arith.constant 0 : index
    %c0_108 = arith.constant 0 : index
    %199 = vector.load %arg19[%c2_106, %c0_107, %c0_108] : memref<4x1x96xf32, #tpu.memory_space<vmem>>, vector<1x1x96xf32>
    %200 = vector.shape_cast %199 : vector<1x1x96xf32> to vector<1x96xf32>
    %201 = vector.broadcast %200 : vector<1x96xf32> to vector<8x96xf32>
    %202 = arith.addf %198, %201 : vector<8x96xf32>
    %203 = vector.extract_strided_slice %202 {offsets = [0, 0], sizes = [8, 32], strides = [1, 1]} : vector<8x96xf32> to vector<8x32xf32>
    %204 = arith.negf %203 : vector<8x32xf32>
    %205 = math.exp %204 : vector<8x32xf32>
    %cst_109 = arith.constant 1.000000e+00 : f32
    %206 = vector.broadcast %cst_109 : f32 to vector<8x32xf32>
    %207 = arith.addf %206, %205 : vector<8x32xf32>
    %208 = arith.divf %206, %207 : vector<8x32xf32>
    %209 = vector.extract_strided_slice %202 {offsets = [0, 32], sizes = [8, 32], strides = [1, 1]} : vector<8x96xf32> to vector<8x32xf32>
    %cst_110 = arith.constant 0.000000e+00 : f32
    %210 = vector.broadcast %cst_110 : f32 to vector<8x32xf32>
    %211 = arith.maximumf %209, %210 : vector<8x32xf32>
    %212 = arith.mulf %208, %211 : vector<8x32xf32>
    %cst_111 = arith.constant 1.000000e+00 : f32
    %213 = vector.broadcast %cst_111 : f32 to vector<8x32xf32>
    %214 = arith.subf %213, %208 : vector<8x32xf32>
    %215 = vector.extract_strided_slice %202 {offsets = [0, 64], sizes = [8, 32], strides = [1, 1]} : vector<8x96xf32> to vector<8x32xf32>
    %216 = arith.mulf %214, %215 : vector<8x32xf32>
    %217 = arith.addf %212, %216 : vector<8x32xf32>
    %c3 = arith.constant 3 : index
    %c0_112 = arith.constant 0 : index
    %c0_113 = arith.constant 0 : index
    %218 = vector.load %arg18[%c3, %c0_112, %c0_113] : memref<4x32x96xbf16, #tpu.memory_space<vmem>>, vector<1x32x96xbf16>
    %219 = vector.shape_cast %218 : vector<1x32x96xbf16> to vector<32x96xbf16>
    %220 = arith.truncf %217 : vector<8x32xf32> to vector<8x32xbf16>
    %cst_114 = arith.constant dense<0.000000e+00> : vector<8x96xf32>
    %221 = tpu.matmul %220, %219, %cst_114 {dimension_numbers = #tpu.dot_dimension_numbers<[1], [0], [0], [1], [0, 0, 1, 1], [], []>} : vector<8x32xbf16>, vector<32x96xbf16>, vector<8x96xf32> -> vector<8x96xf32>
    %c3_115 = arith.constant 3 : index
    %c0_116 = arith.constant 0 : index
    %c0_117 = arith.constant 0 : index
    %222 = vector.load %arg19[%c3_115, %c0_116, %c0_117] : memref<4x1x96xf32, #tpu.memory_space<vmem>>, vector<1x1x96xf32>
    %223 = vector.shape_cast %222 : vector<1x1x96xf32> to vector<1x96xf32>
    %224 = vector.broadcast %223 : vector<1x96xf32> to vector<8x96xf32>
    %225 = arith.addf %221, %224 : vector<8x96xf32>
    %226 = vector.extract_strided_slice %225 {offsets = [0, 0], sizes = [8, 32], strides = [1, 1]} : vector<8x96xf32> to vector<8x32xf32>
    %227 = arith.negf %226 : vector<8x32xf32>
    %228 = math.exp %227 : vector<8x32xf32>
    %cst_118 = arith.constant 1.000000e+00 : f32
    %229 = vector.broadcast %cst_118 : f32 to vector<8x32xf32>
    %230 = arith.addf %229, %228 : vector<8x32xf32>
    %231 = arith.divf %229, %230 : vector<8x32xf32>
    %232 = vector.extract_strided_slice %225 {offsets = [0, 32], sizes = [8, 32], strides = [1, 1]} : vector<8x96xf32> to vector<8x32xf32>
    %cst_119 = arith.constant 0.000000e+00 : f32
    %233 = vector.broadcast %cst_119 : f32 to vector<8x32xf32>
    %234 = arith.maximumf %232, %233 : vector<8x32xf32>
    %235 = arith.mulf %231, %234 : vector<8x32xf32>
    %cst_120 = arith.constant 1.000000e+00 : f32
    %236 = vector.broadcast %cst_120 : f32 to vector<8x32xf32>
    %237 = arith.subf %236, %231 : vector<8x32xf32>
    %238 = vector.extract_strided_slice %225 {offsets = [0, 64], sizes = [8, 32], strides = [1, 1]} : vector<8x96xf32> to vector<8x32xf32>
    %239 = arith.mulf %237, %238 : vector<8x32xf32>
    %240 = arith.addf %235, %239 : vector<8x32xf32>
    %c0_121 = arith.constant 0 : index
    %c0_122 = arith.constant 0 : index
    %241 = vector.load %arg20[%c0_121, %c0_122] : memref<32x256xbf16, #tpu.memory_space<vmem>>, vector<32x256xbf16>
    %242 = arith.truncf %240 : vector<8x32xf32> to vector<8x32xbf16>
    %cst_123 = arith.constant dense<0.000000e+00> : vector<8x256xf32>
    %243 = tpu.matmul %242, %241, %cst_123 {dimension_numbers = #tpu.dot_dimension_numbers<[1], [0], [0], [1], [0, 0, 1, 1], [], []>} : vector<8x32xbf16>, vector<32x256xbf16>, vector<8x256xf32> -> vector<8x256xf32>
    %c0_124 = arith.constant 0 : index
    %c0_125 = arith.constant 0 : index
    %244 = vector.load %arg21[%c0_124, %c0_125] : memref<1x256xf32, #tpu.memory_space<vmem>>, vector<1x256xf32>
    %245 = vector.broadcast %244 : vector<1x256xf32> to vector<8x256xf32>
    %246 = arith.addf %243, %245 : vector<8x256xf32>
    %247 = vector.extract_strided_slice %246 {offsets = [0, 0], sizes = [8, 128], strides = [1, 1]} : vector<8x256xf32> to vector<8x128xf32>
    %c0_126 = arith.constant 0 : index
    %c0_127 = arith.constant 0 : index
    %248 = vector.load %arg22[%c0_126, %c0_127] : memref<8x128xf32, #tpu.memory_space<vmem>>, vector<8x128xf32>
    tpu.vector_store %arg22[%c0_126, %c0_127], %247 {strides = array<i32>} : memref<8x128xf32, #tpu.memory_space<vmem>>, vector<8x128xf32>,
    %249 = vector.extract_strided_slice %246 {offsets = [0, 128], sizes = [8, 128], strides = [1, 1]} : vector<8x256xf32> to vector<8x128xf32>
    %c0_128 = arith.constant 0 : index
    %c0_129 = arith.constant 0 : index
    %250 = vector.load %arg23[%c0_128, %c0_129] : memref<8x128xf32, #tpu.memory_space<vmem>>, vector<8x128xf32>
    tpu.vector_store %arg23[%c0_128, %c0_129], %249 {strides = array<i32>} : memref<8x128xf32, #tpu.memory_space<vmem>>, vector<8x128xf32>,
    return
  }
}

module attributes {stable_mosaic.version = 11 : i64} {
  func.func @bilstm_kernel(%arg0: memref<8x128xf32, #tpu.memory_space<vmem>>, %arg1: memref<8x128xf32, #tpu.memory_space<vmem>>, %arg2: memref<2x32xf32, #tpu.memory_space<vmem>>, %arg3: memref<2x32xf32, #tpu.memory_space<vmem>>, %arg4: memref<64x256xbf16, #tpu.memory_space<vmem>>, %arg5: memref<8x64xf32, #tpu.memory_space<vmem>>, %arg6: memref<2x32xf32, #tpu.memory_space<vmem>>, %arg7: memref<2x32xf32, #tpu.memory_space<vmem>>) attributes {dimension_semantics = [], scalar_prefetch = 0 : i64, scratch_operands = 0 : i64, tpu.core_type = #tpu.core_type<tc>} {
    %c0 = arith.constant 0 : index
    %c0_0 = arith.constant 0 : index
    %0 = vector.load %arg4[%c0, %c0_0] : memref<64x256xbf16, #tpu.memory_space<vmem>>, vector<64x256xbf16>
    %c0_1 = arith.constant 0 : index
    %c0_2 = arith.constant 0 : index
    %1 = vector.load %arg2[%c0_1, %c0_2] : memref<2x32xf32, #tpu.memory_space<vmem>>, vector<1x32xf32>
    %c1 = arith.constant 1 : index
    %c0_3 = arith.constant 0 : index
    %2 = vector.load %arg2[%c1, %c0_3] : memref<2x32xf32, #tpu.memory_space<vmem>>, vector<1x32xf32>
    %3 = tpu.concatenate %1, %2 in 1 : vector<1x32xf32>, vector<1x32xf32> -> vector<1x64xf32>
    %c0_4 = arith.constant 0 : index
    %c0_5 = arith.constant 0 : index
    %4 = vector.load %arg3[%c0_4, %c0_5] : memref<2x32xf32, #tpu.memory_space<vmem>>, vector<1x32xf32>
    %c1_6 = arith.constant 1 : index
    %c0_7 = arith.constant 0 : index
    %5 = vector.load %arg3[%c1_6, %c0_7] : memref<2x32xf32, #tpu.memory_space<vmem>>, vector<1x32xf32>
    %6 = tpu.concatenate %4, %5 in 1 : vector<1x32xf32>, vector<1x32xf32> -> vector<1x64xf32>
    %c0_i32 = arith.constant 0 : i32
    %c8_i32 = arith.constant 8 : i32
    %7 = arith.muli %c0_i32, %c8_i32 : i32
    %8 = tpu.assume_multiple %7, 8 : i32
    %c1_i32 = arith.constant 1 : i32
    %9 = arith.addi %c0_i32, %c1_i32 : i32
    %c8_i32_8 = arith.constant 8 : i32
    %10 = arith.muli %9, %c8_i32_8 : i32
    %c8_i32_9 = arith.constant 8 : i32
    %11 = arith.subi %c8_i32_9, %10 : i32
    %12 = tpu.assume_multiple %11, 8 : i32
    %13 = arith.index_cast %8 : i32 to index
    %c0_10 = arith.constant 0 : index
    %14 = vector.load %arg0[%13, %c0_10] : memref<8x128xf32, #tpu.memory_space<vmem>>, vector<8x128xf32>
    %15 = arith.index_cast %12 : i32 to index
    %c0_11 = arith.constant 0 : index
    %16 = vector.load %arg1[%15, %c0_11] : memref<8x128xf32, #tpu.memory_space<vmem>>, vector<8x128xf32>
    %17 = vector.extract_strided_slice %14 {offsets = [0, 0], sizes = [1, 128], strides = [1, 1]} : vector<8x128xf32> to vector<1x128xf32>
    %18 = vector.extract_strided_slice %16 {offsets = [7, 0], sizes = [1, 128], strides = [1, 1]} : vector<8x128xf32> to vector<1x128xf32>
    %19 = tpu.concatenate %17, %18 in 1 : vector<1x128xf32>, vector<1x128xf32> -> vector<1x256xf32>
    %20 = arith.truncf %3 : vector<1x64xf32> to vector<1x64xbf16>
    %cst = arith.constant dense<0.000000e+00> : vector<1x256xf32>
    %21 = tpu.matmul %20, %0, %cst {dimension_numbers = #tpu.dot_dimension_numbers<[1], [0], [0], [1], [0, 0, 1, 1], [], []>} : vector<1x64xbf16>, vector<64x256xbf16>, vector<1x256xf32> -> vector<1x256xf32>
    %22 = arith.addf %19, %21 : vector<1x256xf32>
    %23 = vector.extract_strided_slice %22 {offsets = [0, 0], sizes = [1, 128], strides = [1, 1]} : vector<1x256xf32> to vector<1x128xf32>
    %24 = vector.extract_strided_slice %6 {offsets = [0, 0], sizes = [1, 32], strides = [1, 1]} : vector<1x64xf32> to vector<1x32xf32>
    %25 = vector.extract_strided_slice %23 {offsets = [0, 0], sizes = [1, 32], strides = [1, 1]} : vector<1x128xf32> to vector<1x32xf32>
    %26 = arith.negf %25 : vector<1x32xf32>
    %27 = math.exp %26 : vector<1x32xf32>
    %cst_12 = arith.constant 1.000000e+00 : f32
    %28 = vector.broadcast %cst_12 : f32 to vector<1x32xf32>
    %29 = arith.addf %28, %27 : vector<1x32xf32>
    %30 = arith.divf %28, %29 : vector<1x32xf32>
    %31 = vector.extract_strided_slice %23 {offsets = [0, 32], sizes = [1, 32], strides = [1, 1]} : vector<1x128xf32> to vector<1x32xf32>
    %32 = arith.negf %31 : vector<1x32xf32>
    %33 = math.exp %32 : vector<1x32xf32>
    %cst_13 = arith.constant 1.000000e+00 : f32
    %34 = vector.broadcast %cst_13 : f32 to vector<1x32xf32>
    %35 = arith.addf %34, %33 : vector<1x32xf32>
    %36 = arith.divf %34, %35 : vector<1x32xf32>
    %37 = vector.extract_strided_slice %23 {offsets = [0, 64], sizes = [1, 32], strides = [1, 1]} : vector<1x128xf32> to vector<1x32xf32>
    %38 = math.tanh %37 : vector<1x32xf32>
    %39 = vector.extract_strided_slice %23 {offsets = [0, 96], sizes = [1, 32], strides = [1, 1]} : vector<1x128xf32> to vector<1x32xf32>
    %40 = arith.negf %39 : vector<1x32xf32>
    %41 = math.exp %40 : vector<1x32xf32>
    %cst_14 = arith.constant 1.000000e+00 : f32
    %42 = vector.broadcast %cst_14 : f32 to vector<1x32xf32>
    %43 = arith.addf %42, %41 : vector<1x32xf32>
    %44 = arith.divf %42, %43 : vector<1x32xf32>
    %45 = arith.mulf %36, %24 : vector<1x32xf32>
    %46 = arith.mulf %30, %38 : vector<1x32xf32>
    %47 = arith.addf %45, %46 : vector<1x32xf32>
    %48 = math.tanh %47 : vector<1x32xf32>
    %49 = arith.mulf %44, %48 : vector<1x32xf32>
    %50 = vector.extract_strided_slice %22 {offsets = [0, 128], sizes = [1, 128], strides = [1, 1]} : vector<1x256xf32> to vector<1x128xf32>
    %51 = vector.extract_strided_slice %6 {offsets = [0, 32], sizes = [1, 32], strides = [1, 1]} : vector<1x64xf32> to vector<1x32xf32>
    %52 = vector.extract_strided_slice %50 {offsets = [0, 0], sizes = [1, 32], strides = [1, 1]} : vector<1x128xf32> to vector<1x32xf32>
    %53 = arith.negf %52 : vector<1x32xf32>
    %54 = math.exp %53 : vector<1x32xf32>
    %cst_15 = arith.constant 1.000000e+00 : f32
    %55 = vector.broadcast %cst_15 : f32 to vector<1x32xf32>
    %56 = arith.addf %55, %54 : vector<1x32xf32>
    %57 = arith.divf %55, %56 : vector<1x32xf32>
    %58 = vector.extract_strided_slice %50 {offsets = [0, 32], sizes = [1, 32], strides = [1, 1]} : vector<1x128xf32> to vector<1x32xf32>
    %59 = arith.negf %58 : vector<1x32xf32>
    %60 = math.exp %59 : vector<1x32xf32>
    %cst_16 = arith.constant 1.000000e+00 : f32
    %61 = vector.broadcast %cst_16 : f32 to vector<1x32xf32>
    %62 = arith.addf %61, %60 : vector<1x32xf32>
    %63 = arith.divf %61, %62 : vector<1x32xf32>
    %64 = vector.extract_strided_slice %50 {offsets = [0, 64], sizes = [1, 32], strides = [1, 1]} : vector<1x128xf32> to vector<1x32xf32>
    %65 = math.tanh %64 : vector<1x32xf32>
    %66 = vector.extract_strided_slice %50 {offsets = [0, 96], sizes = [1, 32], strides = [1, 1]} : vector<1x128xf32> to vector<1x32xf32>
    %67 = arith.negf %66 : vector<1x32xf32>
    %68 = math.exp %67 : vector<1x32xf32>
    %cst_17 = arith.constant 1.000000e+00 : f32
    %69 = vector.broadcast %cst_17 : f32 to vector<1x32xf32>
    %70 = arith.addf %69, %68 : vector<1x32xf32>
    %71 = arith.divf %69, %70 : vector<1x32xf32>
    %72 = arith.mulf %63, %51 : vector<1x32xf32>
    %73 = arith.mulf %57, %65 : vector<1x32xf32>
    %74 = arith.addf %72, %73 : vector<1x32xf32>
    %75 = math.tanh %74 : vector<1x32xf32>
    %76 = arith.mulf %71, %75 : vector<1x32xf32>
    %77 = tpu.concatenate %49, %76 in 1 : vector<1x32xf32>, vector<1x32xf32> -> vector<1x64xf32>
    %78 = tpu.concatenate %47, %74 in 1 : vector<1x32xf32>, vector<1x32xf32> -> vector<1x64xf32>
    %79 = vector.extract_strided_slice %14 {offsets = [1, 0], sizes = [1, 128], strides = [1, 1]} : vector<8x128xf32> to vector<1x128xf32>
    %80 = vector.extract_strided_slice %16 {offsets = [6, 0], sizes = [1, 128], strides = [1, 1]} : vector<8x128xf32> to vector<1x128xf32>
    %81 = tpu.concatenate %79, %80 in 1 : vector<1x128xf32>, vector<1x128xf32> -> vector<1x256xf32>
    %82 = arith.truncf %77 : vector<1x64xf32> to vector<1x64xbf16>
    %cst_18 = arith.constant dense<0.000000e+00> : vector<1x256xf32>
    %83 = tpu.matmul %82, %0, %cst_18 {dimension_numbers = #tpu.dot_dimension_numbers<[1], [0], [0], [1], [0, 0, 1, 1], [], []>} : vector<1x64xbf16>, vector<64x256xbf16>, vector<1x256xf32> -> vector<1x256xf32>
    %84 = arith.addf %81, %83 : vector<1x256xf32>
    %85 = vector.extract_strided_slice %84 {offsets = [0, 0], sizes = [1, 128], strides = [1, 1]} : vector<1x256xf32> to vector<1x128xf32>
    %86 = vector.extract_strided_slice %78 {offsets = [0, 0], sizes = [1, 32], strides = [1, 1]} : vector<1x64xf32> to vector<1x32xf32>
    %87 = vector.extract_strided_slice %85 {offsets = [0, 0], sizes = [1, 32], strides = [1, 1]} : vector<1x128xf32> to vector<1x32xf32>
    %88 = arith.negf %87 : vector<1x32xf32>
    %89 = math.exp %88 : vector<1x32xf32>
    %cst_19 = arith.constant 1.000000e+00 : f32
    %90 = vector.broadcast %cst_19 : f32 to vector<1x32xf32>
    %91 = arith.addf %90, %89 : vector<1x32xf32>
    %92 = arith.divf %90, %91 : vector<1x32xf32>
    %93 = vector.extract_strided_slice %85 {offsets = [0, 32], sizes = [1, 32], strides = [1, 1]} : vector<1x128xf32> to vector<1x32xf32>
    %94 = arith.negf %93 : vector<1x32xf32>
    %95 = math.exp %94 : vector<1x32xf32>
    %cst_20 = arith.constant 1.000000e+00 : f32
    %96 = vector.broadcast %cst_20 : f32 to vector<1x32xf32>
    %97 = arith.addf %96, %95 : vector<1x32xf32>
    %98 = arith.divf %96, %97 : vector<1x32xf32>
    %99 = vector.extract_strided_slice %85 {offsets = [0, 64], sizes = [1, 32], strides = [1, 1]} : vector<1x128xf32> to vector<1x32xf32>
    %100 = math.tanh %99 : vector<1x32xf32>
    %101 = vector.extract_strided_slice %85 {offsets = [0, 96], sizes = [1, 32], strides = [1, 1]} : vector<1x128xf32> to vector<1x32xf32>
    %102 = arith.negf %101 : vector<1x32xf32>
    %103 = math.exp %102 : vector<1x32xf32>
    %cst_21 = arith.constant 1.000000e+00 : f32
    %104 = vector.broadcast %cst_21 : f32 to vector<1x32xf32>
    %105 = arith.addf %104, %103 : vector<1x32xf32>
    %106 = arith.divf %104, %105 : vector<1x32xf32>
    %107 = arith.mulf %98, %86 : vector<1x32xf32>
    %108 = arith.mulf %92, %100 : vector<1x32xf32>
    %109 = arith.addf %107, %108 : vector<1x32xf32>
    %110 = math.tanh %109 : vector<1x32xf32>
    %111 = arith.mulf %106, %110 : vector<1x32xf32>
    %112 = vector.extract_strided_slice %84 {offsets = [0, 128], sizes = [1, 128], strides = [1, 1]} : vector<1x256xf32> to vector<1x128xf32>
    %113 = vector.extract_strided_slice %78 {offsets = [0, 32], sizes = [1, 32], strides = [1, 1]} : vector<1x64xf32> to vector<1x32xf32>
    %114 = vector.extract_strided_slice %112 {offsets = [0, 0], sizes = [1, 32], strides = [1, 1]} : vector<1x128xf32> to vector<1x32xf32>
    %115 = arith.negf %114 : vector<1x32xf32>
    %116 = math.exp %115 : vector<1x32xf32>
    %cst_22 = arith.constant 1.000000e+00 : f32
    %117 = vector.broadcast %cst_22 : f32 to vector<1x32xf32>
    %118 = arith.addf %117, %116 : vector<1x32xf32>
    %119 = arith.divf %117, %118 : vector<1x32xf32>
    %120 = vector.extract_strided_slice %112 {offsets = [0, 32], sizes = [1, 32], strides = [1, 1]} : vector<1x128xf32> to vector<1x32xf32>
    %121 = arith.negf %120 : vector<1x32xf32>
    %122 = math.exp %121 : vector<1x32xf32>
    %cst_23 = arith.constant 1.000000e+00 : f32
    %123 = vector.broadcast %cst_23 : f32 to vector<1x32xf32>
    %124 = arith.addf %123, %122 : vector<1x32xf32>
    %125 = arith.divf %123, %124 : vector<1x32xf32>
    %126 = vector.extract_strided_slice %112 {offsets = [0, 64], sizes = [1, 32], strides = [1, 1]} : vector<1x128xf32> to vector<1x32xf32>
    %127 = math.tanh %126 : vector<1x32xf32>
    %128 = vector.extract_strided_slice %112 {offsets = [0, 96], sizes = [1, 32], strides = [1, 1]} : vector<1x128xf32> to vector<1x32xf32>
    %129 = arith.negf %128 : vector<1x32xf32>
    %130 = math.exp %129 : vector<1x32xf32>
    %cst_24 = arith.constant 1.000000e+00 : f32
    %131 = vector.broadcast %cst_24 : f32 to vector<1x32xf32>
    %132 = arith.addf %131, %130 : vector<1x32xf32>
    %133 = arith.divf %131, %132 : vector<1x32xf32>
    %134 = arith.mulf %125, %113 : vector<1x32xf32>
    %135 = arith.mulf %119, %127 : vector<1x32xf32>
    %136 = arith.addf %134, %135 : vector<1x32xf32>
    %137 = math.tanh %136 : vector<1x32xf32>
    %138 = arith.mulf %133, %137 : vector<1x32xf32>
    %139 = tpu.concatenate %111, %138 in 1 : vector<1x32xf32>, vector<1x32xf32> -> vector<1x64xf32>
    %140 = tpu.concatenate %109, %136 in 1 : vector<1x32xf32>, vector<1x32xf32> -> vector<1x64xf32>
    %141 = vector.extract_strided_slice %14 {offsets = [2, 0], sizes = [1, 128], strides = [1, 1]} : vector<8x128xf32> to vector<1x128xf32>
    %142 = vector.extract_strided_slice %16 {offsets = [5, 0], sizes = [1, 128], strides = [1, 1]} : vector<8x128xf32> to vector<1x128xf32>
    %143 = tpu.concatenate %141, %142 in 1 : vector<1x128xf32>, vector<1x128xf32> -> vector<1x256xf32>
    %144 = arith.truncf %139 : vector<1x64xf32> to vector<1x64xbf16>
    %cst_25 = arith.constant dense<0.000000e+00> : vector<1x256xf32>
    %145 = tpu.matmul %144, %0, %cst_25 {dimension_numbers = #tpu.dot_dimension_numbers<[1], [0], [0], [1], [0, 0, 1, 1], [], []>} : vector<1x64xbf16>, vector<64x256xbf16>, vector<1x256xf32> -> vector<1x256xf32>
    %146 = arith.addf %143, %145 : vector<1x256xf32>
    %147 = vector.extract_strided_slice %146 {offsets = [0, 0], sizes = [1, 128], strides = [1, 1]} : vector<1x256xf32> to vector<1x128xf32>
    %148 = vector.extract_strided_slice %140 {offsets = [0, 0], sizes = [1, 32], strides = [1, 1]} : vector<1x64xf32> to vector<1x32xf32>
    %149 = vector.extract_strided_slice %147 {offsets = [0, 0], sizes = [1, 32], strides = [1, 1]} : vector<1x128xf32> to vector<1x32xf32>
    %150 = arith.negf %149 : vector<1x32xf32>
    %151 = math.exp %150 : vector<1x32xf32>
    %cst_26 = arith.constant 1.000000e+00 : f32
    %152 = vector.broadcast %cst_26 : f32 to vector<1x32xf32>
    %153 = arith.addf %152, %151 : vector<1x32xf32>
    %154 = arith.divf %152, %153 : vector<1x32xf32>
    %155 = vector.extract_strided_slice %147 {offsets = [0, 32], sizes = [1, 32], strides = [1, 1]} : vector<1x128xf32> to vector<1x32xf32>
    %156 = arith.negf %155 : vector<1x32xf32>
    %157 = math.exp %156 : vector<1x32xf32>
    %cst_27 = arith.constant 1.000000e+00 : f32
    %158 = vector.broadcast %cst_27 : f32 to vector<1x32xf32>
    %159 = arith.addf %158, %157 : vector<1x32xf32>
    %160 = arith.divf %158, %159 : vector<1x32xf32>
    %161 = vector.extract_strided_slice %147 {offsets = [0, 64], sizes = [1, 32], strides = [1, 1]} : vector<1x128xf32> to vector<1x32xf32>
    %162 = math.tanh %161 : vector<1x32xf32>
    %163 = vector.extract_strided_slice %147 {offsets = [0, 96], sizes = [1, 32], strides = [1, 1]} : vector<1x128xf32> to vector<1x32xf32>
    %164 = arith.negf %163 : vector<1x32xf32>
    %165 = math.exp %164 : vector<1x32xf32>
    %cst_28 = arith.constant 1.000000e+00 : f32
    %166 = vector.broadcast %cst_28 : f32 to vector<1x32xf32>
    %167 = arith.addf %166, %165 : vector<1x32xf32>
    %168 = arith.divf %166, %167 : vector<1x32xf32>
    %169 = arith.mulf %160, %148 : vector<1x32xf32>
    %170 = arith.mulf %154, %162 : vector<1x32xf32>
    %171 = arith.addf %169, %170 : vector<1x32xf32>
    %172 = math.tanh %171 : vector<1x32xf32>
    %173 = arith.mulf %168, %172 : vector<1x32xf32>
    %174 = vector.extract_strided_slice %146 {offsets = [0, 128], sizes = [1, 128], strides = [1, 1]} : vector<1x256xf32> to vector<1x128xf32>
    %175 = vector.extract_strided_slice %140 {offsets = [0, 32], sizes = [1, 32], strides = [1, 1]} : vector<1x64xf32> to vector<1x32xf32>
    %176 = vector.extract_strided_slice %174 {offsets = [0, 0], sizes = [1, 32], strides = [1, 1]} : vector<1x128xf32> to vector<1x32xf32>
    %177 = arith.negf %176 : vector<1x32xf32>
    %178 = math.exp %177 : vector<1x32xf32>
    %cst_29 = arith.constant 1.000000e+00 : f32
    %179 = vector.broadcast %cst_29 : f32 to vector<1x32xf32>
    %180 = arith.addf %179, %178 : vector<1x32xf32>
    %181 = arith.divf %179, %180 : vector<1x32xf32>
    %182 = vector.extract_strided_slice %174 {offsets = [0, 32], sizes = [1, 32], strides = [1, 1]} : vector<1x128xf32> to vector<1x32xf32>
    %183 = arith.negf %182 : vector<1x32xf32>
    %184 = math.exp %183 : vector<1x32xf32>
    %cst_30 = arith.constant 1.000000e+00 : f32
    %185 = vector.broadcast %cst_30 : f32 to vector<1x32xf32>
    %186 = arith.addf %185, %184 : vector<1x32xf32>
    %187 = arith.divf %185, %186 : vector<1x32xf32>
    %188 = vector.extract_strided_slice %174 {offsets = [0, 64], sizes = [1, 32], strides = [1, 1]} : vector<1x128xf32> to vector<1x32xf32>
    %189 = math.tanh %188 : vector<1x32xf32>
    %190 = vector.extract_strided_slice %174 {offsets = [0, 96], sizes = [1, 32], strides = [1, 1]} : vector<1x128xf32> to vector<1x32xf32>
    %191 = arith.negf %190 : vector<1x32xf32>
    %192 = math.exp %191 : vector<1x32xf32>
    %cst_31 = arith.constant 1.000000e+00 : f32
    %193 = vector.broadcast %cst_31 : f32 to vector<1x32xf32>
    %194 = arith.addf %193, %192 : vector<1x32xf32>
    %195 = arith.divf %193, %194 : vector<1x32xf32>
    %196 = arith.mulf %187, %175 : vector<1x32xf32>
    %197 = arith.mulf %181, %189 : vector<1x32xf32>
    %198 = arith.addf %196, %197 : vector<1x32xf32>
    %199 = math.tanh %198 : vector<1x32xf32>
    %200 = arith.mulf %195, %199 : vector<1x32xf32>
    %201 = tpu.concatenate %173, %200 in 1 : vector<1x32xf32>, vector<1x32xf32> -> vector<1x64xf32>
    %202 = tpu.concatenate %171, %198 in 1 : vector<1x32xf32>, vector<1x32xf32> -> vector<1x64xf32>
    %203 = vector.extract_strided_slice %14 {offsets = [3, 0], sizes = [1, 128], strides = [1, 1]} : vector<8x128xf32> to vector<1x128xf32>
    %204 = vector.extract_strided_slice %16 {offsets = [4, 0], sizes = [1, 128], strides = [1, 1]} : vector<8x128xf32> to vector<1x128xf32>
    %205 = tpu.concatenate %203, %204 in 1 : vector<1x128xf32>, vector<1x128xf32> -> vector<1x256xf32>
    %206 = arith.truncf %201 : vector<1x64xf32> to vector<1x64xbf16>
    %cst_32 = arith.constant dense<0.000000e+00> : vector<1x256xf32>
    %207 = tpu.matmul %206, %0, %cst_32 {dimension_numbers = #tpu.dot_dimension_numbers<[1], [0], [0], [1], [0, 0, 1, 1], [], []>} : vector<1x64xbf16>, vector<64x256xbf16>, vector<1x256xf32> -> vector<1x256xf32>
    %208 = arith.addf %205, %207 : vector<1x256xf32>
    %209 = vector.extract_strided_slice %208 {offsets = [0, 0], sizes = [1, 128], strides = [1, 1]} : vector<1x256xf32> to vector<1x128xf32>
    %210 = vector.extract_strided_slice %202 {offsets = [0, 0], sizes = [1, 32], strides = [1, 1]} : vector<1x64xf32> to vector<1x32xf32>
    %211 = vector.extract_strided_slice %209 {offsets = [0, 0], sizes = [1, 32], strides = [1, 1]} : vector<1x128xf32> to vector<1x32xf32>
    %212 = arith.negf %211 : vector<1x32xf32>
    %213 = math.exp %212 : vector<1x32xf32>
    %cst_33 = arith.constant 1.000000e+00 : f32
    %214 = vector.broadcast %cst_33 : f32 to vector<1x32xf32>
    %215 = arith.addf %214, %213 : vector<1x32xf32>
    %216 = arith.divf %214, %215 : vector<1x32xf32>
    %217 = vector.extract_strided_slice %209 {offsets = [0, 32], sizes = [1, 32], strides = [1, 1]} : vector<1x128xf32> to vector<1x32xf32>
    %218 = arith.negf %217 : vector<1x32xf32>
    %219 = math.exp %218 : vector<1x32xf32>
    %cst_34 = arith.constant 1.000000e+00 : f32
    %220 = vector.broadcast %cst_34 : f32 to vector<1x32xf32>
    %221 = arith.addf %220, %219 : vector<1x32xf32>
    %222 = arith.divf %220, %221 : vector<1x32xf32>
    %223 = vector.extract_strided_slice %209 {offsets = [0, 64], sizes = [1, 32], strides = [1, 1]} : vector<1x128xf32> to vector<1x32xf32>
    %224 = math.tanh %223 : vector<1x32xf32>
    %225 = vector.extract_strided_slice %209 {offsets = [0, 96], sizes = [1, 32], strides = [1, 1]} : vector<1x128xf32> to vector<1x32xf32>
    %226 = arith.negf %225 : vector<1x32xf32>
    %227 = math.exp %226 : vector<1x32xf32>
    %cst_35 = arith.constant 1.000000e+00 : f32
    %228 = vector.broadcast %cst_35 : f32 to vector<1x32xf32>
    %229 = arith.addf %228, %227 : vector<1x32xf32>
    %230 = arith.divf %228, %229 : vector<1x32xf32>
    %231 = arith.mulf %222, %210 : vector<1x32xf32>
    %232 = arith.mulf %216, %224 : vector<1x32xf32>
    %233 = arith.addf %231, %232 : vector<1x32xf32>
    %234 = math.tanh %233 : vector<1x32xf32>
    %235 = arith.mulf %230, %234 : vector<1x32xf32>
    %236 = vector.extract_strided_slice %208 {offsets = [0, 128], sizes = [1, 128], strides = [1, 1]} : vector<1x256xf32> to vector<1x128xf32>
    %237 = vector.extract_strided_slice %202 {offsets = [0, 32], sizes = [1, 32], strides = [1, 1]} : vector<1x64xf32> to vector<1x32xf32>
    %238 = vector.extract_strided_slice %236 {offsets = [0, 0], sizes = [1, 32], strides = [1, 1]} : vector<1x128xf32> to vector<1x32xf32>
    %239 = arith.negf %238 : vector<1x32xf32>
    %240 = math.exp %239 : vector<1x32xf32>
    %cst_36 = arith.constant 1.000000e+00 : f32
    %241 = vector.broadcast %cst_36 : f32 to vector<1x32xf32>
    %242 = arith.addf %241, %240 : vector<1x32xf32>
    %243 = arith.divf %241, %242 : vector<1x32xf32>
    %244 = vector.extract_strided_slice %236 {offsets = [0, 32], sizes = [1, 32], strides = [1, 1]} : vector<1x128xf32> to vector<1x32xf32>
    %245 = arith.negf %244 : vector<1x32xf32>
    %246 = math.exp %245 : vector<1x32xf32>
    %cst_37 = arith.constant 1.000000e+00 : f32
    %247 = vector.broadcast %cst_37 : f32 to vector<1x32xf32>
    %248 = arith.addf %247, %246 : vector<1x32xf32>
    %249 = arith.divf %247, %248 : vector<1x32xf32>
    %250 = vector.extract_strided_slice %236 {offsets = [0, 64], sizes = [1, 32], strides = [1, 1]} : vector<1x128xf32> to vector<1x32xf32>
    %251 = math.tanh %250 : vector<1x32xf32>
    %252 = vector.extract_strided_slice %236 {offsets = [0, 96], sizes = [1, 32], strides = [1, 1]} : vector<1x128xf32> to vector<1x32xf32>
    %253 = arith.negf %252 : vector<1x32xf32>
    %254 = math.exp %253 : vector<1x32xf32>
    %cst_38 = arith.constant 1.000000e+00 : f32
    %255 = vector.broadcast %cst_38 : f32 to vector<1x32xf32>
    %256 = arith.addf %255, %254 : vector<1x32xf32>
    %257 = arith.divf %255, %256 : vector<1x32xf32>
    %258 = arith.mulf %249, %237 : vector<1x32xf32>
    %259 = arith.mulf %243, %251 : vector<1x32xf32>
    %260 = arith.addf %258, %259 : vector<1x32xf32>
    %261 = math.tanh %260 : vector<1x32xf32>
    %262 = arith.mulf %257, %261 : vector<1x32xf32>
    %263 = tpu.concatenate %235, %262 in 1 : vector<1x32xf32>, vector<1x32xf32> -> vector<1x64xf32>
    %264 = tpu.concatenate %233, %260 in 1 : vector<1x32xf32>, vector<1x32xf32> -> vector<1x64xf32>
    %265 = vector.extract_strided_slice %14 {offsets = [4, 0], sizes = [1, 128], strides = [1, 1]} : vector<8x128xf32> to vector<1x128xf32>
    %266 = vector.extract_strided_slice %16 {offsets = [3, 0], sizes = [1, 128], strides = [1, 1]} : vector<8x128xf32> to vector<1x128xf32>
    %267 = tpu.concatenate %265, %266 in 1 : vector<1x128xf32>, vector<1x128xf32> -> vector<1x256xf32>
    %268 = arith.truncf %263 : vector<1x64xf32> to vector<1x64xbf16>
    %cst_39 = arith.constant dense<0.000000e+00> : vector<1x256xf32>
    %269 = tpu.matmul %268, %0, %cst_39 {dimension_numbers = #tpu.dot_dimension_numbers<[1], [0], [0], [1], [0, 0, 1, 1], [], []>} : vector<1x64xbf16>, vector<64x256xbf16>, vector<1x256xf32> -> vector<1x256xf32>
    %270 = arith.addf %267, %269 : vector<1x256xf32>
    %271 = vector.extract_strided_slice %270 {offsets = [0, 0], sizes = [1, 128], strides = [1, 1]} : vector<1x256xf32> to vector<1x128xf32>
    %272 = vector.extract_strided_slice %264 {offsets = [0, 0], sizes = [1, 32], strides = [1, 1]} : vector<1x64xf32> to vector<1x32xf32>
    %273 = vector.extract_strided_slice %271 {offsets = [0, 0], sizes = [1, 32], strides = [1, 1]} : vector<1x128xf32> to vector<1x32xf32>
    %274 = arith.negf %273 : vector<1x32xf32>
    %275 = math.exp %274 : vector<1x32xf32>
    %cst_40 = arith.constant 1.000000e+00 : f32
    %276 = vector.broadcast %cst_40 : f32 to vector<1x32xf32>
    %277 = arith.addf %276, %275 : vector<1x32xf32>
    %278 = arith.divf %276, %277 : vector<1x32xf32>
    %279 = vector.extract_strided_slice %271 {offsets = [0, 32], sizes = [1, 32], strides = [1, 1]} : vector<1x128xf32> to vector<1x32xf32>
    %280 = arith.negf %279 : vector<1x32xf32>
    %281 = math.exp %280 : vector<1x32xf32>
    %cst_41 = arith.constant 1.000000e+00 : f32
    %282 = vector.broadcast %cst_41 : f32 to vector<1x32xf32>
    %283 = arith.addf %282, %281 : vector<1x32xf32>
    %284 = arith.divf %282, %283 : vector<1x32xf32>
    %285 = vector.extract_strided_slice %271 {offsets = [0, 64], sizes = [1, 32], strides = [1, 1]} : vector<1x128xf32> to vector<1x32xf32>
    %286 = math.tanh %285 : vector<1x32xf32>
    %287 = vector.extract_strided_slice %271 {offsets = [0, 96], sizes = [1, 32], strides = [1, 1]} : vector<1x128xf32> to vector<1x32xf32>
    %288 = arith.negf %287 : vector<1x32xf32>
    %289 = math.exp %288 : vector<1x32xf32>
    %cst_42 = arith.constant 1.000000e+00 : f32
    %290 = vector.broadcast %cst_42 : f32 to vector<1x32xf32>
    %291 = arith.addf %290, %289 : vector<1x32xf32>
    %292 = arith.divf %290, %291 : vector<1x32xf32>
    %293 = arith.mulf %284, %272 : vector<1x32xf32>
    %294 = arith.mulf %278, %286 : vector<1x32xf32>
    %295 = arith.addf %293, %294 : vector<1x32xf32>
    %296 = math.tanh %295 : vector<1x32xf32>
    %297 = arith.mulf %292, %296 : vector<1x32xf32>
    %298 = vector.extract_strided_slice %270 {offsets = [0, 128], sizes = [1, 128], strides = [1, 1]} : vector<1x256xf32> to vector<1x128xf32>
    %299 = vector.extract_strided_slice %264 {offsets = [0, 32], sizes = [1, 32], strides = [1, 1]} : vector<1x64xf32> to vector<1x32xf32>
    %300 = vector.extract_strided_slice %298 {offsets = [0, 0], sizes = [1, 32], strides = [1, 1]} : vector<1x128xf32> to vector<1x32xf32>
    %301 = arith.negf %300 : vector<1x32xf32>
    %302 = math.exp %301 : vector<1x32xf32>
    %cst_43 = arith.constant 1.000000e+00 : f32
    %303 = vector.broadcast %cst_43 : f32 to vector<1x32xf32>
    %304 = arith.addf %303, %302 : vector<1x32xf32>
    %305 = arith.divf %303, %304 : vector<1x32xf32>
    %306 = vector.extract_strided_slice %298 {offsets = [0, 32], sizes = [1, 32], strides = [1, 1]} : vector<1x128xf32> to vector<1x32xf32>
    %307 = arith.negf %306 : vector<1x32xf32>
    %308 = math.exp %307 : vector<1x32xf32>
    %cst_44 = arith.constant 1.000000e+00 : f32
    %309 = vector.broadcast %cst_44 : f32 to vector<1x32xf32>
    %310 = arith.addf %309, %308 : vector<1x32xf32>
    %311 = arith.divf %309, %310 : vector<1x32xf32>
    %312 = vector.extract_strided_slice %298 {offsets = [0, 64], sizes = [1, 32], strides = [1, 1]} : vector<1x128xf32> to vector<1x32xf32>
    %313 = math.tanh %312 : vector<1x32xf32>
    %314 = vector.extract_strided_slice %298 {offsets = [0, 96], sizes = [1, 32], strides = [1, 1]} : vector<1x128xf32> to vector<1x32xf32>
    %315 = arith.negf %314 : vector<1x32xf32>
    %316 = math.exp %315 : vector<1x32xf32>
    %cst_45 = arith.constant 1.000000e+00 : f32
    %317 = vector.broadcast %cst_45 : f32 to vector<1x32xf32>
    %318 = arith.addf %317, %316 : vector<1x32xf32>
    %319 = arith.divf %317, %318 : vector<1x32xf32>
    %320 = arith.mulf %311, %299 : vector<1x32xf32>
    %321 = arith.mulf %305, %313 : vector<1x32xf32>
    %322 = arith.addf %320, %321 : vector<1x32xf32>
    %323 = math.tanh %322 : vector<1x32xf32>
    %324 = arith.mulf %319, %323 : vector<1x32xf32>
    %325 = tpu.concatenate %297, %324 in 1 : vector<1x32xf32>, vector<1x32xf32> -> vector<1x64xf32>
    %326 = tpu.concatenate %295, %322 in 1 : vector<1x32xf32>, vector<1x32xf32> -> vector<1x64xf32>
    %327 = vector.extract_strided_slice %14 {offsets = [5, 0], sizes = [1, 128], strides = [1, 1]} : vector<8x128xf32> to vector<1x128xf32>
    %328 = vector.extract_strided_slice %16 {offsets = [2, 0], sizes = [1, 128], strides = [1, 1]} : vector<8x128xf32> to vector<1x128xf32>
    %329 = tpu.concatenate %327, %328 in 1 : vector<1x128xf32>, vector<1x128xf32> -> vector<1x256xf32>
    %330 = arith.truncf %325 : vector<1x64xf32> to vector<1x64xbf16>
    %cst_46 = arith.constant dense<0.000000e+00> : vector<1x256xf32>
    %331 = tpu.matmul %330, %0, %cst_46 {dimension_numbers = #tpu.dot_dimension_numbers<[1], [0], [0], [1], [0, 0, 1, 1], [], []>} : vector<1x64xbf16>, vector<64x256xbf16>, vector<1x256xf32> -> vector<1x256xf32>
    %332 = arith.addf %329, %331 : vector<1x256xf32>
    %333 = vector.extract_strided_slice %332 {offsets = [0, 0], sizes = [1, 128], strides = [1, 1]} : vector<1x256xf32> to vector<1x128xf32>
    %334 = vector.extract_strided_slice %326 {offsets = [0, 0], sizes = [1, 32], strides = [1, 1]} : vector<1x64xf32> to vector<1x32xf32>
    %335 = vector.extract_strided_slice %333 {offsets = [0, 0], sizes = [1, 32], strides = [1, 1]} : vector<1x128xf32> to vector<1x32xf32>
    %336 = arith.negf %335 : vector<1x32xf32>
    %337 = math.exp %336 : vector<1x32xf32>
    %cst_47 = arith.constant 1.000000e+00 : f32
    %338 = vector.broadcast %cst_47 : f32 to vector<1x32xf32>
    %339 = arith.addf %338, %337 : vector<1x32xf32>
    %340 = arith.divf %338, %339 : vector<1x32xf32>
    %341 = vector.extract_strided_slice %333 {offsets = [0, 32], sizes = [1, 32], strides = [1, 1]} : vector<1x128xf32> to vector<1x32xf32>
    %342 = arith.negf %341 : vector<1x32xf32>
    %343 = math.exp %342 : vector<1x32xf32>
    %cst_48 = arith.constant 1.000000e+00 : f32
    %344 = vector.broadcast %cst_48 : f32 to vector<1x32xf32>
    %345 = arith.addf %344, %343 : vector<1x32xf32>
    %346 = arith.divf %344, %345 : vector<1x32xf32>
    %347 = vector.extract_strided_slice %333 {offsets = [0, 64], sizes = [1, 32], strides = [1, 1]} : vector<1x128xf32> to vector<1x32xf32>
    %348 = math.tanh %347 : vector<1x32xf32>
    %349 = vector.extract_strided_slice %333 {offsets = [0, 96], sizes = [1, 32], strides = [1, 1]} : vector<1x128xf32> to vector<1x32xf32>
    %350 = arith.negf %349 : vector<1x32xf32>
    %351 = math.exp %350 : vector<1x32xf32>
    %cst_49 = arith.constant 1.000000e+00 : f32
    %352 = vector.broadcast %cst_49 : f32 to vector<1x32xf32>
    %353 = arith.addf %352, %351 : vector<1x32xf32>
    %354 = arith.divf %352, %353 : vector<1x32xf32>
    %355 = arith.mulf %346, %334 : vector<1x32xf32>
    %356 = arith.mulf %340, %348 : vector<1x32xf32>
    %357 = arith.addf %355, %356 : vector<1x32xf32>
    %358 = math.tanh %357 : vector<1x32xf32>
    %359 = arith.mulf %354, %358 : vector<1x32xf32>
    %360 = vector.extract_strided_slice %332 {offsets = [0, 128], sizes = [1, 128], strides = [1, 1]} : vector<1x256xf32> to vector<1x128xf32>
    %361 = vector.extract_strided_slice %326 {offsets = [0, 32], sizes = [1, 32], strides = [1, 1]} : vector<1x64xf32> to vector<1x32xf32>
    %362 = vector.extract_strided_slice %360 {offsets = [0, 0], sizes = [1, 32], strides = [1, 1]} : vector<1x128xf32> to vector<1x32xf32>
    %363 = arith.negf %362 : vector<1x32xf32>
    %364 = math.exp %363 : vector<1x32xf32>
    %cst_50 = arith.constant 1.000000e+00 : f32
    %365 = vector.broadcast %cst_50 : f32 to vector<1x32xf32>
    %366 = arith.addf %365, %364 : vector<1x32xf32>
    %367 = arith.divf %365, %366 : vector<1x32xf32>
    %368 = vector.extract_strided_slice %360 {offsets = [0, 32], sizes = [1, 32], strides = [1, 1]} : vector<1x128xf32> to vector<1x32xf32>
    %369 = arith.negf %368 : vector<1x32xf32>
    %370 = math.exp %369 : vector<1x32xf32>
    %cst_51 = arith.constant 1.000000e+00 : f32
    %371 = vector.broadcast %cst_51 : f32 to vector<1x32xf32>
    %372 = arith.addf %371, %370 : vector<1x32xf32>
    %373 = arith.divf %371, %372 : vector<1x32xf32>
    %374 = vector.extract_strided_slice %360 {offsets = [0, 64], sizes = [1, 32], strides = [1, 1]} : vector<1x128xf32> to vector<1x32xf32>
    %375 = math.tanh %374 : vector<1x32xf32>
    %376 = vector.extract_strided_slice %360 {offsets = [0, 96], sizes = [1, 32], strides = [1, 1]} : vector<1x128xf32> to vector<1x32xf32>
    %377 = arith.negf %376 : vector<1x32xf32>
    %378 = math.exp %377 : vector<1x32xf32>
    %cst_52 = arith.constant 1.000000e+00 : f32
    %379 = vector.broadcast %cst_52 : f32 to vector<1x32xf32>
    %380 = arith.addf %379, %378 : vector<1x32xf32>
    %381 = arith.divf %379, %380 : vector<1x32xf32>
    %382 = arith.mulf %373, %361 : vector<1x32xf32>
    %383 = arith.mulf %367, %375 : vector<1x32xf32>
    %384 = arith.addf %382, %383 : vector<1x32xf32>
    %385 = math.tanh %384 : vector<1x32xf32>
    %386 = arith.mulf %381, %385 : vector<1x32xf32>
    %387 = tpu.concatenate %359, %386 in 1 : vector<1x32xf32>, vector<1x32xf32> -> vector<1x64xf32>
    %388 = tpu.concatenate %357, %384 in 1 : vector<1x32xf32>, vector<1x32xf32> -> vector<1x64xf32>
    %389 = vector.extract_strided_slice %14 {offsets = [6, 0], sizes = [1, 128], strides = [1, 1]} : vector<8x128xf32> to vector<1x128xf32>
    %390 = vector.extract_strided_slice %16 {offsets = [1, 0], sizes = [1, 128], strides = [1, 1]} : vector<8x128xf32> to vector<1x128xf32>
    %391 = tpu.concatenate %389, %390 in 1 : vector<1x128xf32>, vector<1x128xf32> -> vector<1x256xf32>
    %392 = arith.truncf %387 : vector<1x64xf32> to vector<1x64xbf16>
    %cst_53 = arith.constant dense<0.000000e+00> : vector<1x256xf32>
    %393 = tpu.matmul %392, %0, %cst_53 {dimension_numbers = #tpu.dot_dimension_numbers<[1], [0], [0], [1], [0, 0, 1, 1], [], []>} : vector<1x64xbf16>, vector<64x256xbf16>, vector<1x256xf32> -> vector<1x256xf32>
    %394 = arith.addf %391, %393 : vector<1x256xf32>
    %395 = vector.extract_strided_slice %394 {offsets = [0, 0], sizes = [1, 128], strides = [1, 1]} : vector<1x256xf32> to vector<1x128xf32>
    %396 = vector.extract_strided_slice %388 {offsets = [0, 0], sizes = [1, 32], strides = [1, 1]} : vector<1x64xf32> to vector<1x32xf32>
    %397 = vector.extract_strided_slice %395 {offsets = [0, 0], sizes = [1, 32], strides = [1, 1]} : vector<1x128xf32> to vector<1x32xf32>
    %398 = arith.negf %397 : vector<1x32xf32>
    %399 = math.exp %398 : vector<1x32xf32>
    %cst_54 = arith.constant 1.000000e+00 : f32
    %400 = vector.broadcast %cst_54 : f32 to vector<1x32xf32>
    %401 = arith.addf %400, %399 : vector<1x32xf32>
    %402 = arith.divf %400, %401 : vector<1x32xf32>
    %403 = vector.extract_strided_slice %395 {offsets = [0, 32], sizes = [1, 32], strides = [1, 1]} : vector<1x128xf32> to vector<1x32xf32>
    %404 = arith.negf %403 : vector<1x32xf32>
    %405 = math.exp %404 : vector<1x32xf32>
    %cst_55 = arith.constant 1.000000e+00 : f32
    %406 = vector.broadcast %cst_55 : f32 to vector<1x32xf32>
    %407 = arith.addf %406, %405 : vector<1x32xf32>
    %408 = arith.divf %406, %407 : vector<1x32xf32>
    %409 = vector.extract_strided_slice %395 {offsets = [0, 64], sizes = [1, 32], strides = [1, 1]} : vector<1x128xf32> to vector<1x32xf32>
    %410 = math.tanh %409 : vector<1x32xf32>
    %411 = vector.extract_strided_slice %395 {offsets = [0, 96], sizes = [1, 32], strides = [1, 1]} : vector<1x128xf32> to vector<1x32xf32>
    %412 = arith.negf %411 : vector<1x32xf32>
    %413 = math.exp %412 : vector<1x32xf32>
    %cst_56 = arith.constant 1.000000e+00 : f32
    %414 = vector.broadcast %cst_56 : f32 to vector<1x32xf32>
    %415 = arith.addf %414, %413 : vector<1x32xf32>
    %416 = arith.divf %414, %415 : vector<1x32xf32>
    %417 = arith.mulf %408, %396 : vector<1x32xf32>
    %418 = arith.mulf %402, %410 : vector<1x32xf32>
    %419 = arith.addf %417, %418 : vector<1x32xf32>
    %420 = math.tanh %419 : vector<1x32xf32>
    %421 = arith.mulf %416, %420 : vector<1x32xf32>
    %422 = vector.extract_strided_slice %394 {offsets = [0, 128], sizes = [1, 128], strides = [1, 1]} : vector<1x256xf32> to vector<1x128xf32>
    %423 = vector.extract_strided_slice %388 {offsets = [0, 32], sizes = [1, 32], strides = [1, 1]} : vector<1x64xf32> to vector<1x32xf32>
    %424 = vector.extract_strided_slice %422 {offsets = [0, 0], sizes = [1, 32], strides = [1, 1]} : vector<1x128xf32> to vector<1x32xf32>
    %425 = arith.negf %424 : vector<1x32xf32>
    %426 = math.exp %425 : vector<1x32xf32>
    %cst_57 = arith.constant 1.000000e+00 : f32
    %427 = vector.broadcast %cst_57 : f32 to vector<1x32xf32>
    %428 = arith.addf %427, %426 : vector<1x32xf32>
    %429 = arith.divf %427, %428 : vector<1x32xf32>
    %430 = vector.extract_strided_slice %422 {offsets = [0, 32], sizes = [1, 32], strides = [1, 1]} : vector<1x128xf32> to vector<1x32xf32>
    %431 = arith.negf %430 : vector<1x32xf32>
    %432 = math.exp %431 : vector<1x32xf32>
    %cst_58 = arith.constant 1.000000e+00 : f32
    %433 = vector.broadcast %cst_58 : f32 to vector<1x32xf32>
    %434 = arith.addf %433, %432 : vector<1x32xf32>
    %435 = arith.divf %433, %434 : vector<1x32xf32>
    %436 = vector.extract_strided_slice %422 {offsets = [0, 64], sizes = [1, 32], strides = [1, 1]} : vector<1x128xf32> to vector<1x32xf32>
    %437 = math.tanh %436 : vector<1x32xf32>
    %438 = vector.extract_strided_slice %422 {offsets = [0, 96], sizes = [1, 32], strides = [1, 1]} : vector<1x128xf32> to vector<1x32xf32>
    %439 = arith.negf %438 : vector<1x32xf32>
    %440 = math.exp %439 : vector<1x32xf32>
    %cst_59 = arith.constant 1.000000e+00 : f32
    %441 = vector.broadcast %cst_59 : f32 to vector<1x32xf32>
    %442 = arith.addf %441, %440 : vector<1x32xf32>
    %443 = arith.divf %441, %442 : vector<1x32xf32>
    %444 = arith.mulf %435, %423 : vector<1x32xf32>
    %445 = arith.mulf %429, %437 : vector<1x32xf32>
    %446 = arith.addf %444, %445 : vector<1x32xf32>
    %447 = math.tanh %446 : vector<1x32xf32>
    %448 = arith.mulf %443, %447 : vector<1x32xf32>
    %449 = tpu.concatenate %421, %448 in 1 : vector<1x32xf32>, vector<1x32xf32> -> vector<1x64xf32>
    %450 = tpu.concatenate %419, %446 in 1 : vector<1x32xf32>, vector<1x32xf32> -> vector<1x64xf32>
    %451 = vector.extract_strided_slice %14 {offsets = [7, 0], sizes = [1, 128], strides = [1, 1]} : vector<8x128xf32> to vector<1x128xf32>
    %452 = vector.extract_strided_slice %16 {offsets = [0, 0], sizes = [1, 128], strides = [1, 1]} : vector<8x128xf32> to vector<1x128xf32>
    %453 = tpu.concatenate %451, %452 in 1 : vector<1x128xf32>, vector<1x128xf32> -> vector<1x256xf32>
    %454 = arith.truncf %449 : vector<1x64xf32> to vector<1x64xbf16>
    %cst_60 = arith.constant dense<0.000000e+00> : vector<1x256xf32>
    %455 = tpu.matmul %454, %0, %cst_60 {dimension_numbers = #tpu.dot_dimension_numbers<[1], [0], [0], [1], [0, 0, 1, 1], [], []>} : vector<1x64xbf16>, vector<64x256xbf16>, vector<1x256xf32> -> vector<1x256xf32>
    %456 = arith.addf %453, %455 : vector<1x256xf32>
    %457 = vector.extract_strided_slice %456 {offsets = [0, 0], sizes = [1, 128], strides = [1, 1]} : vector<1x256xf32> to vector<1x128xf32>
    %458 = vector.extract_strided_slice %450 {offsets = [0, 0], sizes = [1, 32], strides = [1, 1]} : vector<1x64xf32> to vector<1x32xf32>
    %459 = vector.extract_strided_slice %457 {offsets = [0, 0], sizes = [1, 32], strides = [1, 1]} : vector<1x128xf32> to vector<1x32xf32>
    %460 = arith.negf %459 : vector<1x32xf32>
    %461 = math.exp %460 : vector<1x32xf32>
    %cst_61 = arith.constant 1.000000e+00 : f32
    %462 = vector.broadcast %cst_61 : f32 to vector<1x32xf32>
    %463 = arith.addf %462, %461 : vector<1x32xf32>
    %464 = arith.divf %462, %463 : vector<1x32xf32>
    %465 = vector.extract_strided_slice %457 {offsets = [0, 32], sizes = [1, 32], strides = [1, 1]} : vector<1x128xf32> to vector<1x32xf32>
    %466 = arith.negf %465 : vector<1x32xf32>
    %467 = math.exp %466 : vector<1x32xf32>
    %cst_62 = arith.constant 1.000000e+00 : f32
    %468 = vector.broadcast %cst_62 : f32 to vector<1x32xf32>
    %469 = arith.addf %468, %467 : vector<1x32xf32>
    %470 = arith.divf %468, %469 : vector<1x32xf32>
    %471 = vector.extract_strided_slice %457 {offsets = [0, 64], sizes = [1, 32], strides = [1, 1]} : vector<1x128xf32> to vector<1x32xf32>
    %472 = math.tanh %471 : vector<1x32xf32>
    %473 = vector.extract_strided_slice %457 {offsets = [0, 96], sizes = [1, 32], strides = [1, 1]} : vector<1x128xf32> to vector<1x32xf32>
    %474 = arith.negf %473 : vector<1x32xf32>
    %475 = math.exp %474 : vector<1x32xf32>
    %cst_63 = arith.constant 1.000000e+00 : f32
    %476 = vector.broadcast %cst_63 : f32 to vector<1x32xf32>
    %477 = arith.addf %476, %475 : vector<1x32xf32>
    %478 = arith.divf %476, %477 : vector<1x32xf32>
    %479 = arith.mulf %470, %458 : vector<1x32xf32>
    %480 = arith.mulf %464, %472 : vector<1x32xf32>
    %481 = arith.addf %479, %480 : vector<1x32xf32>
    %482 = math.tanh %481 : vector<1x32xf32>
    %483 = arith.mulf %478, %482 : vector<1x32xf32>
    %484 = vector.extract_strided_slice %456 {offsets = [0, 128], sizes = [1, 128], strides = [1, 1]} : vector<1x256xf32> to vector<1x128xf32>
    %485 = vector.extract_strided_slice %450 {offsets = [0, 32], sizes = [1, 32], strides = [1, 1]} : vector<1x64xf32> to vector<1x32xf32>
    %486 = vector.extract_strided_slice %484 {offsets = [0, 0], sizes = [1, 32], strides = [1, 1]} : vector<1x128xf32> to vector<1x32xf32>
    %487 = arith.negf %486 : vector<1x32xf32>
    %488 = math.exp %487 : vector<1x32xf32>
    %cst_64 = arith.constant 1.000000e+00 : f32
    %489 = vector.broadcast %cst_64 : f32 to vector<1x32xf32>
    %490 = arith.addf %489, %488 : vector<1x32xf32>
    %491 = arith.divf %489, %490 : vector<1x32xf32>
    %492 = vector.extract_strided_slice %484 {offsets = [0, 32], sizes = [1, 32], strides = [1, 1]} : vector<1x128xf32> to vector<1x32xf32>
    %493 = arith.negf %492 : vector<1x32xf32>
    %494 = math.exp %493 : vector<1x32xf32>
    %cst_65 = arith.constant 1.000000e+00 : f32
    %495 = vector.broadcast %cst_65 : f32 to vector<1x32xf32>
    %496 = arith.addf %495, %494 : vector<1x32xf32>
    %497 = arith.divf %495, %496 : vector<1x32xf32>
    %498 = vector.extract_strided_slice %484 {offsets = [0, 64], sizes = [1, 32], strides = [1, 1]} : vector<1x128xf32> to vector<1x32xf32>
    %499 = math.tanh %498 : vector<1x32xf32>
    %500 = vector.extract_strided_slice %484 {offsets = [0, 96], sizes = [1, 32], strides = [1, 1]} : vector<1x128xf32> to vector<1x32xf32>
    %501 = arith.negf %500 : vector<1x32xf32>
    %502 = math.exp %501 : vector<1x32xf32>
    %cst_66 = arith.constant 1.000000e+00 : f32
    %503 = vector.broadcast %cst_66 : f32 to vector<1x32xf32>
    %504 = arith.addf %503, %502 : vector<1x32xf32>
    %505 = arith.divf %503, %504 : vector<1x32xf32>
    %506 = arith.mulf %497, %485 : vector<1x32xf32>
    %507 = arith.mulf %491, %499 : vector<1x32xf32>
    %508 = arith.addf %506, %507 : vector<1x32xf32>
    %509 = math.tanh %508 : vector<1x32xf32>
    %510 = arith.mulf %505, %509 : vector<1x32xf32>
    %511 = tpu.concatenate %483, %510 in 1 : vector<1x32xf32>, vector<1x32xf32> -> vector<1x64xf32>
    %512 = tpu.concatenate %481, %508 in 1 : vector<1x32xf32>, vector<1x32xf32> -> vector<1x64xf32>
    %513 = tpu.concatenate %49, %111, %173, %235, %297, %359, %421, %483 in 0 : vector<1x32xf32>, vector<1x32xf32>, vector<1x32xf32>, vector<1x32xf32>, vector<1x32xf32>, vector<1x32xf32>, vector<1x32xf32>, vector<1x32xf32> -> vector<8x32xf32>
    %514 = arith.index_cast %8 : i32 to index
    %c0_67 = arith.constant 0 : index
    %515 = vector.load %arg5[%514, %c0_67] : memref<8x64xf32, #tpu.memory_space<vmem>>, vector<8x32xf32>
    tpu.vector_store %arg5[%514, %c0_67], %513 {strides = array<i32>} : memref<8x64xf32, #tpu.memory_space<vmem>>, vector<8x32xf32>,
    %516 = tpu.concatenate %510, %448, %386, %324, %262, %200, %138, %76 in 0 : vector<1x32xf32>, vector<1x32xf32>, vector<1x32xf32>, vector<1x32xf32>, vector<1x32xf32>, vector<1x32xf32>, vector<1x32xf32>, vector<1x32xf32> -> vector<8x32xf32>
    %517 = arith.index_cast %12 : i32 to index
    %c32 = arith.constant 32 : index
    %518 = vector.load %arg5[%517, %c32] : memref<8x64xf32, #tpu.memory_space<vmem>>, vector<8x32xf32>
    tpu.vector_store %arg5[%517, %c32], %516 {strides = array<i32>} : memref<8x64xf32, #tpu.memory_space<vmem>>, vector<8x32xf32>,
    %c1_i32_68 = arith.constant 1 : i32
    %519 = vector.extract_strided_slice %511 {offsets = [0, 0], sizes = [1, 32], strides = [1, 1]} : vector<1x64xf32> to vector<1x32xf32>
    %c0_69 = arith.constant 0 : index
    %c0_70 = arith.constant 0 : index
    %520 = vector.load %arg6[%c0_69, %c0_70] : memref<2x32xf32, #tpu.memory_space<vmem>>, vector<1x32xf32>
    tpu.vector_store %arg6[%c0_69, %c0_70], %519 {strides = array<i32>} : memref<2x32xf32, #tpu.memory_space<vmem>>, vector<1x32xf32>,
    %521 = vector.extract_strided_slice %511 {offsets = [0, 32], sizes = [1, 32], strides = [1, 1]} : vector<1x64xf32> to vector<1x32xf32>
    %c1_71 = arith.constant 1 : index
    %c0_72 = arith.constant 0 : index
    %522 = vector.load %arg6[%c1_71, %c0_72] : memref<2x32xf32, #tpu.memory_space<vmem>>, vector<1x32xf32>
    tpu.vector_store %arg6[%c1_71, %c0_72], %521 {strides = array<i32>} : memref<2x32xf32, #tpu.memory_space<vmem>>, vector<1x32xf32>,
    %523 = vector.extract_strided_slice %512 {offsets = [0, 0], sizes = [1, 32], strides = [1, 1]} : vector<1x64xf32> to vector<1x32xf32>
    %c0_73 = arith.constant 0 : index
    %c0_74 = arith.constant 0 : index
    %524 = vector.load %arg7[%c0_73, %c0_74] : memref<2x32xf32, #tpu.memory_space<vmem>>, vector<1x32xf32>
    tpu.vector_store %arg7[%c0_73, %c0_74], %523 {strides = array<i32>} : memref<2x32xf32, #tpu.memory_space<vmem>>, vector<1x32xf32>,
    %525 = vector.extract_strided_slice %512 {offsets = [0, 32], sizes = [1, 32], strides = [1, 1]} : vector<1x64xf32> to vector<1x32xf32>
    %c1_75 = arith.constant 1 : index
    %c0_76 = arith.constant 0 : index
    %526 = vector.load %arg7[%c1_75, %c0_76] : memref<2x32xf32, #tpu.memory_space<vmem>>, vector<1x32xf32>
    tpu.vector_store %arg7[%c1_75, %c0_76], %525 {strides = array<i32>} : memref<2x32xf32, #tpu.memory_space<vmem>>, vector<1x32xf32>,
    return
  }
}

</mosaic_0001>

<llo_original>
// kernel: encoder_cbhl_forward.3
$region0: #{encoder_cbhl_forward.3}
  #allocation0 [shape = 'u32[]', space=smem, size = 0x4, offset = 0x4, fixed_abs, tag = 'smem constant byte address 0x4 - core index']
  #allocation1 [shape = 'u32[144,128]{1,0:T(1,128)}', space=vmem, size = 0x12000, scoped, tag = 'internal scratch']
  %s0 = inlined_call_operand.vmem [shape: f32[8,128], index: 0, kind: input, shape index: {}]
  %s1 = inlined_call_operand.vmem [shape: f32[8,128], index: 1, kind: input, shape index: {}]
  %s2 = inlined_call_operand.vmem [shape: f32[2,32], index: 2, kind: input, shape index: {}]
  %s3 = inlined_call_operand.vmem [shape: f32[2,32], index: 3, kind: input, shape index: {}]
  %s4 = inlined_call_operand.vmem [shape: bf16[64,256], index: 4, kind: input, shape index: {}]
  %s5 = inlined_call_operand.hbm [shape: f32[8,64], index: 5, kind: output, shape index: {0}]
  %s6 = inlined_call_operand.hbm [shape: f32[2,32], index: 6, kind: output, shape index: {1}]
  %s7 = inlined_call_operand.hbm [shape: f32[2,32], index: 7, kind: output, shape index: {2}]
  %8 = xla_tuple %s5, %s6, %s7
  %s9 = sld [smem:[#allocation0]]
  $region46: #{encoder_cbhl_forward.3} parent=0
    _
  %s11 = ssub.s32 1, %s9
  %s12 = scalar_select 0, %s11, %s9
  $region1: #{encoder_cbhl_forward.3} parent=0
    #allocation2 [shape = 'u8[4096]{0}', space=vmem, size = 0x1000, scoped, tag = 'output window, operand 0, single buffered']
    #allocation3 [shape = 's32[1]{0}', space=sflag, size = 0x4, scoped, tag = 'scoped memory for encoder_cbhl_forward.3']
    #allocation4 [shape = 'u8[1024]{0}', space=vmem, size = 0x400, scoped, tag = 'output window, operand 1, single buffered']
    #allocation5 [shape = 's32[1]{0}', space=sflag, size = 0x4, scoped, tag = 'scoped memory for encoder_cbhl_forward.3']
    #allocation6 [shape = 'u8[1024]{0}', space=vmem, size = 0x400, scoped, tag = 'output window, operand 2, single buffered']
    %13 = vsyncpa [#allocation3], 0
    %14 = vsyncpa [#allocation5], 0
    // Predicated region
    $region2: #{encoder_cbhl_forward.3} parent=1 // pred_check
      _
    $region3: #{encoder_cbhl_forward.3} parent=1 // pred_check_branch
      %16 = sbr.rel (0) target = $region5
    $region4: #{encoder_cbhl_forward.3} parent=1 // pred_region
      _
    $region5: #{encoder_cbhl_forward.3} parent=1 // pred_fallthru
      _
    // Predicated region
    $region6: #{encoder_cbhl_forward.3} parent=1 // pred_check
      _
    $region7: #{encoder_cbhl_forward.3} parent=1 // pred_check_branch
      %18 = sbr.rel (0) target = $region9
    $region8: #{encoder_cbhl_forward.3} parent=1 // pred_region
      _
    $region9: #{encoder_cbhl_forward.3} parent=1 // pred_fallthru
      _
    // Predicated region
    $region10: #{encoder_cbhl_forward.3} parent=1 // pred_check
      _
    $region11: #{encoder_cbhl_forward.3} parent=1 // pred_check_branch
      %20 = sbr.rel (0) target = $region13
    $region12: #{encoder_cbhl_forward.3} parent=1 // pred_region
      _
    $region13: #{encoder_cbhl_forward.3} parent=1 // pred_fallthru
      _
    // Predicated region
    $region14: #{encoder_cbhl_forward.3} parent=1 // pred_check
      _
    $region15: #{encoder_cbhl_forward.3} parent=1 // pred_check_branch
      %22 = sbr.rel (0) target = $region17
    $region16: #{encoder_cbhl_forward.3} parent=1 // pred_region
      _
    $region17: #{encoder_cbhl_forward.3} parent=1 // pred_fallthru
      _
    // Predicated region
    $region18: #{encoder_cbhl_forward.3} parent=1 // pred_check
      _
    $region19: #{encoder_cbhl_forward.3} parent=1 // pred_check_branch
      %24 = sbr.rel (0) target = $region21
    $region20: #{encoder_cbhl_forward.3} parent=1 // pred_region
      _
    $region21: #{encoder_cbhl_forward.3} parent=1 // pred_fallthru
      _
    %v26 = vld [vmem:[%s4] sm:$0xff]
    %v27 = vld [vmem:[%s4 + $0x8] sm:$0xff]
    %v28 = vld [vmem:[%s4 + $0x10] sm:$0xff]
    %v29 = vld [vmem:[%s4 + $0x18] sm:$0xff]
    %v30 = vld [vmem:[%s4 + $0x20] sm:$0xff]
    %v31 = vld [vmem:[%s4 + $0x28] sm:$0xff]
    %v32 = vld [vmem:[%s4 + $0x30] sm:$0xff]
    %v33 = vld [vmem:[%s4 + $0x38] sm:$0xff]
    %v34 = vld [vmem:[%s2] sm:$0x1]
    %v35 = vld [vmem:[%s2 + $0x1] sm:$0x1]
    %37 = vrot.lane.b32.xlu0 %v35, 32
    %v38 = vpop.permute.xlu0 %37
    %vm40 = vcmask 261120
    %v41 = vsel %vm40, %v34, %v38
    %v42 = vld [vmem:[%s3] sm:$0x1]
    %v43 = vld [vmem:[%s3 + $0x1] sm:$0x1]
    %45 = vrot.lane.b32.xlu0 %v43, 32
    %v46 = vpop.permute.xlu0 %45
    %v48 = vsel %vm40, %v42, %v46
    %v49 = vld [vmem:[%s0] sm:$0xff]
    %v50 = vld [vmem:[%s1] sm:$0xff]
    %v52 = vrot.slane %v50, 7
    %v54 = vpack.c.bf16 %v41, %v41
    %v63 = vunpack.c.l.b16 %v26
    %v64 = vunpack.c.h.b16 %v26
    %v65 = vunpack.c.l.b16 %v27
    %v66 = vunpack.c.h.b16 %v27
    %v67 = vunpack.c.l.b16 %v28
    %v68 = vunpack.c.h.b16 %v28
    %v69 = vunpack.c.l.b16 %v29
    %v70 = vunpack.c.h.b16 %v29
    %v71 = vunpack.c.l.b16 %v30
    %v72 = vunpack.c.h.b16 %v30
    %v73 = vunpack.c.l.b16 %v31
    %v74 = vunpack.c.h.b16 %v31
    %v75 = vunpack.c.l.b16 %v32
    %v76 = vunpack.c.h.b16 %v32
    %v77 = vunpack.c.l.b16 %v33
    %v78 = vunpack.c.h.b16 %v33
    %v79 = vpack.c.b16 %v65, %v63
    %v80 = vpack.c.b16 %v66, %v64
    %v81 = vpack.c.b16 %v69, %v67
    %v82 = vpack.c.b16 %v70, %v68
    %v83 = vpack.c.b16 %v73, %v71
    %v84 = vpack.c.b16 %v74, %v72
    %v85 = vpack.c.b16 %v77, %v75
    %v86 = vpack.c.b16 %v78, %v76
    %vm95 = vcmask 523264
    %v97 = vsel %vm95, %v54, 0
    %99 = vmatprep.subr.bf16.mxu0 %v80
    %100 = vmatpush1.bf16.msra.mxu0 %v79
    %101 = vmatprep.subr.bf16.mxu0 %v82
    %102 = vmatpush1.bf16.msra.mxu0 %v81
    %103 = vmatprep.subr.bf16.mxu0 %v84
    %104 = vmatpush1.bf16.msra.mxu0 %v83
    %105 = vmatprep.subr.bf16.mxu0 %v86
    %106 = vmatpush1.bf16.msra.mxu0 %v85
    %107 = vmatprep.subr.bf16.mxu0 0
    %108 = vmatpush1.bf16.msra.mxu0 0
    %109 = vmatprep.subr.bf16.mxu0 0
    %110 = vmatpush1.bf16.msra.mxu0 0
    %111 = vmatprep.subr.bf16.mxu0 0
    %112 = vmatpush1.bf16.msra.mxu0 0
    %113 = vmatprep.subr.bf16.mxu0 0
    %114 = vmatpush1.bf16.msra.mxu0 0
    %115 = vmatprep.subr.bf16.mxu0 0
    %116 = vmatpush1.bf16.msra.mxu0 0
    %117 = vmatprep.subr.bf16.mxu0 0
    %118 = vmatpush1.bf16.msra.mxu0 0
    %119 = vmatprep.subr.bf16.mxu0 0
    %120 = vmatpush1.bf16.msra.mxu0 0
    %121 = vmatprep.subr.bf16.mxu0 0
    %122 = vmatpush1.bf16.msra.mxu0 0
    %123 = vmatprep.subr.bf16.mxu0 0
    %124 = vmatpush1.bf16.msra.mxu0 0
    %125 = vmatprep.subr.bf16.mxu0 0
    %126 = vmatpush1.bf16.msra.mxu0 0
    %127 = vmatprep.subr.bf16.mxu0 0
    %128 = vmatpush1.bf16.msra.mxu0 0
    %129 = vmatprep.subr.bf16.mxu0 0
    %130 = vmatpush1.bf16.msra.mxu0 0
    %131 = vmatprep.mubr.bf16.mxu0 0
    %132 = vmatmul.mubr.bf16.gmra.mrb[0].mxu0 %v97
    %v133 = vpop.f32.mrb[0].mxu0
    %v134 = vadd.f32 0.0, %v133
    %v135 = vpop.f32.mrb[0].mxu0
    %v136 = vadd.f32 0.0, %v135
    %v137 = vpop.f32.mrb[0].mxu0
    %v138 = vpop.f32.mrb[0].mxu0
    %139 = vdwg.mxu0
    %v140 = vadd.f32 %v49, %v134
    %v141 = vadd.f32 %v52, %v136
    %v142 = vxor.u32 %v140, 2147483648
    %v143 = vmul.f32 %v142, 1.442695
    %v144 = vpow.pop %v143
    %v145 = vadd.f32 %v144, 1.0
    %v146 = vrcp.pop %v145
    %v147 = vmul.f32 1.0, %v146
    %v148 = vtanh.pop %v140
    %150 = vrot.lane.b32.xlu0 %v48, 32
    %v151 = vpop.permute.xlu0 %150
    %v153 = vmul.f32 %v147, %v151
    %155 = vrot.lane.b32.xlu0 %v148, 64
    %v156 = vpop.permute.xlu0 %155
    %v158 = vmul.f32 %v147, %v156
    %160 = vrot.lane.b32.xlu0 %v158, 32
    %v161 = vpop.permute.xlu0 %160
    %v163 = vadd.f32 %v153, %v161
    %v164 = vtanh.pop %v163
    %166 = vrot.lane.b32.xlu0 %v164, 64
    %v167 = vpop.permute.xlu0 %166
    %v169 = vmul.f32 %v147, %v167
    %v170 = vxor.u32 %v141, 2147483648
    %v171 = vmul.f32 %v170, 1.442695
    %v172 = vpow.pop %v171
    %v173 = vadd.f32 %v172, 1.0
    %v174 = vrcp.pop %v173
    %v175 = vmul.f32 1.0, %v174
    %v176 = vtanh.pop %v141
    %v177 = vmul.f32 %v175, %v48
    %179 = vrot.lane.b32.xlu0 %v176, 64
    %v180 = vpop.permute.xlu0 %179
    %v182 = vmul.f32 %v175, %v180
    %184 = vrot.lane.b32.xlu0 %v182, 32
    %v185 = vpop.permute.xlu0 %184
    %v187 = vadd.f32 %v177, %v185
    %v188 = vtanh.pop %v187
    %190 = vrot.lane.b32.xlu0 %v188, 64
    %v191 = vpop.permute.xlu0 %190
    %v193 = vmul.f32 %v175, %v191
    %195 = vrot.lane.b32.xlu0 %v169, 32
    %v196 = vpop.permute.xlu0 %195
    %199 = vrot.lane.b32.xlu0 %v193, 64
    %v200 = vpop.permute.xlu0 %199
    %v202 = vsel %vm40, %v196, %v200
    %204 = vrot.lane.b32.xlu0 %v163, 96
    %v205 = vpop.permute.xlu0 %204
    %v207 = vsel %vm40, %v205, %v187
    %v208 = vrot.slane %v50, 5
    %v210 = vpack.c.bf16 %v202, %v202
    %v212 = vsel %vm95, %v210, 0
    %214 = vmatprep.subr.bf16.mxu0 %v80
    %215 = vmatpush1.bf16.msra.mxu0 %v79
    %216 = vmatprep.subr.bf16.mxu0 %v82
    %217 = vmatpush1.bf16.msra.mxu0 %v81
    %218 = vmatprep.subr.bf16.mxu0 %v84
    %219 = vmatpush1.bf16.msra.mxu0 %v83
    %220 = vmatprep.subr.bf16.mxu0 %v86
    %221 = vmatpush1.bf16.msra.mxu0 %v85
    %222 = vmatprep.subr.bf16.mxu0 0
    %223 = vmatpush1.bf16.msra.mxu0 0
    %224 = vmatprep.subr.bf16.mxu0 0
    %225 = vmatpush1.bf16.msra.mxu0 0
    %226 = vmatprep.subr.bf16.mxu0 0
    %227 = vmatpush1.bf16.msra.mxu0 0
    %228 = vmatprep.subr.bf16.mxu0 0
    %229 = vmatpush1.bf16.msra.mxu0 0
    %230 = vmatprep.subr.bf16.mxu0 0
    %231 = vmatpush1.bf16.msra.mxu0 0
    %232 = vmatprep.subr.bf16.mxu0 0
    %233 = vmatpush1.bf16.msra.mxu0 0
    %234 = vmatprep.subr.bf16.mxu0 0
    %235 = vmatpush1.bf16.msra.mxu0 0
    %236 = vmatprep.subr.bf16.mxu0 0
    %237 = vmatpush1.bf16.msra.mxu0 0
    %238 = vmatprep.subr.bf16.mxu0 0
    %239 = vmatpush1.bf16.msra.mxu0 0
    %240 = vmatprep.subr.bf16.mxu0 0
    %241 = vmatpush1.bf16.msra.mxu0 0
    %242 = vmatprep.subr.bf16.mxu0 0
    %243 = vmatpush1.bf16.msra.mxu0 0
    %244 = vmatprep.subr.bf16.mxu0 0
    %245 = vmatpush1.bf16.msra.mxu0 0
    %246 = vmatprep.mubr.bf16.mxu0 0
    %247 = vmatmul.mubr.bf16.gmra.mrb[0].mxu0 %v212
    %v248 = vpop.f32.mrb[0].mxu0
    %v249 = vadd.f32 0.0, %v248
    %v250 = vpop.f32.mrb[0].mxu0
    %v251 = vadd.f32 0.0, %v250
    %v252 = vpop.f32.mrb[0].mxu0
    %v253 = vpop.f32.mrb[0].mxu0
    %254 = vdwg.mxu0
    %v257 = vrot.slane %v249, 7
    %v258 = vrot.slane %v251, 7
    %v261 = vadd.f32 %v49, %v257
    %v262 = vadd.f32 %v208, %v258
    %v263 = vxor.u32 %v261, 2147483648
    %v264 = vmul.f32 %v263, 1.442695
    %v265 = vpow.pop %v264
    %v266 = vadd.f32 %v265, 1.0
    %v267 = vrcp.pop %v266
    %v268 = vmul.f32 1.0, %v267
    %v269 = vtanh.pop %v261
    %v271 = vrot.slane %v207, 7
    %272 = vrot.lane.b32.xlu0 %v271, 32
    %v273 = vpop.permute.xlu0 %272
    %v275 = vmul.f32 %v268, %v273
    %277 = vrot.lane.b32.xlu0 %v269, 64
    %v278 = vpop.permute.xlu0 %277
    %v280 = vmul.f32 %v268, %v278
    %282 = vrot.lane.b32.xlu0 %v280, 32
    %v283 = vpop.permute.xlu0 %282
    %v285 = vadd.f32 %v275, %v283
    %v286 = vtanh.pop %v285
    %288 = vrot.lane.b32.xlu0 %v286, 64
    %v289 = vpop.permute.xlu0 %288
    %v291 = vmul.f32 %v268, %v289
    %v292 = vxor.u32 %v262, 2147483648
    %v293 = vmul.f32 %v292, 1.442695
    %v294 = vpow.pop %v293
    %v295 = vadd.f32 %v294, 1.0
    %v296 = vrcp.pop %v295
    %v297 = vmul.f32 1.0, %v296
    %v298 = vtanh.pop %v262
    %v300 = vmul.f32 %v297, %v271
    %302 = vrot.lane.b32.xlu0 %v298, 64
    %v303 = vpop.permute.xlu0 %302
    %v305 = vmul.f32 %v297, %v303
    %307 = vrot.lane.b32.xlu0 %v305, 32
    %v308 = vpop.permute.xlu0 %307
    %v310 = vadd.f32 %v300, %v308
    %v311 = vtanh.pop %v310
    %313 = vrot.lane.b32.xlu0 %v311, 64
    %v314 = vpop.permute.xlu0 %313
    %v316 = vmul.f32 %v297, %v314
    %318 = vrot.lane.b32.xlu0 %v291, 32
    %v319 = vpop.permute.xlu0 %318
    %322 = vrot.lane.b32.xlu0 %v316, 64
    %v323 = vpop.permute.xlu0 %322
    %v325 = vsel %vm40, %v319, %v323
    %327 = vrot.lane.b32.xlu0 %v285, 96
    %v328 = vpop.permute.xlu0 %327
    %v330 = vsel %vm40, %v328, %v310
    %v331 = vrot.slane %v50, 3
    %v333 = vpack.c.bf16 %v325, %v325
    %v335 = vshrl.u32 %v333, 16
    %v338 = vsel %vm95, %v335, 0
    %340 = vmatprep.subr.bf16.mxu0 %v80
    %341 = vmatpush1.bf16.msra.mxu0 %v79
    %342 = vmatprep.subr.bf16.mxu0 %v82
    %343 = vmatpush1.bf16.msra.mxu0 %v81
    %344 = vmatprep.subr.bf16.mxu0 %v84
    %345 = vmatpush1.bf16.msra.mxu0 %v83
    %346 = vmatprep.subr.bf16.mxu0 %v86
    %347 = vmatpush1.bf16.msra.mxu0 %v85
    %348 = vmatprep.subr.bf16.mxu0 0
    %349 = vmatpush1.bf16.msra.mxu0 0
    %350 = vmatprep.subr.bf16.mxu0 0
    %351 = vmatpush1.bf16.msra.mxu0 0
    %352 = vmatprep.subr.bf16.mxu0 0
    %353 = vmatpush1.bf16.msra.mxu0 0
    %354 = vmatprep.subr.bf16.mxu0 0
    %355 = vmatpush1.bf16.msra.mxu0 0
    %356 = vmatprep.subr.bf16.mxu0 0
    %357 = vmatpush1.bf16.msra.mxu0 0
    %358 = vmatprep.subr.bf16.mxu0 0
    %359 = vmatpush1.bf16.msra.mxu0 0
    %360 = vmatprep.subr.bf16.mxu0 0
    %361 = vmatpush1.bf16.msra.mxu0 0
    %362 = vmatprep.subr.bf16.mxu0 0
    %363 = vmatpush1.bf16.msra.mxu0 0
    %364 = vmatprep.subr.bf16.mxu0 0
    %365 = vmatpush1.bf16.msra.mxu0 0
    %366 = vmatprep.subr.bf16.mxu0 0
    %367 = vmatpush1.bf16.msra.mxu0 0
    %368 = vmatprep.subr.bf16.mxu0 0
    %369 = vmatpush1.bf16.msra.mxu0 0
    %370 = vmatprep.subr.bf16.mxu0 0
    %371 = vmatpush1.bf16.msra.mxu0 0
    %372 = vmatprep.mubr.bf16.mxu0 0
    %373 = vmatmul.mubr.bf16.gmra.mrb[0].mxu0 %v338
    %v374 = vpop.f32.mrb[0].mxu0
    %v375 = vadd.f32 0.0, %v374
    %v376 = vpop.f32.mrb[0].mxu0
    %v377 = vadd.f32 0.0, %v376
    %v378 = vpop.f32.mrb[0].mxu0
    %v379 = vpop.f32.mrb[0].mxu0
    %380 = vdwg.mxu0
    %v383 = vrot.slane %v375, 6
    %v384 = vrot.slane %v377, 6
    %v387 = vadd.f32 %v49, %v383
    %v388 = vadd.f32 %v331, %v384
    %v389 = vxor.u32 %v387, 2147483648
    %v390 = vmul.f32 %v389, 1.442695
    %v391 = vpow.pop %v390
    %v392 = vadd.f32 %v391, 1.0
    %v393 = vrcp.pop %v392
    %v394 = vmul.f32 1.0, %v393
    %v395 = vtanh.pop %v387
    %v397 = vrot.slane %v330, 7
    %398 = vrot.lane.b32.xlu0 %v397, 32
    %v399 = vpop.permute.xlu0 %398
    %v401 = vmul.f32 %v394, %v399
    %403 = vrot.lane.b32.xlu0 %v395, 64
    %v404 = vpop.permute.xlu0 %403
    %v406 = vmul.f32 %v394, %v404
    %408 = vrot.lane.b32.xlu0 %v406, 32
    %v409 = vpop.permute.xlu0 %408
    %v411 = vadd.f32 %v401, %v409
    %v412 = vtanh.pop %v411
    %414 = vrot.lane.b32.xlu0 %v412, 64
    %v415 = vpop.permute.xlu0 %414
    %v417 = vmul.f32 %v394, %v415
    %v418 = vxor.u32 %v388, 2147483648
    %v419 = vmul.f32 %v418, 1.442695
    %v420 = vpow.pop %v419
    %v421 = vadd.f32 %v420, 1.0
    %v422 = vrcp.pop %v421
    %v423 = vmul.f32 1.0, %v422
    %v424 = vtanh.pop %v388
    %v426 = vmul.f32 %v423, %v397
    %428 = vrot.lane.b32.xlu0 %v424, 64
    %v429 = vpop.permute.xlu0 %428
    %v431 = vmul.f32 %v423, %v429
    %433 = vrot.lane.b32.xlu0 %v431, 32
    %v434 = vpop.permute.xlu0 %433
    %v436 = vadd.f32 %v426, %v434
    %v437 = vtanh.pop %v436
    %439 = vrot.lane.b32.xlu0 %v437, 64
    %v440 = vpop.permute.xlu0 %439
    %v442 = vmul.f32 %v423, %v440
    %444 = vrot.lane.b32.xlu0 %v417, 32
    %v445 = vpop.permute.xlu0 %444
    %448 = vrot.lane.b32.xlu0 %v442, 64
    %v449 = vpop.permute.xlu0 %448
    %v451 = vsel %vm40, %v445, %v449
    %453 = vrot.lane.b32.xlu0 %v411, 96
    %v454 = vpop.permute.xlu0 %453
    %v456 = vsel %vm40, %v454, %v436
    %v457 = vrot.slane %v50, 1
    %v459 = vpack.c.bf16 %v451, %v451
    %v461 = vrot.slane %v459, 1
    %v463 = vsel %vm95, %v461, 0
    %465 = vmatprep.subr.bf16.mxu0 %v80
    %466 = vmatpush1.bf16.msra.mxu0 %v79
    %467 = vmatprep.subr.bf16.mxu0 %v82
    %468 = vmatpush1.bf16.msra.mxu0 %v81
    %469 = vmatprep.subr.bf16.mxu0 %v84
    %470 = vmatpush1.bf16.msra.mxu0 %v83
    %471 = vmatprep.subr.bf16.mxu0 %v86
    %472 = vmatpush1.bf16.msra.mxu0 %v85
    %473 = vmatprep.subr.bf16.mxu0 0
    %474 = vmatpush1.bf16.msra.mxu0 0
    %475 = vmatprep.subr.bf16.mxu0 0
    %476 = vmatpush1.bf16.msra.mxu0 0
    %477 = vmatprep.subr.bf16.mxu0 0
    %478 = vmatpush1.bf16.msra.mxu0 0
    %479 = vmatprep.subr.bf16.mxu0 0
    %480 = vmatpush1.bf16.msra.mxu0 0
    %481 = vmatprep.subr.bf16.mxu0 0
    %482 = vmatpush1.bf16.msra.mxu0 0
    %483 = vmatprep.subr.bf16.mxu0 0
    %484 = vmatpush1.bf16.msra.mxu0 0
    %485 = vmatprep.subr.bf16.mxu0 0
    %486 = vmatpush1.bf16.msra.mxu0 0
    %487 = vmatprep.subr.bf16.mxu0 0
    %488 = vmatpush1.bf16.msra.mxu0 0
    %489 = vmatprep.subr.bf16.mxu0 0
    %490 = vmatpush1.bf16.msra.mxu0 0
    %491 = vmatprep.subr.bf16.mxu0 0
    %492 = vmatpush1.bf16.msra.mxu0 0
    %493 = vmatprep.subr.bf16.mxu0 0
    %494 = vmatpush1.bf16.msra.mxu0 0
    %495 = vmatprep.subr.bf16.mxu0 0
    %496 = vmatpush1.bf16.msra.mxu0 0
    %497 = vmatprep.mubr.bf16.mxu0 0
    %498 = vmatmul.mubr.bf16.gmra.mrb[0].mxu0 %v463
    %v499 = vpop.f32.mrb[0].mxu0
    %v500 = vadd.f32 0.0, %v499
    %v501 = vpop.f32.mrb[0].mxu0
    %v502 = vadd.f32 0.0, %v501
    %v503 = vpop.f32.mrb[0].mxu0
    %v504 = vpop.f32.mrb[0].mxu0
    %505 = vdwg.mxu0
    %v508 = vrot.slane %v500, 5
    %v509 = vrot.slane %v502, 5
    %v512 = vadd.f32 %v49, %v508
    %v513 = vadd.f32 %v457, %v509
    %v514 = vxor.u32 %v512, 2147483648
    %v515 = vmul.f32 %v514, 1.442695
    %v516 = vpow.pop %v515
    %v517 = vadd.f32 %v516, 1.0
    %v518 = vrcp.pop %v517
    %v519 = vmul.f32 1.0, %v518
    %v520 = vtanh.pop %v512
    %v522 = vrot.slane %v456, 7
    %523 = vrot.lane.b32.xlu0 %v522, 32
    %v524 = vpop.permute.xlu0 %523
    %v526 = vmul.f32 %v519, %v524
    %528 = vrot.lane.b32.xlu0 %v520, 64
    %v529 = vpop.permute.xlu0 %528
    %v531 = vmul.f32 %v519, %v529
    %533 = vrot.lane.b32.xlu0 %v531, 32
    %v534 = vpop.permute.xlu0 %533
    %v536 = vadd.f32 %v526, %v534
    %v537 = vtanh.pop %v536
    %539 = vrot.lane.b32.xlu0 %v537, 64
    %v540 = vpop.permute.xlu0 %539
    %v542 = vmul.f32 %v519, %v540
    %v543 = vxor.u32 %v513, 2147483648
    %v544 = vmul.f32 %v543, 1.442695
    %v545 = vpow.pop %v544
    %v546 = vadd.f32 %v545, 1.0
    %v547 = vrcp.pop %v546
    %v548 = vmul.f32 1.0, %v547
    %v549 = vtanh.pop %v513
    %v551 = vmul.f32 %v548, %v522
    %553 = vrot.lane.b32.xlu0 %v549, 64
    %v554 = vpop.permute.xlu0 %553
    %v556 = vmul.f32 %v548, %v554
    %558 = vrot.lane.b32.xlu0 %v556, 32
    %v559 = vpop.permute.xlu0 %558
    %v561 = vadd.f32 %v551, %v559
    %v562 = vtanh.pop %v561
    %564 = vrot.lane.b32.xlu0 %v562, 64
    %v565 = vpop.permute.xlu0 %564
    %v567 = vmul.f32 %v548, %v565
    %569 = vrot.lane.b32.xlu0 %v542, 32
    %v570 = vpop.permute.xlu0 %569
    %573 = vrot.lane.b32.xlu0 %v567, 64
    %v574 = vpop.permute.xlu0 %573
    %v576 = vsel %vm40, %v570, %v574
    %578 = vrot.lane.b32.xlu0 %v536, 96
    %v579 = vpop.permute.xlu0 %578
    %v581 = vsel %vm40, %v579, %v561
    %v582 = vpack.c.bf16 %v576, %v576
    %v584 = vshrl.u32 %v582, 16
    %v586 = vrot.slane %v584, 1
    %v588 = vsel %vm95, %v586, 0
    %590 = vmatprep.subr.bf16.mxu0 %v80
    %591 = vmatpush1.bf16.msra.mxu0 %v79
    %592 = vmatprep.subr.bf16.mxu0 %v82
    %593 = vmatpush1.bf16.msra.mxu0 %v81
    %594 = vmatprep.subr.bf16.mxu0 %v84
    %595 = vmatpush1.bf16.msra.mxu0 %v83
    %596 = vmatprep.subr.bf16.mxu0 %v86
    %597 = vmatpush1.bf16.msra.mxu0 %v85
    %598 = vmatprep.subr.bf16.mxu0 0
    %599 = vmatpush1.bf16.msra.mxu0 0
    %600 = vmatprep.subr.bf16.mxu0 0
    %601 = vmatpush1.bf16.msra.mxu0 0
    %602 = vmatprep.subr.bf16.mxu0 0
    %603 = vmatpush1.bf16.msra.mxu0 0
    %604 = vmatprep.subr.bf16.mxu0 0
    %605 = vmatpush1.bf16.msra.mxu0 0
    %606 = vmatprep.subr.bf16.mxu0 0
    %607 = vmatpush1.bf16.msra.mxu0 0
    %608 = vmatprep.subr.bf16.mxu0 0
    %609 = vmatpush1.bf16.msra.mxu0 0
    %610 = vmatprep.subr.bf16.mxu0 0
    %611 = vmatpush1.bf16.msra.mxu0 0
    %612 = vmatprep.subr.bf16.mxu0 0
    %613 = vmatpush1.bf16.msra.mxu0 0
    %614 = vmatprep.subr.bf16.mxu0 0
    %615 = vmatpush1.bf16.msra.mxu0 0
    %616 = vmatprep.subr.bf16.mxu0 0
    %617 = vmatpush1.bf16.msra.mxu0 0
    %618 = vmatprep.subr.bf16.mxu0 0
    %619 = vmatpush1.bf16.msra.mxu0 0
    %620 = vmatprep.subr.bf16.mxu0 0
    %621 = vmatpush1.bf16.msra.mxu0 0
    %622 = vmatprep.mubr.bf16.mxu0 0
    %623 = vmatmul.mubr.bf16.gmra.mrb[0].mxu0 %v588
    %v624 = vpop.f32.mrb[0].mxu0
    %v625 = vadd.f32 0.0, %v624
    %v626 = vpop.f32.mrb[0].mxu0
    %v627 = vadd.f32 0.0, %v626
    %v628 = vpop.f32.mrb[0].mxu0
    %v629 = vpop.f32.mrb[0].mxu0
    %630 = vdwg.mxu0
    %v633 = vrot.slane %v625, 4
    %v634 = vrot.slane %v627, 4
    %v637 = vadd.f32 %v49, %v633
    %v638 = vadd.f32 %v52, %v634
    %v639 = vxor.u32 %v637, 2147483648
    %v640 = vmul.f32 %v639, 1.442695
    %v641 = vpow.pop %v640
    %v642 = vadd.f32 %v641, 1.0
    %v643 = vrcp.pop %v642
    %v644 = vmul.f32 1.0, %v643
    %v645 = vtanh.pop %v637
    %v647 = vrot.slane %v581, 7
    %648 = vrot.lane.b32.xlu0 %v647, 32
    %v649 = vpop.permute.xlu0 %648
    %v651 = vmul.f32 %v644, %v649
    %653 = vrot.lane.b32.xlu0 %v645, 64
    %v654 = vpop.permute.xlu0 %653
    %v656 = vmul.f32 %v644, %v654
    %658 = vrot.lane.b32.xlu0 %v656, 32
    %v659 = vpop.permute.xlu0 %658
    %v661 = vadd.f32 %v651, %v659
    %v662 = vtanh.pop %v661
    %664 = vrot.lane.b32.xlu0 %v662, 64
    %v665 = vpop.permute.xlu0 %664
    %v667 = vmul.f32 %v644, %v665
    %v668 = vxor.u32 %v638, 2147483648
    %v669 = vmul.f32 %v668, 1.442695
    %v670 = vpow.pop %v669
    %v671 = vadd.f32 %v670, 1.0
    %v672 = vrcp.pop %v671
    %v673 = vmul.f32 1.0, %v672
    %v674 = vtanh.pop %v638
    %v676 = vmul.f32 %v673, %v647
    %678 = vrot.lane.b32.xlu0 %v674, 64
    %v679 = vpop.permute.xlu0 %678
    %v681 = vmul.f32 %v673, %v679
    %683 = vrot.lane.b32.xlu0 %v681, 32
    %v684 = vpop.permute.xlu0 %683
    %v686 = vadd.f32 %v676, %v684
    %v687 = vtanh.pop %v686
    %689 = vrot.lane.b32.xlu0 %v687, 64
    %v690 = vpop.permute.xlu0 %689
    %v692 = vmul.f32 %v673, %v690
    %694 = vrot.lane.b32.xlu0 %v667, 32
    %v695 = vpop.permute.xlu0 %694
    %698 = vrot.lane.b32.xlu0 %v692, 64
    %v699 = vpop.permute.xlu0 %698
    %v701 = vsel %vm40, %v695, %v699
    %703 = vrot.lane.b32.xlu0 %v661, 96
    %v704 = vpop.permute.xlu0 %703
    %v706 = vsel %vm40, %v704, %v686
    %v707 = vpack.c.bf16 %v701, %v701
    %v709 = vrot.slane %v707, 2
    %v711 = vsel %vm95, %v709, 0
    %713 = vmatprep.subr.bf16.mxu0 %v80
    %714 = vmatpush1.bf16.msra.mxu0 %v79
    %715 = vmatprep.subr.bf16.mxu0 %v82
    %716 = vmatpush1.bf16.msra.mxu0 %v81
    %717 = vmatprep.subr.bf16.mxu0 %v84
    %718 = vmatpush1.bf16.msra.mxu0 %v83
    %719 = vmatprep.subr.bf16.mxu0 %v86
    %720 = vmatpush1.bf16.msra.mxu0 %v85
    %721 = vmatprep.subr.bf16.mxu0 0
    %722 = vmatpush1.bf16.msra.mxu0 0
    %723 = vmatprep.subr.bf16.mxu0 0
    %724 = vmatpush1.bf16.msra.mxu0 0
    %725 = vmatprep.subr.bf16.mxu0 0
    %726 = vmatpush1.bf16.msra.mxu0 0
    %727 = vmatprep.subr.bf16.mxu0 0
    %728 = vmatpush1.bf16.msra.mxu0 0
    %729 = vmatprep.subr.bf16.mxu0 0
    %730 = vmatpush1.bf16.msra.mxu0 0
    %731 = vmatprep.subr.bf16.mxu0 0
    %732 = vmatpush1.bf16.msra.mxu0 0
    %733 = vmatprep.subr.bf16.mxu0 0
    %734 = vmatpush1.bf16.msra.mxu0 0
    %735 = vmatprep.subr.bf16.mxu0 0
    %736 = vmatpush1.bf16.msra.mxu0 0
    %737 = vmatprep.subr.bf16.mxu0 0
    %738 = vmatpush1.bf16.msra.mxu0 0
    %739 = vmatprep.subr.bf16.mxu0 0
    %740 = vmatpush1.bf16.msra.mxu0 0
    %741 = vmatprep.subr.bf16.mxu0 0
    %742 = vmatpush1.bf16.msra.mxu0 0
    %743 = vmatprep.subr.bf16.mxu0 0
    %744 = vmatpush1.bf16.msra.mxu0 0
    %745 = vmatprep.mubr.bf16.mxu0 0
    %746 = vmatmul.mubr.bf16.gmra.mrb[0].mxu0 %v711
    %v747 = vpop.f32.mrb[0].mxu0
    %v748 = vadd.f32 0.0, %v747
    %v749 = vpop.f32.mrb[0].mxu0
    %v750 = vadd.f32 0.0, %v749
    %v751 = vpop.f32.mrb[0].mxu0
    %v752 = vpop.f32.mrb[0].mxu0
    %753 = vdwg.mxu0
    %v756 = vrot.slane %v748, 3
    %v757 = vrot.slane %v750, 3
    %v760 = vadd.f32 %v49, %v756
    %v761 = vadd.f32 %v208, %v757
    %v762 = vxor.u32 %v760, 2147483648
    %v763 = vmul.f32 %v762, 1.442695
    %v764 = vpow.pop %v763
    %v765 = vadd.f32 %v764, 1.0
    %v766 = vrcp.pop %v765
    %v767 = vmul.f32 1.0, %v766
    %v768 = vtanh.pop %v760
    %v770 = vrot.slane %v706, 7
    %771 = vrot.lane.b32.xlu0 %v770, 32
    %v772 = vpop.permute.xlu0 %771
    %v774 = vmul.f32 %v767, %v772
    %776 = vrot.lane.b32.xlu0 %v768, 64
    %v777 = vpop.permute.xlu0 %776
    %v779 = vmul.f32 %v767, %v777
    %781 = vrot.lane.b32.xlu0 %v779, 32
    %v782 = vpop.permute.xlu0 %781
    %v784 = vadd.f32 %v774, %v782
    %v785 = vtanh.pop %v784
    %787 = vrot.lane.b32.xlu0 %v785, 64
    %v788 = vpop.permute.xlu0 %787
    %v790 = vmul.f32 %v767, %v788
    %v791 = vxor.u32 %v761, 2147483648
    %v792 = vmul.f32 %v791, 1.442695
    %v793 = vpow.pop %v792
    %v794 = vadd.f32 %v793, 1.0
    %v795 = vrcp.pop %v794
    %v796 = vmul.f32 1.0, %v795
    %v797 = vtanh.pop %v761
    %v799 = vmul.f32 %v796, %v770
    %801 = vrot.lane.b32.xlu0 %v797, 64
    %v802 = vpop.permute.xlu0 %801
    %v804 = vmul.f32 %v796, %v802
    %806 = vrot.lane.b32.xlu0 %v804, 32
    %v807 = vpop.permute.xlu0 %806
    %v809 = vadd.f32 %v799, %v807
    %v810 = vtanh.pop %v809
    %812 = vrot.lane.b32.xlu0 %v810, 64
    %v813 = vpop.permute.xlu0 %812
    %v815 = vmul.f32 %v796, %v813
    %817 = vrot.lane.b32.xlu0 %v790, 32
    %v818 = vpop.permute.xlu0 %817
    %821 = vrot.lane.b32.xlu0 %v815, 64
    %v822 = vpop.permute.xlu0 %821
    %v824 = vsel %vm40, %v818, %v822
    %826 = vrot.lane.b32.xlu0 %v784, 96
    %v827 = vpop.permute.xlu0 %826
    %v829 = vsel %vm40, %v827, %v809
    %v830 = vpack.c.bf16 %v824, %v824
    %v832 = vshrl.u32 %v830, 16
    %v834 = vrot.slane %v832, 2
    %v836 = vsel %vm95, %v834, 0
    %838 = vmatprep.subr.bf16.mxu0 %v80
    %839 = vmatpush1.bf16.msra.mxu0 %v79
    %840 = vmatprep.subr.bf16.mxu0 %v82
    %841 = vmatpush1.bf16.msra.mxu0 %v81
    %842 = vmatprep.subr.bf16.mxu0 %v84
    %843 = vmatpush1.bf16.msra.mxu0 %v83
    %844 = vmatprep.subr.bf16.mxu0 %v86
    %845 = vmatpush1.bf16.msra.mxu0 %v85
    %846 = vmatprep.subr.bf16.mxu0 0
    %847 = vmatpush1.bf16.msra.mxu0 0
    %848 = vmatprep.subr.bf16.mxu0 0
    %849 = vmatpush1.bf16.msra.mxu0 0
    %850 = vmatprep.subr.bf16.mxu0 0
    %851 = vmatpush1.bf16.msra.mxu0 0
    %852 = vmatprep.subr.bf16.mxu0 0
    %853 = vmatpush1.bf16.msra.mxu0 0
    %854 = vmatprep.subr.bf16.mxu0 0
    %855 = vmatpush1.bf16.msra.mxu0 0
    %856 = vmatprep.subr.bf16.mxu0 0
    %857 = vmatpush1.bf16.msra.mxu0 0
    %858 = vmatprep.subr.bf16.mxu0 0
    %859 = vmatpush1.bf16.msra.mxu0 0
    %860 = vmatprep.subr.bf16.mxu0 0
    %861 = vmatpush1.bf16.msra.mxu0 0
    %862 = vmatprep.subr.bf16.mxu0 0
    %863 = vmatpush1.bf16.msra.mxu0 0
    %864 = vmatprep.subr.bf16.mxu0 0
    %865 = vmatpush1.bf16.msra.mxu0 0
    %866 = vmatprep.subr.bf16.mxu0 0
    %867 = vmatpush1.bf16.msra.mxu0 0
    %868 = vmatprep.subr.bf16.mxu0 0
    %869 = vmatpush1.bf16.msra.mxu0 0
    %870 = vmatprep.mubr.bf16.mxu0 0
    %871 = vmatmul.mubr.bf16.gmra.mrb[0].mxu0 %v836
    %v872 = vpop.f32.mrb[0].mxu0
    %v873 = vadd.f32 0.0, %v872
    %v874 = vpop.f32.mrb[0].mxu0
    %v875 = vadd.f32 0.0, %v874
    %v876 = vpop.f32.mrb[0].mxu0
    %v877 = vpop.f32.mrb[0].mxu0
    %878 = vdwg.mxu0
    %v881 = vrot.slane %v873, 2
    %v882 = vrot.slane %v875, 2
    %v885 = vadd.f32 %v49, %v881
    %v886 = vadd.f32 %v331, %v882
    %v887 = vxor.u32 %v885, 2147483648
    %v888 = vmul.f32 %v887, 1.442695
    %v889 = vpow.pop %v888
    %v890 = vadd.f32 %v889, 1.0
    %v891 = vrcp.pop %v890
    %v892 = vmul.f32 1.0, %v891
    %v893 = vtanh.pop %v885
    %v895 = vrot.slane %v829, 7
    %896 = vrot.lane.b32.xlu0 %v895, 32
    %v897 = vpop.permute.xlu0 %896
    %v899 = vmul.f32 %v892, %v897
    %901 = vrot.lane.b32.xlu0 %v893, 64
    %v902 = vpop.permute.xlu0 %901
    %v904 = vmul.f32 %v892, %v902
    %906 = vrot.lane.b32.xlu0 %v904, 32
    %v907 = vpop.permute.xlu0 %906
    %v909 = vadd.f32 %v899, %v907
    %v910 = vtanh.pop %v909
    %912 = vrot.lane.b32.xlu0 %v910, 64
    %v913 = vpop.permute.xlu0 %912
    %v915 = vmul.f32 %v892, %v913
    %v916 = vxor.u32 %v886, 2147483648
    %v917 = vmul.f32 %v916, 1.442695
    %v918 = vpow.pop %v917
    %v919 = vadd.f32 %v918, 1.0
    %v920 = vrcp.pop %v919
    %v921 = vmul.f32 1.0, %v920
    %v922 = vtanh.pop %v886
    %v924 = vmul.f32 %v921, %v895
    %926 = vrot.lane.b32.xlu0 %v922, 64
    %v927 = vpop.permute.xlu0 %926
    %v929 = vmul.f32 %v921, %v927
    %931 = vrot.lane.b32.xlu0 %v929, 32
    %v932 = vpop.permute.xlu0 %931
    %v934 = vadd.f32 %v924, %v932
    %v935 = vtanh.pop %v934
    %937 = vrot.lane.b32.xlu0 %v935, 64
    %v938 = vpop.permute.xlu0 %937
    %v940 = vmul.f32 %v921, %v938
    %942 = vrot.lane.b32.xlu0 %v915, 32
    %v943 = vpop.permute.xlu0 %942
    %946 = vrot.lane.b32.xlu0 %v940, 64
    %v947 = vpop.permute.xlu0 %946
    %v949 = vsel %vm40, %v943, %v947
    %951 = vrot.lane.b32.xlu0 %v909, 96
    %v952 = vpop.permute.xlu0 %951
    %v954 = vsel %vm40, %v952, %v934
    %v955 = vpack.c.bf16 %v949, %v949
    %v957 = vrot.slane %v955, 3
    %v959 = vsel %vm95, %v957, 0
    %961 = vmatprep.subr.bf16.mxu0 %v80
    %962 = vmatpush1.bf16.msra.mxu0 %v79
    %963 = vmatprep.subr.bf16.mxu0 %v82
    %964 = vmatpush1.bf16.msra.mxu0 %v81
    %965 = vmatprep.subr.bf16.mxu0 %v84
    %966 = vmatpush1.bf16.msra.mxu0 %v83
    %967 = vmatprep.subr.bf16.mxu0 %v86
    %968 = vmatpush1.bf16.msra.mxu0 %v85
    %969 = vmatprep.subr.bf16.mxu0 0
    %970 = vmatpush1.bf16.msra.mxu0 0
    %971 = vmatprep.subr.bf16.mxu0 0
    %972 = vmatpush1.bf16.msra.mxu0 0
    %973 = vmatprep.subr.bf16.mxu0 0
    %974 = vmatpush1.bf16.msra.mxu0 0
    %975 = vmatprep.subr.bf16.mxu0 0
    %976 = vmatpush1.bf16.msra.mxu0 0
    %977 = vmatprep.subr.bf16.mxu0 0
    %978 = vmatpush1.bf16.msra.mxu0 0
    %979 = vmatprep.subr.bf16.mxu0 0
    %980 = vmatpush1.bf16.msra.mxu0 0
    %981 = vmatprep.subr.bf16.mxu0 0
    %982 = vmatpush1.bf16.msra.mxu0 0
    %983 = vmatprep.subr.bf16.mxu0 0
    %984 = vmatpush1.bf16.msra.mxu0 0
    %985 = vmatprep.subr.bf16.mxu0 0
    %986 = vmatpush1.bf16.msra.mxu0 0
    %987 = vmatprep.subr.bf16.mxu0 0
    %988 = vmatpush1.bf16.msra.mxu0 0
    %989 = vmatprep.subr.bf16.mxu0 0
    %990 = vmatpush1.bf16.msra.mxu0 0
    %991 = vmatprep.subr.bf16.mxu0 0
    %992 = vmatpush1.bf16.msra.mxu0 0
    %993 = vmatprep.mubr.bf16.mxu0 0
    %994 = vmatmul.mubr.bf16.gmra.mrb[0].mxu0 %v959
    %v995 = vpop.f32.mrb[0].mxu0
    %v996 = vadd.f32 0.0, %v995
    %v997 = vpop.f32.mrb[0].mxu0
    %v998 = vadd.f32 0.0, %v997
    %v999 = vpop.f32.mrb[0].mxu0
    %v1000 = vpop.f32.mrb[0].mxu0
    %1001 = vdwg.mxu0
    %v1004 = vrot.slane %v996, 1
    %v1005 = vrot.slane %v998, 1
    %v1008 = vadd.f32 %v49, %v1004
    %v1009 = vadd.f32 %v457, %v1005
    %v1010 = vxor.u32 %v1008, 2147483648
    %v1011 = vmul.f32 %v1010, 1.442695
    %v1012 = vpow.pop %v1011
    %v1013 = vadd.f32 %v1012, 1.0
    %v1014 = vrcp.pop %v1013
    %v1015 = vmul.f32 1.0, %v1014
    %v1016 = vtanh.pop %v1008
    %v1018 = vrot.slane %v954, 7
    %1019 = vrot.lane.b32.xlu0 %v1018, 32
    %v1020 = vpop.permute.xlu0 %1019
    %v1022 = vmul.f32 %v1015, %v1020
    %1024 = vrot.lane.b32.xlu0 %v1016, 64
    %v1025 = vpop.permute.xlu0 %1024
    %v1027 = vmul.f32 %v1015, %v1025
    %1029 = vrot.lane.b32.xlu0 %v1027, 32
    %v1030 = vpop.permute.xlu0 %1029
    %v1032 = vadd.f32 %v1022, %v1030
    %v1033 = vtanh.pop %v1032
    %1035 = vrot.lane.b32.xlu0 %v1033, 64
    %v1036 = vpop.permute.xlu0 %1035
    %v1038 = vmul.f32 %v1015, %v1036
    %v1039 = vxor.u32 %v1009, 2147483648
    %v1040 = vmul.f32 %v1039, 1.442695
    %v1041 = vpow.pop %v1040
    %v1042 = vadd.f32 %v1041, 1.0
    %v1043 = vrcp.pop %v1042
    %v1044 = vmul.f32 1.0, %v1043
    %v1045 = vtanh.pop %v1009
    %v1047 = vmul.f32 %v1044, %v1018
    %1049 = vrot.lane.b32.xlu0 %v1045, 64
    %v1050 = vpop.permute.xlu0 %1049
    %v1052 = vmul.f32 %v1044, %v1050
    %1054 = vrot.lane.b32.xlu0 %v1052, 32
    %v1055 = vpop.permute.xlu0 %1054
    %v1057 = vadd.f32 %v1047, %v1055
    %v1058 = vtanh.pop %v1057
    %1060 = vrot.lane.b32.xlu0 %v1058, 64
    %v1061 = vpop.permute.xlu0 %1060
    %v1063 = vmul.f32 %v1044, %v1061
    %1065 = vrot.lane.b32.xlu0 %v1038, 32
    %v1066 = vpop.permute.xlu0 %1065
    %1069 = vrot.lane.b32.xlu0 %v1063, 64
    %v1070 = vpop.permute.xlu0 %1069
    %v1072 = vsel %vm40, %v1066, %v1070
    %1074 = vrot.lane.b32.xlu0 %v1032, 96
    %v1075 = vpop.permute.xlu0 %1074
    %v1077 = vsel %vm40, %v1075, %v1057
    %vm1078 = vcmask 1040384
    %v1079 = vsel %vm1078, %v169, %v291
    %vm1080 = vcmask 1041408
    %v1081 = vsel %vm1080, %v1079, %v417
    %vm1082 = vcmask 1042432
    %v1083 = vsel %vm1082, %v1081, %v542
    %vm1084 = vcmask 1043456
    %v1085 = vsel %vm1084, %v1083, %v667
    %vm1086 = vcmask 1044480
    %v1087 = vsel %vm1086, %v1085, %v790
    %vm1088 = vcmask 1045504
    %v1089 = vsel %vm1088, %v1087, %v915
    %vm1090 = vcmask 1046528
    %v1091 = vsel %vm1090, %v1089, %v1038
    %1093 = vrot.lane.b32.xlu0 %v1091, 32
    %v1094 = vpop.permute.xlu0 %1093
    %1096 = vst.msk [vmem:[#allocation2] sm:$0xff] %vm40, %v1094
    %v1097 = vrot.slane %v1063, 7
    %v1099 = vrot.slane %v940, 5
    %v1101 = vrot.slane %v815, 3
    %v1103 = vrot.slane %v692, 1
    %v1105 = vrot.slane %v567, 7
    %v1107 = vrot.slane %v442, 5
    %v1109 = vrot.slane %v316, 3
    %v1111 = vrot.slane %v193, 1
    %v1113 = vsel %vm1078, %v1097, %v1099
    %v1114 = vsel %vm1080, %v1113, %v1101
    %v1115 = vsel %vm1082, %v1114, %v1103
    %v1116 = vsel %vm1084, %v1115, %v1105
    %v1117 = vsel %vm1086, %v1116, %v1107
    %v1118 = vsel %vm1088, %v1117, %v1109
    %v1119 = vsel %vm1090, %v1118, %v1111
    %1121 = vrot.lane.b32.xlu0 %v1119, 64
    %v1122 = vpop.permute.xlu0 %1121
    %vm1124 = vcmask 523520
    %1125 = vst.msk [vmem:[#allocation2] sm:$0xff] %vm1124, %v1122
    %vm1126 = vcmask 261127
    %1127 = vst.msk [vmem:[#allocation4 - $0x7] sm:$0x80] %vm1126, %v1072
    %1129 = vrot.lane.b32.xlu0 %v1072, 96
    %v1130 = vpop.permute.xlu0 %1129
    %1132 = vst.msk [vmem:[#allocation4 - $0x6] sm:$0x80] %vm1126, %v1130
    %1133 = vst.msk [vmem:[#allocation6 - $0x7] sm:$0x80] %vm1126, %v1077
    %1135 = vrot.lane.b32.xlu0 %v1077, 96
    %v1136 = vpop.permute.xlu0 %1135
    %1138 = vst.msk [vmem:[#allocation6 - $0x6] sm:$0x80] %vm1126, %v1136
    // Predicated region
    $region22: #{encoder_cbhl_forward.3} parent=1 // pred_check
      _
    $region23: #{encoder_cbhl_forward.3} parent=1 // pred_check_branch
      %1140 = sbr.rel (0) target = $region25
    $region24: #{encoder_cbhl_forward.3} parent=1 // pred_region
      %s1142 = ssub.s32 128, 128
      %1143 = vsyncadd [#allocation3], %s1142
      %s1145 = sshll.u32 [#allocation2], 4
      %s1146 = int_to_ptr.vmem [resolvable:$true] %s1145
      %1148 = dma.vmem_to_hbm [thread:$0]  %s1146, 128, %s5, [#allocation3]
    $region25: #{encoder_cbhl_forward.3} parent=1 // pred_fallthru
      _
    // Predicated region
    $region26: #{encoder_cbhl_forward.3} parent=1 // pred_check
      _
    $region27: #{encoder_cbhl_forward.3} parent=1 // pred_check_branch
      %1150 = sbr.rel (0) target = $region29
    $region28: #{encoder_cbhl_forward.3} parent=1 // pred_region
      %s1152 = ssub.s32 32, 32
      %1153 = vsyncadd [#allocation5], %s1152
      %s1155 = sshll.u32 [#allocation4], 4
      %s1156 = int_to_ptr.vmem [resolvable:$true] %s1155
      %1158 = dma.vmem_to_hbm [thread:$0]  %s1156, 32, %s6, [#allocation5]
    $region29: #{encoder_cbhl_forward.3} parent=1 // pred_fallthru
      _
    // Predicated region
    $region30: #{encoder_cbhl_forward.3} parent=1 // pred_check
      _
    $region31: #{encoder_cbhl_forward.3} parent=1 // pred_check_branch
      %1160 = sbr.rel (0) target = $region33
    $region32: #{encoder_cbhl_forward.3} parent=1 // pred_region
      %s1162 = ssub.s32 32, 32
      %1163 = vsyncadd [#allocation5], %s1162
      %s1165 = sshll.u32 [#allocation6], 4
      %s1166 = int_to_ptr.vmem [resolvable:$true] %s1165
      %1168 = dma.vmem_to_hbm [thread:$0]  %s1166, 32, %s7, [#allocation5]
    $region33: #{encoder_cbhl_forward.3} parent=1 // pred_fallthru
      _
    // Predicated region
    $region34: #{encoder_cbhl_forward.3} parent=1 // pred_check
      _
    $region35: #{encoder_cbhl_forward.3} parent=1 // pred_check_branch
      %1170 = sbr.rel (0) target = $region37
    $region36: #{encoder_cbhl_forward.3} parent=1 // pred_region
      %1171 = dma.done [#allocation3], 128
    $region37: #{encoder_cbhl_forward.3} parent=1 // pred_fallthru
      _
    // Predicated region
    $region38: #{encoder_cbhl_forward.3} parent=1 // pred_check
      _
    $region39: #{encoder_cbhl_forward.3} parent=1 // pred_check_branch
      %1173 = sbr.rel (0) target = $region41
    $region40: #{encoder_cbhl_forward.3} parent=1 // pred_region
      %1174 = dma.done [#allocation5], 32
    $region41: #{encoder_cbhl_forward.3} parent=1 // pred_fallthru
      _
    // Predicated region
    $region42: #{encoder_cbhl_forward.3} parent=1 // pred_check
      _
    $region43: #{encoder_cbhl_forward.3} parent=1 // pred_check_branch
      %1176 = sbr.rel (0) target = $region45
    $region44: #{encoder_cbhl_forward.3} parent=1 // pred_region
      %1177 = dma.done [#allocation5], 32
    $region45: #{encoder_cbhl_forward.3} parent=1 // pred_fallthru
      _
    %1178 = vsyncpa [#allocation3], 1
    %1179 = vsyncpa [#allocation5], 1

// kernel: encoder_cbhl_forward.2
$region0: #{encoder_cbhl_forward.2}
  #allocation0 [shape = 'u32[]', space=smem, size = 0x4, offset = 0x4, fixed_abs, tag = 'smem constant byte address 0x4 - core index']
  #allocation1 [shape = 'u32[144,128]{1,0:T(1,128)}', space=vmem, size = 0x12000, scoped, tag = 'internal scratch']
  %s0 = inlined_call_operand.vmem [shape: f32[8,32], index: 0, kind: input, shape index: {}]
  %s1 = inlined_call_operand.vmem [shape: bf16[32,32], index: 1, kind: input, shape index: {}]
  %s2 = inlined_call_operand.vmem [shape: f32[1,32], index: 2, kind: input, shape index: {}]
  %s3 = inlined_call_operand.vmem [shape: bf16[32,32], index: 3, kind: input, shape index: {}]
  %s4 = inlined_call_operand.hbm [shape: f32[1,32], index: 4, kind: input, shape index: {}]
  %s5 = inlined_call_operand.vmem [shape: bf16[256,256], index: 5, kind: input, shape index: {}]
  %s6 = inlined_call_operand.vmem [shape: bf16[256,256], index: 6, kind: input, shape index: {}]
  %s7 = inlined_call_operand.vmem [shape: bf16[256,256], index: 7, kind: input, shape index: {}]
  %s8 = inlined_call_operand.vmem [shape: f32[1,256], index: 8, kind: input, shape index: {}]
  %s9 = inlined_call_operand.hbm [shape: f32[1,256], index: 9, kind: input, shape index: {}]
  %s10 = inlined_call_operand.vmem [shape: f32[2,256], index: 10, kind: input, shape index: {}]
  %s11 = inlined_call_operand.vmem [shape: f32[2,256], index: 11, kind: input, shape index: {}]
  %s12 = inlined_call_operand.vmem [shape: bf16[3,256,32], index: 12, kind: input, shape index: {}]
  %s13 = inlined_call_operand.vmem [shape: bf16[3,256,32], index: 13, kind: input, shape index: {}]
  %s14 = inlined_call_operand.hbm [shape: f32[1,32], index: 14, kind: input, shape index: {}]
  %s15 = inlined_call_operand.hbm [shape: f32[2,32], index: 15, kind: input, shape index: {}]
  %s16 = inlined_call_operand.vmem [shape: bf16[3,32,32], index: 16, kind: input, shape index: {}]
  %s17 = inlined_call_operand.hbm [shape: f32[1,32], index: 17, kind: input, shape index: {}]
  %s18 = inlined_call_operand.vmem [shape: bf16[4,32,96], index: 18, kind: input, shape index: {}]
  %s19 = inlined_call_operand.hbm [shape: f32[4,1,96], index: 19, kind: input, shape index: {}]
  %s20 = inlined_call_operand.vmem [shape: bf16[32,256], index: 20, kind: input, shape index: {}]
  %s21 = inlined_call_operand.hbm [shape: f32[1,256], index: 21, kind: input, shape index: {}]
  %s22 = inlined_call_operand.vmem [shape: f32[8,128], index: 22, kind: output, shape index: {0}]
  %s23 = inlined_call_operand.vmem [shape: f32[8,128], index: 23, kind: output, shape index: {1}]
  %24 = xla_tuple %s22, %s23
  %s25 = sld [smem:[#allocation0]]
  $region134: #{encoder_cbhl_forward.2} parent=0
    _
  %s27 = ssub.s32 1, %s25
  %s28 = scalar_select 0, %s27, %s25
  $region1: #{encoder_cbhl_forward.2} parent=0
    #allocation2 [shape = 'u8[512]{0}', space=vmem, size = 0x400, scoped, tag = 'input window, operand 4, single buffered']
    #allocation3 [shape = 's32[1]{0}', space=sflag, size = 0x4, scoped, tag = 'scoped memory for encoder_cbhl_forward.2']
    #allocation4 [shape = 'u8[1024]{0}', space=vmem, size = 0x400, scoped, tag = 'input window, operand 9, single buffered']
    #allocation5 [shape = 's32[1]{0}', space=sflag, size = 0x4, scoped, tag = 'scoped memory for encoder_cbhl_forward.2']
    #allocation6 [shape = 'u8[512]{0}', space=vmem, size = 0x400, scoped, tag = 'input window, operand 14, single buffered']
    #allocation7 [shape = 'u8[1024]{0}', space=vmem, size = 0x400, scoped, tag = 'input window, operand 15, single buffered']
    #allocation8 [shape = 's32[1]{0}', space=sflag, size = 0x4, scoped, tag = 'scoped memory for encoder_cbhl_forward.2']
    #allocation9 [shape = 'u8[512]{0}', space=vmem, size = 0x400, scoped, tag = 'input window, operand 17, single buffered']
    #allocation10 [shape = 'u8[2048]{0}', space=vmem, size = 0x800, scoped, tag = 'input window, operand 19, single buffered']
    #allocation11 [shape = 's32[1]{0}', space=sflag, size = 0x4, scoped, tag = 'scoped memory for encoder_cbhl_forward.2']
    #allocation12 [shape = 'u8[1024]{0}', space=vmem, size = 0x400, scoped, tag = 'input window, operand 21, single buffered']
    %29 = vsyncpa [#allocation3], 0
    %30 = vsyncpa [#allocation5], 0
    %31 = vsyncpa [#allocation8], 0
    %32 = vsyncpa [#allocation11], 0
    // Predicated region
    $region2: #{encoder_cbhl_forward.2} parent=1 // pred_check
      _
    $region3: #{encoder_cbhl_forward.2} parent=1 // pred_check_branch
      %34 = sbr.rel (0) target = $region5
    $region4: #{encoder_cbhl_forward.2} parent=1 // pred_region
      _
    $region5: #{encoder_cbhl_forward.2} parent=1 // pred_fallthru
      _
    // Predicated region
    $region6: #{encoder_cbhl_forward.2} parent=1 // pred_check
      _
    $region7: #{encoder_cbhl_forward.2} parent=1 // pred_check_branch
      %36 = sbr.rel (0) target = $region9
    $region8: #{encoder_cbhl_forward.2} parent=1 // pred_region
      _
    $region9: #{encoder_cbhl_forward.2} parent=1 // pred_fallthru
      _
    // Predicated region
    $region10: #{encoder_cbhl_forward.2} parent=1 // pred_check
      _
    $region11: #{encoder_cbhl_forward.2} parent=1 // pred_check_branch
      %38 = sbr.rel (0) target = $region13
    $region12: #{encoder_cbhl_forward.2} parent=1 // pred_region
      _
    $region13: #{encoder_cbhl_forward.2} parent=1 // pred_fallthru
      _
    // Predicated region
    $region14: #{encoder_cbhl_forward.2} parent=1 // pred_check
      _
    $region15: #{encoder_cbhl_forward.2} parent=1 // pred_check_branch
      %40 = sbr.rel (0) target = $region17
    $region16: #{encoder_cbhl_forward.2} parent=1 // pred_region
      _
    $region17: #{encoder_cbhl_forward.2} parent=1 // pred_fallthru
      _
    // Predicated region
    $region18: #{encoder_cbhl_forward.2} parent=1 // pred_check
      _
    $region19: #{encoder_cbhl_forward.2} parent=1 // pred_check_branch
      %42 = sbr.rel (0) target = $region21
    $region20: #{encoder_cbhl_forward.2} parent=1 // pred_region
      %s44 = ssub.s32 16, 16
      %45 = vsyncadd [#allocation3], %s44
      %s47 = sshll.u32 [#allocation2], 4
      %s48 = int_to_ptr.vmem [resolvable:$true] %s47
      %50 = dma.hbm_to_vmem [thread:$0]  %s4, 16, %s48, [#allocation3]
    $region21: #{encoder_cbhl_forward.2} parent=1 // pred_fallthru
      _
    // Predicated region
    $region22: #{encoder_cbhl_forward.2} parent=1 // pred_check
      _
    $region23: #{encoder_cbhl_forward.2} parent=1 // pred_check_branch
      %52 = sbr.rel (0) target = $region25
    $region24: #{encoder_cbhl_forward.2} parent=1 // pred_region
      _
    $region25: #{encoder_cbhl_forward.2} parent=1 // pred_fallthru
      _
    // Predicated region
    $region26: #{encoder_cbhl_forward.2} parent=1 // pred_check
      _
    $region27: #{encoder_cbhl_forward.2} parent=1 // pred_check_branch
      %54 = sbr.rel (0) target = $region29
    $region28: #{encoder_cbhl_forward.2} parent=1 // pred_region
      _
    $region29: #{encoder_cbhl_forward.2} parent=1 // pred_fallthru
      _
    // Predicated region
    $region30: #{encoder_cbhl_forward.2} parent=1 // pred_check
      _
    $region31: #{encoder_cbhl_forward.2} parent=1 // pred_check_branch
      %56 = sbr.rel (0) target = $region33
    $region32: #{encoder_cbhl_forward.2} parent=1 // pred_region
      _
    $region33: #{encoder_cbhl_forward.2} parent=1 // pred_fallthru
      _
    // Predicated region
    $region34: #{encoder_cbhl_forward.2} parent=1 // pred_check
      _
    $region35: #{encoder_cbhl_forward.2} parent=1 // pred_check_branch
      %58 = sbr.rel (0) target = $region37
    $region36: #{encoder_cbhl_forward.2} parent=1 // pred_region
      _
    $region37: #{encoder_cbhl_forward.2} parent=1 // pred_fallthru
      _
    // Predicated region
    $region38: #{encoder_cbhl_forward.2} parent=1 // pred_check
      _
    $region39: #{encoder_cbhl_forward.2} parent=1 // pred_check_branch
      %60 = sbr.rel (0) target = $region41
    $region40: #{encoder_cbhl_forward.2} parent=1 // pred_region
      %s62 = ssub.s32 32, 32
      %63 = vsyncadd [#allocation5], %s62
      %s65 = sshll.u32 [#allocation4], 4
      %s66 = int_to_ptr.vmem [resolvable:$true] %s65
      %68 = dma.hbm_to_vmem [thread:$0]  %s9, 32, %s66, [#allocation5]
    $region41: #{encoder_cbhl_forward.2} parent=1 // pred_fallthru
      _
    // Predicated region
    $region42: #{encoder_cbhl_forward.2} parent=1 // pred_check
      _
    $region43: #{encoder_cbhl_forward.2} parent=1 // pred_check_branch
      %70 = sbr.rel (0) target = $region45
    $region44: #{encoder_cbhl_forward.2} parent=1 // pred_region
      _
    $region45: #{encoder_cbhl_forward.2} parent=1 // pred_fallthru
      _
    // Predicated region
    $region46: #{encoder_cbhl_forward.2} parent=1 // pred_check
      _
    $region47: #{encoder_cbhl_forward.2} parent=1 // pred_check_branch
      %72 = sbr.rel (0) target = $region49
    $region48: #{encoder_cbhl_forward.2} parent=1 // pred_region
      _
    $region49: #{encoder_cbhl_forward.2} parent=1 // pred_fallthru
      _
    // Predicated region
    $region50: #{encoder_cbhl_forward.2} parent=1 // pred_check
      _
    $region51: #{encoder_cbhl_forward.2} parent=1 // pred_check_branch
      %74 = sbr.rel (0) target = $region53
    $region52: #{encoder_cbhl_forward.2} parent=1 // pred_region
      _
    $region53: #{encoder_cbhl_forward.2} parent=1 // pred_fallthru
      _
    // Predicated region
    $region54: #{encoder_cbhl_forward.2} parent=1 // pred_check
      _
    $region55: #{encoder_cbhl_forward.2} parent=1 // pred_check_branch
      %76 = sbr.rel (0) target = $region57
    $region56: #{encoder_cbhl_forward.2} parent=1 // pred_region
      _
    $region57: #{encoder_cbhl_forward.2} parent=1 // pred_fallthru
      _
    // Predicated region
    $region58: #{encoder_cbhl_forward.2} parent=1 // pred_check
      _
    $region59: #{encoder_cbhl_forward.2} parent=1 // pred_check_branch
      %78 = sbr.rel (0) target = $region61
    $region60: #{encoder_cbhl_forward.2} parent=1 // pred_region
      %s80 = ssub.s32 16, 16
      %81 = vsyncadd [#allocation5], %s80
      %s83 = sshll.u32 [#allocation6], 4
      %s84 = int_to_ptr.vmem [resolvable:$true] %s83
      %86 = dma.hbm_to_vmem [thread:$0]  %s14, 16, %s84, [#allocation5]
    $region61: #{encoder_cbhl_forward.2} parent=1 // pred_fallthru
      _
    // Predicated region
    $region62: #{encoder_cbhl_forward.2} parent=1 // pred_check
      _
    $region63: #{encoder_cbhl_forward.2} parent=1 // pred_check_branch
      %88 = sbr.rel (0) target = $region65
    $region64: #{encoder_cbhl_forward.2} parent=1 // pred_region
      %s90 = ssub.s32 32, 32
      %91 = vsyncadd [#allocation8], %s90
      %s93 = sshll.u32 [#allocation7], 4
      %s94 = int_to_ptr.vmem [resolvable:$true] %s93
      %96 = dma.hbm_to_vmem [thread:$0]  %s15, 32, %s94, [#allocation8]
    $region65: #{encoder_cbhl_forward.2} parent=1 // pred_fallthru
      _
    // Predicated region
    $region66: #{encoder_cbhl_forward.2} parent=1 // pred_check
      _
    $region67: #{encoder_cbhl_forward.2} parent=1 // pred_check_branch
      %98 = sbr.rel (0) target = $region69
    $region68: #{encoder_cbhl_forward.2} parent=1 // pred_region
      _
    $region69: #{encoder_cbhl_forward.2} parent=1 // pred_fallthru
      _
    // Predicated region
    $region70: #{encoder_cbhl_forward.2} parent=1 // pred_check
      _
    $region71: #{encoder_cbhl_forward.2} parent=1 // pred_check_branch
      %100 = sbr.rel (0) target = $region73
    $region72: #{encoder_cbhl_forward.2} parent=1 // pred_region
      %s102 = ssub.s32 16, 16
      %103 = vsyncadd [#allocation8], %s102
      %s105 = sshll.u32 [#allocation9], 4
      %s106 = int_to_ptr.vmem [resolvable:$true] %s105
      %108 = dma.hbm_to_vmem [thread:$0]  %s17, 16, %s106, [#allocation8]
    $region73: #{encoder_cbhl_forward.2} parent=1 // pred_fallthru
      _
    // Predicated region
    $region74: #{encoder_cbhl_forward.2} parent=1 // pred_check
      _
    $region75: #{encoder_cbhl_forward.2} parent=1 // pred_check_branch
      %110 = sbr.rel (0) target = $region77
    $region76: #{encoder_cbhl_forward.2} parent=1 // pred_region
      _
    $region77: #{encoder_cbhl_forward.2} parent=1 // pred_fallthru
      _
    // Predicated region
    $region78: #{encoder_cbhl_forward.2} parent=1 // pred_check
      _
    $region79: #{encoder_cbhl_forward.2} parent=1 // pred_check_branch
      %112 = sbr.rel (0) target = $region81
    $region80: #{encoder_cbhl_forward.2} parent=1 // pred_region
      %s114 = ssub.s32 64, 64
      %115 = vsyncadd [#allocation11], %s114
      %s116 = sshll.u32 [#allocation10], 4
      %s117 = int_to_ptr.vmem [resolvable:$true] %s116
      %122 = dma.hbm_to_vmem [thread:$0]  %s19, 64, %s117, [#allocation11], 16, 16, 1
    $region81: #{encoder_cbhl_forward.2} parent=1 // pred_fallthru
      _
    // Predicated region
    $region82: #{encoder_cbhl_forward.2} parent=1 // pred_check
      _
    $region83: #{encoder_cbhl_forward.2} parent=1 // pred_check_branch
      %124 = sbr.rel (0) target = $region85
    $region84: #{encoder_cbhl_forward.2} parent=1 // pred_region
      _
    $region85: #{encoder_cbhl_forward.2} parent=1 // pred_fallthru
      _
    // Predicated region
    $region86: #{encoder_cbhl_forward.2} parent=1 // pred_check
      _
    $region87: #{encoder_cbhl_forward.2} parent=1 // pred_check_branch
      %126 = sbr.rel (0) target = $region89
    $region88: #{encoder_cbhl_forward.2} parent=1 // pred_region
      %s128 = ssub.s32 32, 32
      %129 = vsyncadd [#allocation11], %s128
      %s131 = sshll.u32 [#allocation12], 4
      %s132 = int_to_ptr.vmem [resolvable:$true] %s131
      %134 = dma.hbm_to_vmem [thread:$0]  %s21, 32, %s132, [#allocation11]
    $region89: #{encoder_cbhl_forward.2} parent=1 // pred_fallthru
      _
    // Predicated region
    $region90: #{encoder_cbhl_forward.2} parent=1 // pred_check
      _
    $region91: #{encoder_cbhl_forward.2} parent=1 // pred_check_branch
      %136 = sbr.rel (0) target = $region93
    $region92: #{encoder_cbhl_forward.2} parent=1 // pred_region
      %137 = dma.done [#allocation3], 16
    $region93: #{encoder_cbhl_forward.2} parent=1 // pred_fallthru
      _
    // Predicated region
    $region94: #{encoder_cbhl_forward.2} parent=1 // pred_check
      _
    $region95: #{encoder_cbhl_forward.2} parent=1 // pred_check_branch
      %139 = sbr.rel (0) target = $region97
    $region96: #{encoder_cbhl_forward.2} parent=1 // pred_region
      %140 = dma.done [#allocation5], 32
    $region97: #{encoder_cbhl_forward.2} parent=1 // pred_fallthru
      _
    // Predicated region
    $region98: #{encoder_cbhl_forward.2} parent=1 // pred_check
      _
    $region99: #{encoder_cbhl_forward.2} parent=1 // pred_check_branch
      %142 = sbr.rel (0) target = $region101
    $region100: #{encoder_cbhl_forward.2} parent=1 // pred_region
      %143 = dma.done [#allocation5], 16
    $region101: #{encoder_cbhl_forward.2} parent=1 // pred_fallthru
      _
    // Predicated region
    $region102: #{encoder_cbhl_forward.2} parent=1 // pred_check
      _
    $region103: #{encoder_cbhl_forward.2} parent=1 // pred_check_branch
      %145 = sbr.rel (0) target = $region105
    $region104: #{encoder_cbhl_forward.2} parent=1 // pred_region
      %146 = dma.done [#allocation8], 32
    $region105: #{encoder_cbhl_forward.2} parent=1 // pred_fallthru
      _
    // Predicated region
    $region106: #{encoder_cbhl_forward.2} parent=1 // pred_check
      _
    $region107: #{encoder_cbhl_forward.2} parent=1 // pred_check_branch
      %148 = sbr.rel (0) target = $region109
    $region108: #{encoder_cbhl_forward.2} parent=1 // pred_region
      %149 = dma.done [#allocation8], 16
    $region109: #{encoder_cbhl_forward.2} parent=1 // pred_fallthru
      _
    // Predicated region
    $region110: #{encoder_cbhl_forward.2} parent=1 // pred_check
      _
    $region111: #{encoder_cbhl_forward.2} parent=1 // pred_check_branch
      %151 = sbr.rel (0) target = $region113
    $region112: #{encoder_cbhl_forward.2} parent=1 // pred_region
      %152 = dma.done [#allocation11], 64
    $region113: #{encoder_cbhl_forward.2} parent=1 // pred_fallthru
      _
    // Predicated region
    $region114: #{encoder_cbhl_forward.2} parent=1 // pred_check
      _
    $region115: #{encoder_cbhl_forward.2} parent=1 // pred_check_branch
      %154 = sbr.rel (0) target = $region117
    $region116: #{encoder_cbhl_forward.2} parent=1 // pred_region
      %155 = dma.done [#allocation11], 32
    $region117: #{encoder_cbhl_forward.2} parent=1 // pred_fallthru
      _
    %v157 = vld [vmem:[%s0] sm:$0xff]
    %v158 = vld [vmem:[%s1] sm:$0xf]
    %v159 = vld [vmem:[%s1 + $0x4] sm:$0xf]
    %v160 = vld [vmem:[%s1 + $0x8] sm:$0xf]
    %v161 = vld [vmem:[%s1 + $0xc] sm:$0xf]
    %v162 = vpack.c.bf16 %v157, %v157
    %v163 = vld [vmem:[%s2] sm:$0x1]
    %v165 = vlaneseq
    %v166 = vshrl.u32 %v165, 7
    %v167 = vsub.s32 0, %v166
    %v168 = vrot.slane %v163, %v167
    %v174 = vunpack.c.l.b16 %v158
    %v175 = vunpack.c.l.b16 %v159
    %v176 = vunpack.c.l.b16 %v160
    %v177 = vunpack.c.l.b16 %v161
    %v178 = vpack.c.b16 %v175, %v174
    %v179 = vpack.c.b16 %v177, %v176
    %vm182 = vcmask 261120
    %v184 = vsel %vm182, %v162, 0
    %186 = vmatprep.subr.bf16.mxu0 0
    %187 = vmatpush1.bf16.msra.mxu0 %v178
    %188 = vmatprep.subr.bf16.mxu0 0
    %189 = vmatpush1.bf16.msra.mxu0 %v179
    %190 = vmatprep.subr.bf16.mxu0 0
    %191 = vmatpush1.bf16.msra.mxu0 0
    %192 = vmatprep.subr.bf16.mxu0 0
    %193 = vmatpush1.bf16.msra.mxu0 0
    %194 = vmatprep.subr.bf16.mxu0 0
    %195 = vmatpush1.bf16.msra.mxu0 0
    %196 = vmatprep.subr.bf16.mxu0 0
    %197 = vmatpush1.bf16.msra.mxu0 0
    %198 = vmatprep.subr.bf16.mxu0 0
    %199 = vmatpush1.bf16.msra.mxu0 0
    %200 = vmatprep.subr.bf16.mxu0 0
    %201 = vmatpush1.bf16.msra.mxu0 0
    %202 = vmatprep.subr.bf16.mxu0 0
    %203 = vmatpush1.bf16.msra.mxu0 0
    %204 = vmatprep.subr.bf16.mxu0 0
    %205 = vmatpush1.bf16.msra.mxu0 0
    %206 = vmatprep.subr.bf16.mxu0 0
    %207 = vmatpush1.bf16.msra.mxu0 0
    %208 = vmatprep.subr.bf16.mxu0 0
    %209 = vmatpush1.bf16.msra.mxu0 0
    %210 = vmatprep.subr.bf16.mxu0 0
    %211 = vmatpush1.bf16.msra.mxu0 0
    %212 = vmatprep.subr.bf16.mxu0 0
    %213 = vmatpush1.bf16.msra.mxu0 0
    %214 = vmatprep.subr.bf16.mxu0 0
    %215 = vmatpush1.bf16.msra.mxu0 0
    %216 = vmatprep.subr.bf16.mxu0 0
    %217 = vmatpush1.bf16.msra.mxu0 0
    %218 = vmatprep.mubr.bf16.mxu0 0
    %219 = vmatmul.mubr.bf16.gmra.mrb[0].mxu0 %v184
    %v220 = vpop.f32.mrb[0].mxu0
    %v221 = vadd.f32 %v168, %v220
    %v222 = vpop.f32.mrb[0].mxu0
    %v223 = vpop.f32.mrb[0].mxu0
    %v224 = vpop.f32.mrb[0].mxu0
    %225 = vdwg.mxu0
    %v226 = vmax.f32 %v221, 0.0
    %v227 = vld [vmem:[%s3] sm:$0xf]
    %v228 = vld [vmem:[%s3 + $0x4] sm:$0xf]
    %v229 = vld [vmem:[%s3 + $0x8] sm:$0xf]
    %v230 = vld [vmem:[%s3 + $0xc] sm:$0xf]
    %v231 = vpack.c.bf16 %v226, %v226
    %v232 = vld [vmem:[#allocation2] sm:$0x1]
    %v234 = vlaneseq
    %v235 = vshrl.u32 %v234, 7
    %v236 = vsub.s32 0, %v235
    %v237 = vrot.slane %v232, %v236
    %v243 = vunpack.c.l.b16 %v227
    %v244 = vunpack.c.l.b16 %v228
    %v245 = vunpack.c.l.b16 %v229
    %v246 = vunpack.c.l.b16 %v230
    %v247 = vpack.c.b16 %v244, %v243
    %v248 = vpack.c.b16 %v246, %v245
    %v252 = vsel %vm182, %v231, 0
    %254 = vmatprep.subr.bf16.mxu0 0
    %255 = vmatpush1.bf16.msra.mxu0 %v247
    %256 = vmatprep.subr.bf16.mxu0 0
    %257 = vmatpush1.bf16.msra.mxu0 %v248
    %258 = vmatprep.subr.bf16.mxu0 0
    %259 = vmatpush1.bf16.msra.mxu0 0
    %260 = vmatprep.subr.bf16.mxu0 0
    %261 = vmatpush1.bf16.msra.mxu0 0
    %262 = vmatprep.subr.bf16.mxu0 0
    %263 = vmatpush1.bf16.msra.mxu0 0
    %264 = vmatprep.subr.bf16.mxu0 0
    %265 = vmatpush1.bf16.msra.mxu0 0
    %266 = vmatprep.subr.bf16.mxu0 0
    %267 = vmatpush1.bf16.msra.mxu0 0
    %268 = vmatprep.subr.bf16.mxu0 0
    %269 = vmatpush1.bf16.msra.mxu0 0
    %270 = vmatprep.subr.bf16.mxu0 0
    %271 = vmatpush1.bf16.msra.mxu0 0
    %272 = vmatprep.subr.bf16.mxu0 0
    %273 = vmatpush1.bf16.msra.mxu0 0
    %274 = vmatprep.subr.bf16.mxu0 0
    %275 = vmatpush1.bf16.msra.mxu0 0
    %276 = vmatprep.subr.bf16.mxu0 0
    %277 = vmatpush1.bf16.msra.mxu0 0
    %278 = vmatprep.subr.bf16.mxu0 0
    %279 = vmatpush1.bf16.msra.mxu0 0
    %280 = vmatprep.subr.bf16.mxu0 0
    %281 = vmatpush1.bf16.msra.mxu0 0
    %282 = vmatprep.subr.bf16.mxu0 0
    %283 = vmatpush1.bf16.msra.mxu0 0
    %284 = vmatprep.subr.bf16.mxu0 0
    %285 = vmatpush1.bf16.msra.mxu0 0
    %286 = vmatprep.mubr.bf16.mxu0 0
    %287 = vmatmul.mubr.bf16.gmra.mrb[0].mxu0 %v252
    %v288 = vpop.f32.mrb[0].mxu0
    %v289 = vadd.f32 %v237, %v288
    %v290 = vpop.f32.mrb[0].mxu0
    %v291 = vpop.f32.mrb[0].mxu0
    %v292 = vpop.f32.mrb[0].mxu0
    %293 = vdwg.mxu0
    %v294 = vmax.f32 %v289, 0.0
    %vm297 = vcmask 1046528
    %v298 = vrot.slane %v294, 1
    %v299 = vrot.slane 0.0, 1
    %v300 = vsel %vm297, %v298, %v299
    %301 = vrot.lane.b32.xlu0 %v300, 32
    %v302 = vpop.permute.xlu0 %301
    %vm304 = vcmask 1045504
    %v305 = vrot.slane %v294, 2
    %v306 = vrot.slane 0.0, 2
    %v307 = vsel %vm304, %v305, %v306
    %308 = vrot.lane.b32.xlu0 %v307, 64
    %v309 = vpop.permute.xlu0 %308
    %vm311 = vcmask 1044480
    %v312 = vrot.slane %v294, 3
    %v313 = vrot.slane 0.0, 3
    %v314 = vsel %vm311, %v312, %v313
    %315 = vrot.lane.b32.xlu0 %v314, 96
    %v316 = vpop.permute.xlu0 %315
    %vm318 = vcmask 1043456
    %v319 = vrot.slane %v294, 4
    %v320 = vrot.slane 0.0, 4
    %v321 = vsel %vm318, %v319, %v320
    %vm323 = vcmask 1042432
    %v324 = vrot.slane %v294, 5
    %v325 = vrot.slane 0.0, 5
    %v326 = vsel %vm323, %v324, %v325
    %327 = vrot.lane.b32.xlu0 %v326, 32
    %v328 = vpop.permute.xlu0 %327
    %vm330 = vcmask 1041408
    %v331 = vrot.slane %v294, 6
    %v332 = vrot.slane 0.0, 6
    %v333 = vsel %vm330, %v331, %v332
    %334 = vrot.lane.b32.xlu0 %v333, 64
    %v335 = vpop.permute.xlu0 %334
    %vm337 = vcmask 1040384
    %v338 = vrot.slane %v294, 7
    %v339 = vrot.slane 0.0, 7
    %v340 = vsel %vm337, %v338, %v339
    %341 = vrot.lane.b32.xlu0 %v340, 96
    %v342 = vpop.permute.xlu0 %341
    %v344 = vsel %vm182, %v294, %v302
    %vm345 = vcmask 523264
    %v346 = vsel %vm345, %v344, %v309
    %vm347 = vcmask 785408
    %v348 = vsel %vm347, %v346, %v316
    %v349 = vsel %vm182, %v321, %v328
    %v350 = vsel %vm345, %v349, %v335
    %v351 = vsel %vm347, %v350, %v342
    %v352 = vsel %vm297, %v299, %v299
    %353 = vrot.lane.b32.xlu0 %v352, 32
    %v354 = vpop.permute.xlu0 %353
    %v356 = vsel %vm304, %v306, %v306
    %357 = vrot.lane.b32.xlu0 %v356, 64
    %v358 = vpop.permute.xlu0 %357
    %v360 = vsel %vm311, %v313, %v313
    %361 = vrot.lane.b32.xlu0 %v360, 96
    %v362 = vpop.permute.xlu0 %361
    %v364 = vsel %vm318, %v320, %v320
    %v366 = vsel %vm323, %v325, %v325
    %367 = vrot.lane.b32.xlu0 %v366, 32
    %v368 = vpop.permute.xlu0 %367
    %v370 = vsel %vm330, %v332, %v332
    %371 = vrot.lane.b32.xlu0 %v370, 64
    %v372 = vpop.permute.xlu0 %371
    %v374 = vsel %vm337, %v339, %v339
    %375 = vrot.lane.b32.xlu0 %v374, 96
    %v376 = vpop.permute.xlu0 %375
    %v378 = vsel %vm182, 0.0, %v354
    %v379 = vsel %vm345, %v378, %v358
    %v380 = vsel %vm347, %v379, %v362
    %v381 = vsel %vm182, %v364, %v368
    %v382 = vsel %vm345, %v381, %v372
    %v383 = vsel %vm347, %v382, %v376
    %v384 = vpack.c.bf16 %v348, %v348
    %v385 = vpack.c.bf16 %v351, %v351
    %v386 = vpack.c.bf16 %v380, %v380
    %v387 = vpack.c.bf16 %v383, %v383
    %v388 = vld [vmem:[%s5] sm:$0xff]
    %v389 = vld [vmem:[%s5 + $0x8] sm:$0xff]
    %v390 = vld [vmem:[%s5 + $0x10] sm:$0xff]
    %v391 = vld [vmem:[%s5 + $0x18] sm:$0xff]
    %v392 = vld [vmem:[%s5 + $0x20] sm:$0xff]
    %v393 = vld [vmem:[%s5 + $0x28] sm:$0xff]
    %v394 = vld [vmem:[%s5 + $0x30] sm:$0xff]
    %v395 = vld [vmem:[%s5 + $0x38] sm:$0xff]
    %v396 = vld [vmem:[%s5 + $0x40] sm:$0xff]
    %v397 = vld [vmem:[%s5 + $0x48] sm:$0xff]
    %v398 = vld [vmem:[%s5 + $0x50] sm:$0xff]
    %v399 = vld [vmem:[%s5 + $0x58] sm:$0xff]
    %v400 = vld [vmem:[%s5 + $0x60] sm:$0xff]
    %v401 = vld [vmem:[%s5 + $0x68] sm:$0xff]
    %v402 = vld [vmem:[%s5 + $0x70] sm:$0xff]
    %v403 = vld [vmem:[%s5 + $0x78] sm:$0xff]
    %v404 = vld [vmem:[%s5 + $0x80] sm:$0xff]
    %v405 = vld [vmem:[%s5 + $0x88] sm:$0xff]
    %v406 = vld [vmem:[%s5 + $0x90] sm:$0xff]
    %v407 = vld [vmem:[%s5 + $0x98] sm:$0xff]
    %v408 = vld [vmem:[%s5 + $0xa0] sm:$0xff]
    %v409 = vld [vmem:[%s5 + $0xa8] sm:$0xff]
    %v410 = vld [vmem:[%s5 + $0xb0] sm:$0xff]
    %v411 = vld [vmem:[%s5 + $0xb8] sm:$0xff]
    %v412 = vld [vmem:[%s5 + $0xc0] sm:$0xff]
    %v413 = vld [vmem:[%s5 + $0xc8] sm:$0xff]
    %v414 = vld [vmem:[%s5 + $0xd0] sm:$0xff]
    %v415 = vld [vmem:[%s5 + $0xd8] sm:$0xff]
    %v416 = vld [vmem:[%s5 + $0xe0] sm:$0xff]
    %v417 = vld [vmem:[%s5 + $0xe8] sm:$0xff]
    %v418 = vld [vmem:[%s5 + $0xf0] sm:$0xff]
    %v419 = vld [vmem:[%s5 + $0xf8] sm:$0xff]
    %v420 = vld [vmem:[%s8] sm:$0x3]
    %v422 = vlaneseq
    %v423 = vshrl.u32 %v422, 7
    %v424 = vsub.s32 0, %v423
    %v425 = vrot.slane %v420, %v424
    %v426 = vlaneseq
    %v427 = vshrl.u32 %v426, 7
    %v428 = vsub.s32 1, %v427
    %v429 = vrot.slane %v420, %v428
    %v464 = vunpack.c.l.b16 %v388
    %v465 = vunpack.c.h.b16 %v388
    %v466 = vunpack.c.l.b16 %v389
    %v467 = vunpack.c.h.b16 %v389
    %v468 = vunpack.c.l.b16 %v390
    %v469 = vunpack.c.h.b16 %v390
    %v470 = vunpack.c.l.b16 %v391
    %v471 = vunpack.c.h.b16 %v391
    %v472 = vunpack.c.l.b16 %v392
    %v473 = vunpack.c.h.b16 %v392
    %v474 = vunpack.c.l.b16 %v393
    %v475 = vunpack.c.h.b16 %v393
    %v476 = vunpack.c.l.b16 %v394
    %v477 = vunpack.c.h.b16 %v394
    %v478 = vunpack.c.l.b16 %v395
    %v479 = vunpack.c.h.b16 %v395
    %v480 = vunpack.c.l.b16 %v396
    %v481 = vunpack.c.h.b16 %v396
    %v482 = vunpack.c.l.b16 %v397
    %v483 = vunpack.c.h.b16 %v397
    %v484 = vunpack.c.l.b16 %v398
    %v485 = vunpack.c.h.b16 %v398
    %v486 = vunpack.c.l.b16 %v399
    %v487 = vunpack.c.h.b16 %v399
    %v488 = vunpack.c.l.b16 %v400
    %v489 = vunpack.c.h.b16 %v400
    %v490 = vunpack.c.l.b16 %v401
    %v491 = vunpack.c.h.b16 %v401
    %v492 = vunpack.c.l.b16 %v402
    %v493 = vunpack.c.h.b16 %v402
    %v494 = vunpack.c.l.b16 %v403
    %v495 = vunpack.c.h.b16 %v403
    %v496 = vunpack.c.l.b16 %v404
    %v497 = vunpack.c.h.b16 %v404
    %v498 = vunpack.c.l.b16 %v405
    %v499 = vunpack.c.h.b16 %v405
    %v500 = vunpack.c.l.b16 %v406
    %v501 = vunpack.c.h.b16 %v406
    %v502 = vunpack.c.l.b16 %v407
    %v503 = vunpack.c.h.b16 %v407
    %v504 = vunpack.c.l.b16 %v408
    %v505 = vunpack.c.h.b16 %v408
    %v506 = vunpack.c.l.b16 %v409
    %v507 = vunpack.c.h.b16 %v409
    %v508 = vunpack.c.l.b16 %v410
    %v509 = vunpack.c.h.b16 %v410
    %v510 = vunpack.c.l.b16 %v411
    %v511 = vunpack.c.h.b16 %v411
    %v512 = vunpack.c.l.b16 %v412
    %v513 = vunpack.c.h.b16 %v412
    %v514 = vunpack.c.l.b16 %v413
    %v515 = vunpack.c.h.b16 %v413
    %v516 = vunpack.c.l.b16 %v414
    %v517 = vunpack.c.h.b16 %v414
    %v518 = vunpack.c.l.b16 %v415
    %v519 = vunpack.c.h.b16 %v415
    %v520 = vunpack.c.l.b16 %v416
    %v521 = vunpack.c.h.b16 %v416
    %v522 = vunpack.c.l.b16 %v417
    %v523 = vunpack.c.h.b16 %v417
    %v524 = vunpack.c.l.b16 %v418
    %v525 = vunpack.c.h.b16 %v418
    %v526 = vunpack.c.l.b16 %v419
    %v527 = vunpack.c.h.b16 %v419
    %v528 = vpack.c.b16 %v466, %v464
    %v529 = vpack.c.b16 %v467, %v465
    %v530 = vpack.c.b16 %v470, %v468
    %v531 = vpack.c.b16 %v471, %v469
    %v532 = vpack.c.b16 %v474, %v472
    %v533 = vpack.c.b16 %v475, %v473
    %v534 = vpack.c.b16 %v478, %v476
    %v535 = vpack.c.b16 %v479, %v477
    %v536 = vpack.c.b16 %v482, %v480
    %v537 = vpack.c.b16 %v483, %v481
    %v538 = vpack.c.b16 %v486, %v484
    %v539 = vpack.c.b16 %v487, %v485
    %v540 = vpack.c.b16 %v490, %v488
    %v541 = vpack.c.b16 %v491, %v489
    %v542 = vpack.c.b16 %v494, %v492
    %v543 = vpack.c.b16 %v495, %v493
    %v544 = vpack.c.b16 %v498, %v496
    %v545 = vpack.c.b16 %v499, %v497
    %v546 = vpack.c.b16 %v502, %v500
    %v547 = vpack.c.b16 %v503, %v501
    %v548 = vpack.c.b16 %v506, %v504
    %v549 = vpack.c.b16 %v507, %v505
    %v550 = vpack.c.b16 %v510, %v508
    %v551 = vpack.c.b16 %v511, %v509
    %v552 = vpack.c.b16 %v514, %v512
    %v553 = vpack.c.b16 %v515, %v513
    %v554 = vpack.c.b16 %v518, %v516
    %v555 = vpack.c.b16 %v519, %v517
    %v556 = vpack.c.b16 %v522, %v520
    %v557 = vpack.c.b16 %v523, %v521
    %v558 = vpack.c.b16 %v526, %v524
    %v559 = vpack.c.b16 %v527, %v525
    %592 = vmatprep.subr.bf16.mxu0 %v529
    %593 = vmatpush1.bf16.msra.mxu0 %v528
    %594 = vmatprep.subr.bf16.mxu0 %v531
    %595 = vmatpush1.bf16.msra.mxu0 %v530
    %596 = vmatprep.subr.bf16.mxu0 %v533
    %597 = vmatpush1.bf16.msra.mxu0 %v532
    %598 = vmatprep.subr.bf16.mxu0 %v535
    %599 = vmatpush1.bf16.msra.mxu0 %v534
    %600 = vmatprep.subr.bf16.mxu0 %v537
    %601 = vmatpush1.bf16.msra.mxu0 %v536
    %602 = vmatprep.subr.bf16.mxu0 %v539
    %603 = vmatpush1.bf16.msra.mxu0 %v538
    %604 = vmatprep.subr.bf16.mxu0 %v541
    %605 = vmatpush1.bf16.msra.mxu0 %v540
    %606 = vmatprep.subr.bf16.mxu0 %v543
    %607 = vmatpush1.bf16.msra.mxu0 %v542
    %608 = vmatprep.subr.bf16.mxu0 %v545
    %609 = vmatpush1.bf16.msra.mxu0 %v544
    %610 = vmatprep.subr.bf16.mxu0 %v547
    %611 = vmatpush1.bf16.msra.mxu0 %v546
    %612 = vmatprep.subr.bf16.mxu0 %v549
    %613 = vmatpush1.bf16.msra.mxu0 %v548
    %614 = vmatprep.subr.bf16.mxu0 %v551
    %615 = vmatpush1.bf16.msra.mxu0 %v550
    %616 = vmatprep.subr.bf16.mxu0 %v553
    %617 = vmatpush1.bf16.msra.mxu0 %v552
    %618 = vmatprep.subr.bf16.mxu0 %v555
    %619 = vmatpush1.bf16.msra.mxu0 %v554
    %620 = vmatprep.subr.bf16.mxu0 %v557
    %621 = vmatpush1.bf16.msra.mxu0 %v556
    %622 = vmatprep.subr.bf16.mxu0 %v559
    %623 = vmatpush1.bf16.msra.mxu0 %v558
    %624 = vmatprep.mubr.bf16.mxu0 %v385
    %625 = vmatmul.mubr.bf16.gmra.mrb[0].mxu0 %v384
    %v626 = vpop.f32.mrb[0].mxu0
    %v627 = vadd.f32 %v425, %v626
    %v628 = vpop.f32.mrb[0].mxu0
    %v629 = vadd.f32 %v429, %v628
    %v630 = vpop.f32.mrb[0].mxu0
    %v631 = vpop.f32.mrb[0].mxu0
    %632 = vdwg.mxu0
    %v633 = vld [vmem:[%s6] sm:$0xff]
    %v634 = vld [vmem:[%s6 + $0x8] sm:$0xff]
    %v635 = vld [vmem:[%s6 + $0x10] sm:$0xff]
    %v636 = vld [vmem:[%s6 + $0x18] sm:$0xff]
    %v637 = vld [vmem:[%s6 + $0x20] sm:$0xff]
    %v638 = vld [vmem:[%s6 + $0x28] sm:$0xff]
    %v639 = vld [vmem:[%s6 + $0x30] sm:$0xff]
    %v640 = vld [vmem:[%s6 + $0x38] sm:$0xff]
    %v641 = vld [vmem:[%s6 + $0x40] sm:$0xff]
    %v642 = vld [vmem:[%s6 + $0x48] sm:$0xff]
    %v643 = vld [vmem:[%s6 + $0x50] sm:$0xff]
    %v644 = vld [vmem:[%s6 + $0x58] sm:$0xff]
    %v645 = vld [vmem:[%s6 + $0x60] sm:$0xff]
    %v646 = vld [vmem:[%s6 + $0x68] sm:$0xff]
    %v647 = vld [vmem:[%s6 + $0x70] sm:$0xff]
    %v648 = vld [vmem:[%s6 + $0x78] sm:$0xff]
    %v649 = vld [vmem:[%s6 + $0x80] sm:$0xff]
    %v650 = vld [vmem:[%s6 + $0x88] sm:$0xff]
    %v651 = vld [vmem:[%s6 + $0x90] sm:$0xff]
    %v652 = vld [vmem:[%s6 + $0x98] sm:$0xff]
    %v653 = vld [vmem:[%s6 + $0xa0] sm:$0xff]
    %v654 = vld [vmem:[%s6 + $0xa8] sm:$0xff]
    %v655 = vld [vmem:[%s6 + $0xb0] sm:$0xff]
    %v656 = vld [vmem:[%s6 + $0xb8] sm:$0xff]
    %v657 = vld [vmem:[%s6 + $0xc0] sm:$0xff]
    %v658 = vld [vmem:[%s6 + $0xc8] sm:$0xff]
    %v659 = vld [vmem:[%s6 + $0xd0] sm:$0xff]
    %v660 = vld [vmem:[%s6 + $0xd8] sm:$0xff]
    %v661 = vld [vmem:[%s6 + $0xe0] sm:$0xff]
    %v662 = vld [vmem:[%s6 + $0xe8] sm:$0xff]
    %v663 = vld [vmem:[%s6 + $0xf0] sm:$0xff]
    %v664 = vld [vmem:[%s6 + $0xf8] sm:$0xff]
    %v665 = vld [vmem:[%s7] sm:$0xff]
    %v666 = vld [vmem:[%s7 + $0x8] sm:$0xff]
    %v667 = vld [vmem:[%s7 + $0x10] sm:$0xff]
    %v668 = vld [vmem:[%s7 + $0x18] sm:$0xff]
    %v669 = vld [vmem:[%s7 + $0x20] sm:$0xff]
    %v670 = vld [vmem:[%s7 + $0x28] sm:$0xff]
    %v671 = vld [vmem:[%s7 + $0x30] sm:$0xff]
    %v672 = vld [vmem:[%s7 + $0x38] sm:$0xff]
    %v673 = vld [vmem:[%s7 + $0x40] sm:$0xff]
    %v674 = vld [vmem:[%s7 + $0x48] sm:$0xff]
    %v675 = vld [vmem:[%s7 + $0x50] sm:$0xff]
    %v676 = vld [vmem:[%s7 + $0x58] sm:$0xff]
    %v677 = vld [vmem:[%s7 + $0x60] sm:$0xff]
    %v678 = vld [vmem:[%s7 + $0x68] sm:$0xff]
    %v679 = vld [vmem:[%s7 + $0x70] sm:$0xff]
    %v680 = vld [vmem:[%s7 + $0x78] sm:$0xff]
    %v681 = vld [vmem:[%s7 + $0x80] sm:$0xff]
    %v682 = vld [vmem:[%s7 + $0x88] sm:$0xff]
    %v683 = vld [vmem:[%s7 + $0x90] sm:$0xff]
    %v684 = vld [vmem:[%s7 + $0x98] sm:$0xff]
    %v685 = vld [vmem:[%s7 + $0xa0] sm:$0xff]
    %v686 = vld [vmem:[%s7 + $0xa8] sm:$0xff]
    %v687 = vld [vmem:[%s7 + $0xb0] sm:$0xff]
    %v688 = vld [vmem:[%s7 + $0xb8] sm:$0xff]
    %v689 = vld [vmem:[%s7 + $0xc0] sm:$0xff]
    %v690 = vld [vmem:[%s7 + $0xc8] sm:$0xff]
    %v691 = vld [vmem:[%s7 + $0xd0] sm:$0xff]
    %v692 = vld [vmem:[%s7 + $0xd8] sm:$0xff]
    %v693 = vld [vmem:[%s7 + $0xe0] sm:$0xff]
    %v694 = vld [vmem:[%s7 + $0xe8] sm:$0xff]
    %v695 = vld [vmem:[%s7 + $0xf0] sm:$0xff]
    %v696 = vld [vmem:[%s7 + $0xf8] sm:$0xff]
    %v729 = vunpack.c.l.b16 %v665
    %v730 = vunpack.c.h.b16 %v665
    %v731 = vunpack.c.l.b16 %v666
    %v732 = vunpack.c.h.b16 %v666
    %v733 = vunpack.c.l.b16 %v667
    %v734 = vunpack.c.h.b16 %v667
    %v735 = vunpack.c.l.b16 %v668
    %v736 = vunpack.c.h.b16 %v668
    %v737 = vunpack.c.l.b16 %v669
    %v738 = vunpack.c.h.b16 %v669
    %v739 = vunpack.c.l.b16 %v670
    %v740 = vunpack.c.h.b16 %v670
    %v741 = vunpack.c.l.b16 %v671
    %v742 = vunpack.c.h.b16 %v671
    %v743 = vunpack.c.l.b16 %v672
    %v744 = vunpack.c.h.b16 %v672
    %v745 = vunpack.c.l.b16 %v673
    %v746 = vunpack.c.h.b16 %v673
    %v747 = vunpack.c.l.b16 %v674
    %v748 = vunpack.c.h.b16 %v674
    %v749 = vunpack.c.l.b16 %v675
    %v750 = vunpack.c.h.b16 %v675
    %v751 = vunpack.c.l.b16 %v676
    %v752 = vunpack.c.h.b16 %v676
    %v753 = vunpack.c.l.b16 %v677
    %v754 = vunpack.c.h.b16 %v677
    %v755 = vunpack.c.l.b16 %v678
    %v756 = vunpack.c.h.b16 %v678
    %v757 = vunpack.c.l.b16 %v679
    %v758 = vunpack.c.h.b16 %v679
    %v759 = vunpack.c.l.b16 %v680
    %v760 = vunpack.c.h.b16 %v680
    %v761 = vunpack.c.l.b16 %v681
    %v762 = vunpack.c.h.b16 %v681
    %v763 = vunpack.c.l.b16 %v682
    %v764 = vunpack.c.h.b16 %v682
    %v765 = vunpack.c.l.b16 %v683
    %v766 = vunpack.c.h.b16 %v683
    %v767 = vunpack.c.l.b16 %v684
    %v768 = vunpack.c.h.b16 %v684
    %v769 = vunpack.c.l.b16 %v685
    %v770 = vunpack.c.h.b16 %v685
    %v771 = vunpack.c.l.b16 %v686
    %v772 = vunpack.c.h.b16 %v686
    %v773 = vunpack.c.l.b16 %v687
    %v774 = vunpack.c.h.b16 %v687
    %v775 = vunpack.c.l.b16 %v688
    %v776 = vunpack.c.h.b16 %v688
    %v777 = vunpack.c.l.b16 %v689
    %v778 = vunpack.c.h.b16 %v689
    %v779 = vunpack.c.l.b16 %v690
    %v780 = vunpack.c.h.b16 %v690
    %v781 = vunpack.c.l.b16 %v691
    %v782 = vunpack.c.h.b16 %v691
    %v783 = vunpack.c.l.b16 %v692
    %v784 = vunpack.c.h.b16 %v692
    %v785 = vunpack.c.l.b16 %v693
    %v786 = vunpack.c.h.b16 %v693
    %v787 = vunpack.c.l.b16 %v694
    %v788 = vunpack.c.h.b16 %v694
    %v789 = vunpack.c.l.b16 %v695
    %v790 = vunpack.c.h.b16 %v695
    %v791 = vunpack.c.l.b16 %v696
    %v792 = vunpack.c.h.b16 %v696
    %v793 = vpack.c.b16 %v731, %v729
    %v794 = vpack.c.b16 %v732, %v730
    %v795 = vpack.c.b16 %v735, %v733
    %v796 = vpack.c.b16 %v736, %v734
    %v797 = vpack.c.b16 %v739, %v737
    %v798 = vpack.c.b16 %v740, %v738
    %v799 = vpack.c.b16 %v743, %v741
    %v800 = vpack.c.b16 %v744, %v742
    %v801 = vpack.c.b16 %v747, %v745
    %v802 = vpack.c.b16 %v748, %v746
    %v803 = vpack.c.b16 %v751, %v749
    %v804 = vpack.c.b16 %v752, %v750
    %v805 = vpack.c.b16 %v755, %v753
    %v806 = vpack.c.b16 %v756, %v754
    %v807 = vpack.c.b16 %v759, %v757
    %v808 = vpack.c.b16 %v760, %v758
    %v809 = vpack.c.b16 %v763, %v761
    %v810 = vpack.c.b16 %v764, %v762
    %v811 = vpack.c.b16 %v767, %v765
    %v812 = vpack.c.b16 %v768, %v766
    %v813 = vpack.c.b16 %v771, %v769
    %v814 = vpack.c.b16 %v772, %v770
    %v815 = vpack.c.b16 %v775, %v773
    %v816 = vpack.c.b16 %v776, %v774
    %v817 = vpack.c.b16 %v779, %v777
    %v818 = vpack.c.b16 %v780, %v778
    %v819 = vpack.c.b16 %v783, %v781
    %v820 = vpack.c.b16 %v784, %v782
    %v821 = vpack.c.b16 %v787, %v785
    %v822 = vpack.c.b16 %v788, %v786
    %v823 = vpack.c.b16 %v791, %v789
    %v824 = vpack.c.b16 %v792, %v790
    %857 = vmatprep.subr.bf16.mxu0 %v794
    %858 = vmatpush1.bf16.msra.mxu0 %v793
    %859 = vmatprep.subr.bf16.mxu0 %v796
    %860 = vmatpush1.bf16.msra.mxu0 %v795
    %861 = vmatprep.subr.bf16.mxu0 %v798
    %862 = vmatpush1.bf16.msra.mxu0 %v797
    %863 = vmatprep.subr.bf16.mxu0 %v800
    %864 = vmatpush1.bf16.msra.mxu0 %v799
    %865 = vmatprep.subr.bf16.mxu0 %v802
    %866 = vmatpush1.bf16.msra.mxu0 %v801
    %867 = vmatprep.subr.bf16.mxu0 %v804
    %868 = vmatpush1.bf16.msra.mxu0 %v803
    %869 = vmatprep.subr.bf16.mxu0 %v806
    %870 = vmatpush1.bf16.msra.mxu0 %v805
    %871 = vmatprep.subr.bf16.mxu0 %v808
    %872 = vmatpush1.bf16.msra.mxu0 %v807
    %873 = vmatprep.subr.bf16.mxu0 %v810
    %874 = vmatpush1.bf16.msra.mxu0 %v809
    %875 = vmatprep.subr.bf16.mxu0 %v812
    %876 = vmatpush1.bf16.msra.mxu0 %v811
    %877 = vmatprep.subr.bf16.mxu0 %v814
    %878 = vmatpush1.bf16.msra.mxu0 %v813
    %879 = vmatprep.subr.bf16.mxu0 %v816
    %880 = vmatpush1.bf16.msra.mxu0 %v815
    %881 = vmatprep.subr.bf16.mxu0 %v818
    %882 = vmatpush1.bf16.msra.mxu0 %v817
    %883 = vmatprep.subr.bf16.mxu0 %v820
    %884 = vmatpush1.bf16.msra.mxu0 %v819
    %885 = vmatprep.subr.bf16.mxu0 %v822
    %886 = vmatpush1.bf16.msra.mxu0 %v821
    %887 = vmatprep.subr.bf16.mxu0 %v824
    %888 = vmatpush1.bf16.msra.mxu0 %v823
    %889 = vmatprep.mubr.bf16.mxu0 %v387
    %890 = vmatmul.mubr.bf16.gmra.mrb[0].mxu0 %v386
    %v891 = vpop.f32.mrb[0].mxu0
    %v892 = vadd.f32 0.0, %v891
    %v893 = vpop.f32.mrb[0].mxu0
    %v894 = vadd.f32 0.0, %v893
    %v895 = vpop.f32.mrb[0].mxu0
    %v896 = vpop.f32.mrb[0].mxu0
    %897 = vdwg.mxu0
    %v930 = vunpack.c.l.b16 %v633
    %v931 = vunpack.c.h.b16 %v633
    %v932 = vunpack.c.l.b16 %v634
    %v933 = vunpack.c.h.b16 %v634
    %v934 = vunpack.c.l.b16 %v635
    %v935 = vunpack.c.h.b16 %v635
    %v936 = vunpack.c.l.b16 %v636
    %v937 = vunpack.c.h.b16 %v636
    %v938 = vunpack.c.l.b16 %v637
    %v939 = vunpack.c.h.b16 %v637
    %v940 = vunpack.c.l.b16 %v638
    %v941 = vunpack.c.h.b16 %v638
    %v942 = vunpack.c.l.b16 %v639
    %v943 = vunpack.c.h.b16 %v639
    %v944 = vunpack.c.l.b16 %v640
    %v945 = vunpack.c.h.b16 %v640
    %v946 = vunpack.c.l.b16 %v641
    %v947 = vunpack.c.h.b16 %v641
    %v948 = vunpack.c.l.b16 %v642
    %v949 = vunpack.c.h.b16 %v642
    %v950 = vunpack.c.l.b16 %v643
    %v951 = vunpack.c.h.b16 %v643
    %v952 = vunpack.c.l.b16 %v644
    %v953 = vunpack.c.h.b16 %v644
    %v954 = vunpack.c.l.b16 %v645
    %v955 = vunpack.c.h.b16 %v645
    %v956 = vunpack.c.l.b16 %v646
    %v957 = vunpack.c.h.b16 %v646
    %v958 = vunpack.c.l.b16 %v647
    %v959 = vunpack.c.h.b16 %v647
    %v960 = vunpack.c.l.b16 %v648
    %v961 = vunpack.c.h.b16 %v648
    %v962 = vunpack.c.l.b16 %v649
    %v963 = vunpack.c.h.b16 %v649
    %v964 = vunpack.c.l.b16 %v650
    %v965 = vunpack.c.h.b16 %v650
    %v966 = vunpack.c.l.b16 %v651
    %v967 = vunpack.c.h.b16 %v651
    %v968 = vunpack.c.l.b16 %v652
    %v969 = vunpack.c.h.b16 %v652
    %v970 = vunpack.c.l.b16 %v653
    %v971 = vunpack.c.h.b16 %v653
    %v972 = vunpack.c.l.b16 %v654
    %v973 = vunpack.c.h.b16 %v654
    %v974 = vunpack.c.l.b16 %v655
    %v975 = vunpack.c.h.b16 %v655
    %v976 = vunpack.c.l.b16 %v656
    %v977 = vunpack.c.h.b16 %v656
    %v978 = vunpack.c.l.b16 %v657
    %v979 = vunpack.c.h.b16 %v657
    %v980 = vunpack.c.l.b16 %v658
    %v981 = vunpack.c.h.b16 %v658
    %v982 = vunpack.c.l.b16 %v659
    %v983 = vunpack.c.h.b16 %v659
    %v984 = vunpack.c.l.b16 %v660
    %v985 = vunpack.c.h.b16 %v660
    %v986 = vunpack.c.l.b16 %v661
    %v987 = vunpack.c.h.b16 %v661
    %v988 = vunpack.c.l.b16 %v662
    %v989 = vunpack.c.h.b16 %v662
    %v990 = vunpack.c.l.b16 %v663
    %v991 = vunpack.c.h.b16 %v663
    %v992 = vunpack.c.l.b16 %v664
    %v993 = vunpack.c.h.b16 %v664
    %v994 = vpack.c.b16 %v932, %v930
    %v995 = vpack.c.b16 %v933, %v931
    %v996 = vpack.c.b16 %v936, %v934
    %v997 = vpack.c.b16 %v937, %v935
    %v998 = vpack.c.b16 %v940, %v938
    %v999 = vpack.c.b16 %v941, %v939
    %v1000 = vpack.c.b16 %v944, %v942
    %v1001 = vpack.c.b16 %v945, %v943
    %v1002 = vpack.c.b16 %v948, %v946
    %v1003 = vpack.c.b16 %v949, %v947
    %v1004 = vpack.c.b16 %v952, %v950
    %v1005 = vpack.c.b16 %v953, %v951
    %v1006 = vpack.c.b16 %v956, %v954
    %v1007 = vpack.c.b16 %v957, %v955
    %v1008 = vpack.c.b16 %v960, %v958
    %v1009 = vpack.c.b16 %v961, %v959
    %v1010 = vpack.c.b16 %v964, %v962
    %v1011 = vpack.c.b16 %v965, %v963
    %v1012 = vpack.c.b16 %v968, %v966
    %v1013 = vpack.c.b16 %v969, %v967
    %v1014 = vpack.c.b16 %v972, %v970
    %v1015 = vpack.c.b16 %v973, %v971
    %v1016 = vpack.c.b16 %v976, %v974
    %v1017 = vpack.c.b16 %v977, %v975
    %v1018 = vpack.c.b16 %v980, %v978
    %v1019 = vpack.c.b16 %v981, %v979
    %v1020 = vpack.c.b16 %v984, %v982
    %v1021 = vpack.c.b16 %v985, %v983
    %v1022 = vpack.c.b16 %v988, %v986
    %v1023 = vpack.c.b16 %v989, %v987
    %v1024 = vpack.c.b16 %v992, %v990
    %v1025 = vpack.c.b16 %v993, %v991
    %1058 = vmatprep.subr.bf16.mxu0 %v995
    %1059 = vmatpush1.bf16.msra.mxu0 %v994
    %1060 = vmatprep.subr.bf16.mxu0 %v997
    %1061 = vmatpush1.bf16.msra.mxu0 %v996
    %1062 = vmatprep.subr.bf16.mxu0 %v999
    %1063 = vmatpush1.bf16.msra.mxu0 %v998
    %1064 = vmatprep.subr.bf16.mxu0 %v1001
    %1065 = vmatpush1.bf16.msra.mxu0 %v1000
    %1066 = vmatprep.subr.bf16.mxu0 %v1003
    %1067 = vmatpush1.bf16.msra.mxu0 %v1002
    %1068 = vmatprep.subr.bf16.mxu0 %v1005
    %1069 = vmatpush1.bf16.msra.mxu0 %v1004
    %1070 = vmatprep.subr.bf16.mxu0 %v1007
    %1071 = vmatpush1.bf16.msra.mxu0 %v1006
    %1072 = vmatprep.subr.bf16.mxu0 %v1009
    %1073 = vmatpush1.bf16.msra.mxu0 %v1008
    %1074 = vmatprep.subr.bf16.mxu0 %v1011
    %1075 = vmatpush1.bf16.msra.mxu0 %v1010
    %1076 = vmatprep.subr.bf16.mxu0 %v1013
    %1077 = vmatpush1.bf16.msra.mxu0 %v1012
    %1078 = vmatprep.subr.bf16.mxu0 %v1015
    %1079 = vmatpush1.bf16.msra.mxu0 %v1014
    %1080 = vmatprep.subr.bf16.mxu0 %v1017
    %1081 = vmatpush1.bf16.msra.mxu0 %v1016
    %1082 = vmatprep.subr.bf16.mxu0 %v1019
    %1083 = vmatpush1.bf16.msra.mxu0 %v1018
    %1084 = vmatprep.subr.bf16.mxu0 %v1021
    %1085 = vmatpush1.bf16.msra.mxu0 %v1020
    %1086 = vmatprep.subr.bf16.mxu0 %v1023
    %1087 = vmatpush1.bf16.msra.mxu0 %v1022
    %1088 = vmatprep.subr.bf16.mxu0 %v1025
    %1089 = vmatpush1.bf16.msra.mxu0 %v1024
    %1090 = vmatprep.mubr.bf16.mxu0 %v385
    %1091 = vmatmul.mubr.bf16.gmra.mrb[0].mxu0 %v384
    %v1092 = vpop.f32.mrb[0].mxu0
    %v1093 = vadd.f32 %v892, %v1092
    %v1094 = vpop.f32.mrb[0].mxu0
    %v1095 = vadd.f32 %v894, %v1094
    %v1096 = vpop.f32.mrb[0].mxu0
    %v1097 = vpop.f32.mrb[0].mxu0
    %1098 = vdwg.mxu0
    %v1099 = vld [vmem:[#allocation4] sm:$0x3]
    %v1101 = vlaneseq
    %v1102 = vshrl.u32 %v1101, 7
    %v1103 = vsub.s32 0, %v1102
    %v1104 = vrot.slane %v1099, %v1103
    %v1105 = vlaneseq
    %v1106 = vshrl.u32 %v1105, 7
    %v1107 = vsub.s32 1, %v1106
    %v1108 = vrot.slane %v1099, %v1107
    %v1111 = vadd.f32 %v1093, %v1104
    %v1112 = vadd.f32 %v1095, %v1108
    %v1113 = vmax.f32 %v627, 0.0
    %v1114 = vmax.f32 %v629, 0.0
    %v1115 = vld [vmem:[%s10] ss:$2 sm:$0x3]
    %v1117 = vlaneseq
    %v1118 = vshrl.u32 %v1117, 7
    %v1119 = vsub.s32 0, %v1118
    %v1120 = vrot.slane %v1115, %v1119
    %v1121 = vlaneseq
    %v1122 = vshrl.u32 %v1121, 7
    %v1123 = vsub.s32 1, %v1122
    %v1124 = vrot.slane %v1115, %v1123
    %v1127 = vmul.f32 %v1113, %v1120
    %v1128 = vmul.f32 %v1114, %v1124
    %s1129 = scalar_lea.vmem %s10, 1
    %v1130 = vld [vmem:[%s1129] ss:$2 sm:$0x3]
    %v1132 = vlaneseq
    %v1133 = vshrl.u32 %v1132, 7
    %v1134 = vsub.s32 0, %v1133
    %v1135 = vrot.slane %v1130, %v1134
    %v1136 = vlaneseq
    %v1137 = vshrl.u32 %v1136, 7
    %v1138 = vsub.s32 1, %v1137
    %v1139 = vrot.slane %v1130, %v1138
    %v1142 = vadd.f32 %v1127, %v1135
    %v1143 = vadd.f32 %v1128, %v1139
    %v1144 = vmax.f32 %v1111, 0.0
    %v1145 = vmax.f32 %v1112, 0.0
    %v1146 = vld [vmem:[%s11] ss:$2 sm:$0x3]
    %v1148 = vlaneseq
    %v1149 = vshrl.u32 %v1148, 7
    %v1150 = vsub.s32 0, %v1149
    %v1151 = vrot.slane %v1146, %v1150
    %v1152 = vlaneseq
    %v1153 = vshrl.u32 %v1152, 7
    %v1154 = vsub.s32 1, %v1153
    %v1155 = vrot.slane %v1146, %v1154
    %v1158 = vmul.f32 %v1144, %v1151
    %v1159 = vmul.f32 %v1145, %v1155
    %s1160 = scalar_lea.vmem %s11, 1
    %v1161 = vld [vmem:[%s1160] ss:$2 sm:$0x3]
    %v1163 = vlaneseq
    %v1164 = vshrl.u32 %v1163, 7
    %v1165 = vsub.s32 0, %v1164
    %v1166 = vrot.slane %v1161, %v1165
    %v1167 = vlaneseq
    %v1168 = vshrl.u32 %v1167, 7
    %v1169 = vsub.s32 1, %v1168
    %v1170 = vrot.slane %v1161, %v1169
    %v1173 = vadd.f32 %v1158, %v1166
    %v1174 = vadd.f32 %v1159, %v1170
    %v1178 = vrot.slane %v1142, 1
    %v1179 = vrot.slane -inf, 1
    %v1180 = vsel %vm297, %v1178, %v1179
    %v1181 = vrot.slane %v1143, 1
    %v1182 = vsel %vm297, %v1181, %v1179
    %v1185 = vmax.f32 %v1142, %v1180
    %v1186 = vmax.f32 %v1143, %v1182
    %v1189 = vrot.slane %v1173, 1
    %v1190 = vsel %vm297, %v1189, %v1179
    %v1191 = vrot.slane %v1174, 1
    %v1192 = vsel %vm297, %v1191, %v1179
    %v1195 = vmax.f32 %v1173, %v1190
    %v1196 = vmax.f32 %v1174, %v1192
    %v1197 = vpack.c.bf16 %v1185, %v1185
    %v1198 = vpack.c.bf16 %v1186, %v1186
    %v1199 = vld [vmem:[%s12] sm:$0xf]
    %v1200 = vld [vmem:[%s12 + $0x4] sm:$0xf]
    %v1201 = vld [vmem:[%s12 + $0x8] sm:$0xf]
    %v1202 = vld [vmem:[%s12 + $0xc] sm:$0xf]
    %v1203 = vld [vmem:[%s12 + $0x10] sm:$0xf]
    %v1204 = vld [vmem:[%s12 + $0x14] sm:$0xf]
    %v1205 = vld [vmem:[%s12 + $0x18] sm:$0xf]
    %v1206 = vld [vmem:[%s12 + $0x1c] sm:$0xf]
    %v1207 = vld [vmem:[%s12 + $0x20] sm:$0xf]
    %v1208 = vld [vmem:[%s12 + $0x24] sm:$0xf]
    %v1209 = vld [vmem:[%s12 + $0x28] sm:$0xf]
    %v1210 = vld [vmem:[%s12 + $0x2c] sm:$0xf]
    %v1211 = vld [vmem:[%s12 + $0x30] sm:$0xf]
    %v1212 = vld [vmem:[%s12 + $0x34] sm:$0xf]
    %v1213 = vld [vmem:[%s12 + $0x38] sm:$0xf]
    %v1214 = vld [vmem:[%s12 + $0x3c] sm:$0xf]
    %v1215 = vld [vmem:[%s12 + $0x40] sm:$0xf]
    %v1216 = vld [vmem:[%s12 + $0x44] sm:$0xf]
    %v1217 = vld [vmem:[%s12 + $0x48] sm:$0xf]
    %v1218 = vld [vmem:[%s12 + $0x4c] sm:$0xf]
    %v1219 = vld [vmem:[%s12 + $0x50] sm:$0xf]
    %v1220 = vld [vmem:[%s12 + $0x54] sm:$0xf]
    %v1221 = vld [vmem:[%s12 + $0x58] sm:$0xf]
    %v1222 = vld [vmem:[%s12 + $0x5c] sm:$0xf]
    %v1223 = vld [vmem:[%s12 + $0x60] sm:$0xf]
    %v1224 = vld [vmem:[%s12 + $0x64] sm:$0xf]
    %v1225 = vld [vmem:[%s12 + $0x68] sm:$0xf]
    %v1226 = vld [vmem:[%s12 + $0x6c] sm:$0xf]
    %v1227 = vld [vmem:[%s12 + $0x70] sm:$0xf]
    %v1228 = vld [vmem:[%s12 + $0x74] sm:$0xf]
    %v1229 = vld [vmem:[%s12 + $0x78] sm:$0xf]
    %v1230 = vld [vmem:[%s12 + $0x7c] sm:$0xf]
    %v1231 = vpack.c.bf16 %v1195, %v1195
    %v1232 = vpack.c.bf16 %v1196, %v1196
    %v1233 = vld [vmem:[%s13] sm:$0xf]
    %v1234 = vld [vmem:[%s13 + $0x4] sm:$0xf]
    %v1235 = vld [vmem:[%s13 + $0x8] sm:$0xf]
    %v1236 = vld [vmem:[%s13 + $0xc] sm:$0xf]
    %v1237 = vld [vmem:[%s13 + $0x10] sm:$0xf]
    %v1238 = vld [vmem:[%s13 + $0x14] sm:$0xf]
    %v1239 = vld [vmem:[%s13 + $0x18] sm:$0xf]
    %v1240 = vld [vmem:[%s13 + $0x1c] sm:$0xf]
    %v1241 = vld [vmem:[%s13 + $0x20] sm:$0xf]
    %v1242 = vld [vmem:[%s13 + $0x24] sm:$0xf]
    %v1243 = vld [vmem:[%s13 + $0x28] sm:$0xf]
    %v1244 = vld [vmem:[%s13 + $0x2c] sm:$0xf]
    %v1245 = vld [vmem:[%s13 + $0x30] sm:$0xf]
    %v1246 = vld [vmem:[%s13 + $0x34] sm:$0xf]
    %v1247 = vld [vmem:[%s13 + $0x38] sm:$0xf]
    %v1248 = vld [vmem:[%s13 + $0x3c] sm:$0xf]
    %v1249 = vld [vmem:[%s13 + $0x40] sm:$0xf]
    %v1250 = vld [vmem:[%s13 + $0x44] sm:$0xf]
    %v1251 = vld [vmem:[%s13 + $0x48] sm:$0xf]
    %v1252 = vld [vmem:[%s13 + $0x4c] sm:$0xf]
    %v1253 = vld [vmem:[%s13 + $0x50] sm:$0xf]
    %v1254 = vld [vmem:[%s13 + $0x54] sm:$0xf]
    %v1255 = vld [vmem:[%s13 + $0x58] sm:$0xf]
    %v1256 = vld [vmem:[%s13 + $0x5c] sm:$0xf]
    %v1257 = vld [vmem:[%s13 + $0x60] sm:$0xf]
    %v1258 = vld [vmem:[%s13 + $0x64] sm:$0xf]
    %v1259 = vld [vmem:[%s13 + $0x68] sm:$0xf]
    %v1260 = vld [vmem:[%s13 + $0x6c] sm:$0xf]
    %v1261 = vld [vmem:[%s13 + $0x70] sm:$0xf]
    %v1262 = vld [vmem:[%s13 + $0x74] sm:$0xf]
    %v1263 = vld [vmem:[%s13 + $0x78] sm:$0xf]
    %v1264 = vld [vmem:[%s13 + $0x7c] sm:$0xf]
    %v1297 = vunpack.c.l.b16 %v1233
    %v1298 = vunpack.c.l.b16 %v1234
    %v1299 = vunpack.c.l.b16 %v1235
    %v1300 = vunpack.c.l.b16 %v1236
    %v1301 = vunpack.c.l.b16 %v1237
    %v1302 = vunpack.c.l.b16 %v1238
    %v1303 = vunpack.c.l.b16 %v1239
    %v1304 = vunpack.c.l.b16 %v1240
    %v1305 = vunpack.c.l.b16 %v1241
    %v1306 = vunpack.c.l.b16 %v1242
    %v1307 = vunpack.c.l.b16 %v1243
    %v1308 = vunpack.c.l.b16 %v1244
    %v1309 = vunpack.c.l.b16 %v1245
    %v1310 = vunpack.c.l.b16 %v1246
    %v1311 = vunpack.c.l.b16 %v1247
    %v1312 = vunpack.c.l.b16 %v1248
    %v1313 = vunpack.c.l.b16 %v1249
    %v1314 = vunpack.c.l.b16 %v1250
    %v1315 = vunpack.c.l.b16 %v1251
    %v1316 = vunpack.c.l.b16 %v1252
    %v1317 = vunpack.c.l.b16 %v1253
    %v1318 = vunpack.c.l.b16 %v1254
    %v1319 = vunpack.c.l.b16 %v1255
    %v1320 = vunpack.c.l.b16 %v1256
    %v1321 = vunpack.c.l.b16 %v1257
    %v1322 = vunpack.c.l.b16 %v1258
    %v1323 = vunpack.c.l.b16 %v1259
    %v1324 = vunpack.c.l.b16 %v1260
    %v1325 = vunpack.c.l.b16 %v1261
    %v1326 = vunpack.c.l.b16 %v1262
    %v1327 = vunpack.c.l.b16 %v1263
    %v1328 = vunpack.c.l.b16 %v1264
    %v1329 = vpack.c.b16 %v1298, %v1297
    %v1330 = vpack.c.b16 %v1300, %v1299
    %v1331 = vpack.c.b16 %v1302, %v1301
    %v1332 = vpack.c.b16 %v1304, %v1303
    %v1333 = vpack.c.b16 %v1306, %v1305
    %v1334 = vpack.c.b16 %v1308, %v1307
    %v1335 = vpack.c.b16 %v1310, %v1309
    %v1336 = vpack.c.b16 %v1312, %v1311
    %v1337 = vpack.c.b16 %v1314, %v1313
    %v1338 = vpack.c.b16 %v1316, %v1315
    %v1339 = vpack.c.b16 %v1318, %v1317
    %v1340 = vpack.c.b16 %v1320, %v1319
    %v1341 = vpack.c.b16 %v1322, %v1321
    %v1342 = vpack.c.b16 %v1324, %v1323
    %v1343 = vpack.c.b16 %v1326, %v1325
    %v1344 = vpack.c.b16 %v1328, %v1327
    %1361 = vmatprep.subr.bf16.mxu0 0
    %1362 = vmatpush1.bf16.msra.mxu0 %v1329
    %1363 = vmatprep.subr.bf16.mxu0 0
    %1364 = vmatpush1.bf16.msra.mxu0 %v1330
    %1365 = vmatprep.subr.bf16.mxu0 0
    %1366 = vmatpush1.bf16.msra.mxu0 %v1331
    %1367 = vmatprep.subr.bf16.mxu0 0
    %1368 = vmatpush1.bf16.msra.mxu0 %v1332
    %1369 = vmatprep.subr.bf16.mxu0 0
    %1370 = vmatpush1.bf16.msra.mxu0 %v1333
    %1371 = vmatprep.subr.bf16.mxu0 0
    %1372 = vmatpush1.bf16.msra.mxu0 %v1334
    %1373 = vmatprep.subr.bf16.mxu0 0
    %1374 = vmatpush1.bf16.msra.mxu0 %v1335
    %1375 = vmatprep.subr.bf16.mxu0 0
    %1376 = vmatpush1.bf16.msra.mxu0 %v1336
    %1377 = vmatprep.subr.bf16.mxu0 0
    %1378 = vmatpush1.bf16.msra.mxu0 %v1337
    %1379 = vmatprep.subr.bf16.mxu0 0
    %1380 = vmatpush1.bf16.msra.mxu0 %v1338
    %1381 = vmatprep.subr.bf16.mxu0 0
    %1382 = vmatpush1.bf16.msra.mxu0 %v1339
    %1383 = vmatprep.subr.bf16.mxu0 0
    %1384 = vmatpush1.bf16.msra.mxu0 %v1340
    %1385 = vmatprep.subr.bf16.mxu0 0
    %1386 = vmatpush1.bf16.msra.mxu0 %v1341
    %1387 = vmatprep.subr.bf16.mxu0 0
    %1388 = vmatpush1.bf16.msra.mxu0 %v1342
    %1389 = vmatprep.subr.bf16.mxu0 0
    %1390 = vmatpush1.bf16.msra.mxu0 %v1343
    %1391 = vmatprep.subr.bf16.mxu0 0
    %1392 = vmatpush1.bf16.msra.mxu0 %v1344
    %1393 = vmatprep.mubr.bf16.mxu0 %v1232
    %1394 = vmatmul.mubr.bf16.gmra.mrb[0].mxu0 %v1231
    %v1395 = vpop.f32.mrb[0].mxu0
    %v1396 = vadd.f32 0.0, %v1395
    %v1397 = vpop.f32.mrb[0].mxu0
    %v1398 = vpop.f32.mrb[0].mxu0
    %v1399 = vpop.f32.mrb[0].mxu0
    %1400 = vdwg.mxu0
    %v1433 = vunpack.c.l.b16 %v1199
    %v1434 = vunpack.c.l.b16 %v1200
    %v1435 = vunpack.c.l.b16 %v1201
    %v1436 = vunpack.c.l.b16 %v1202
    %v1437 = vunpack.c.l.b16 %v1203
    %v1438 = vunpack.c.l.b16 %v1204
    %v1439 = vunpack.c.l.b16 %v1205
    %v1440 = vunpack.c.l.b16 %v1206
    %v1441 = vunpack.c.l.b16 %v1207
    %v1442 = vunpack.c.l.b16 %v1208
    %v1443 = vunpack.c.l.b16 %v1209
    %v1444 = vunpack.c.l.b16 %v1210
    %v1445 = vunpack.c.l.b16 %v1211
    %v1446 = vunpack.c.l.b16 %v1212
    %v1447 = vunpack.c.l.b16 %v1213
    %v1448 = vunpack.c.l.b16 %v1214
    %v1449 = vunpack.c.l.b16 %v1215
    %v1450 = vunpack.c.l.b16 %v1216
    %v1451 = vunpack.c.l.b16 %v1217
    %v1452 = vunpack.c.l.b16 %v1218
    %v1453 = vunpack.c.l.b16 %v1219
    %v1454 = vunpack.c.l.b16 %v1220
    %v1455 = vunpack.c.l.b16 %v1221
    %v1456 = vunpack.c.l.b16 %v1222
    %v1457 = vunpack.c.l.b16 %v1223
    %v1458 = vunpack.c.l.b16 %v1224
    %v1459 = vunpack.c.l.b16 %v1225
    %v1460 = vunpack.c.l.b16 %v1226
    %v1461 = vunpack.c.l.b16 %v1227
    %v1462 = vunpack.c.l.b16 %v1228
    %v1463 = vunpack.c.l.b16 %v1229
    %v1464 = vunpack.c.l.b16 %v1230
    %v1465 = vpack.c.b16 %v1434, %v1433
    %v1466 = vpack.c.b16 %v1436, %v1435
    %v1467 = vpack.c.b16 %v1438, %v1437
    %v1468 = vpack.c.b16 %v1440, %v1439
    %v1469 = vpack.c.b16 %v1442, %v1441
    %v1470 = vpack.c.b16 %v1444, %v1443
    %v1471 = vpack.c.b16 %v1446, %v1445
    %v1472 = vpack.c.b16 %v1448, %v1447
    %v1473 = vpack.c.b16 %v1450, %v1449
    %v1474 = vpack.c.b16 %v1452, %v1451
    %v1475 = vpack.c.b16 %v1454, %v1453
    %v1476 = vpack.c.b16 %v1456, %v1455
    %v1477 = vpack.c.b16 %v1458, %v1457
    %v1478 = vpack.c.b16 %v1460, %v1459
    %v1479 = vpack.c.b16 %v1462, %v1461
    %v1480 = vpack.c.b16 %v1464, %v1463
    %1497 = vmatprep.subr.bf16.mxu0 0
    %1498 = vmatpush1.bf16.msra.mxu0 %v1465
    %1499 = vmatprep.subr.bf16.mxu0 0
    %1500 = vmatpush1.bf16.msra.mxu0 %v1466
    %1501 = vmatprep.subr.bf16.mxu0 0
    %1502 = vmatpush1.bf16.msra.mxu0 %v1467
    %1503 = vmatprep.subr.bf16.mxu0 0
    %1504 = vmatpush1.bf16.msra.mxu0 %v1468
    %1505 = vmatprep.subr.bf16.mxu0 0
    %1506 = vmatpush1.bf16.msra.mxu0 %v1469
    %1507 = vmatprep.subr.bf16.mxu0 0
    %1508 = vmatpush1.bf16.msra.mxu0 %v1470
    %1509 = vmatprep.subr.bf16.mxu0 0
    %1510 = vmatpush1.bf16.msra.mxu0 %v1471
    %1511 = vmatprep.subr.bf16.mxu0 0
    %1512 = vmatpush1.bf16.msra.mxu0 %v1472
    %1513 = vmatprep.subr.bf16.mxu0 0
    %1514 = vmatpush1.bf16.msra.mxu0 %v1473
    %1515 = vmatprep.subr.bf16.mxu0 0
    %1516 = vmatpush1.bf16.msra.mxu0 %v1474
    %1517 = vmatprep.subr.bf16.mxu0 0
    %1518 = vmatpush1.bf16.msra.mxu0 %v1475
    %1519 = vmatprep.subr.bf16.mxu0 0
    %1520 = vmatpush1.bf16.msra.mxu0 %v1476
    %1521 = vmatprep.subr.bf16.mxu0 0
    %1522 = vmatpush1.bf16.msra.mxu0 %v1477
    %1523 = vmatprep.subr.bf16.mxu0 0
    %1524 = vmatpush1.bf16.msra.mxu0 %v1478
    %1525 = vmatprep.subr.bf16.mxu0 0
    %1526 = vmatpush1.bf16.msra.mxu0 %v1479
    %1527 = vmatprep.subr.bf16.mxu0 0
    %1528 = vmatpush1.bf16.msra.mxu0 %v1480
    %1529 = vmatprep.mubr.bf16.mxu0 %v1198
    %1530 = vmatmul.mubr.bf16.gmra.mrb[0].mxu0 %v1197
    %v1531 = vpop.f32.mrb[0].mxu0
    %v1532 = vadd.f32 %v1396, %v1531
    %v1533 = vpop.f32.mrb[0].mxu0
    %v1534 = vpop.f32.mrb[0].mxu0
    %v1535 = vpop.f32.mrb[0].mxu0
    %1536 = vdwg.mxu0
    %v1537 = vpack.c.bf16 0.0, %v1185
    %v1538 = vpack.c.bf16 0.0, %v1186
    %s1539 = scalar_lea.vmem %s12, 128
    %v1540 = vld [vmem:[%s1539] sm:$0xf]
    %v1541 = vld [vmem:[%s1539 + $0x4] sm:$0xf]
    %v1542 = vld [vmem:[%s1539 + $0x8] sm:$0xf]
    %v1543 = vld [vmem:[%s1539 + $0xc] sm:$0xf]
    %v1544 = vld [vmem:[%s1539 + $0x10] sm:$0xf]
    %v1545 = vld [vmem:[%s1539 + $0x14] sm:$0xf]
    %v1546 = vld [vmem:[%s1539 + $0x18] sm:$0xf]
    %v1547 = vld [vmem:[%s1539 + $0x1c] sm:$0xf]
    %v1548 = vld [vmem:[%s1539 + $0x20] sm:$0xf]
    %v1549 = vld [vmem:[%s1539 + $0x24] sm:$0xf]
    %v1550 = vld [vmem:[%s1539 + $0x28] sm:$0xf]
    %v1551 = vld [vmem:[%s1539 + $0x2c] sm:$0xf]
    %v1552 = vld [vmem:[%s1539 + $0x30] sm:$0xf]
    %v1553 = vld [vmem:[%s1539 + $0x34] sm:$0xf]
    %v1554 = vld [vmem:[%s1539 + $0x38] sm:$0xf]
    %v1555 = vld [vmem:[%s1539 + $0x3c] sm:$0xf]
    %v1556 = vld [vmem:[%s1539 + $0x40] sm:$0xf]
    %v1557 = vld [vmem:[%s1539 + $0x44] sm:$0xf]
    %v1558 = vld [vmem:[%s1539 + $0x48] sm:$0xf]
    %v1559 = vld [vmem:[%s1539 + $0x4c] sm:$0xf]
    %v1560 = vld [vmem:[%s1539 + $0x50] sm:$0xf]
    %v1561 = vld [vmem:[%s1539 + $0x54] sm:$0xf]
    %v1562 = vld [vmem:[%s1539 + $0x58] sm:$0xf]
    %v1563 = vld [vmem:[%s1539 + $0x5c] sm:$0xf]
    %v1564 = vld [vmem:[%s1539 + $0x60] sm:$0xf]
    %v1565 = vld [vmem:[%s1539 + $0x64] sm:$0xf]
    %v1566 = vld [vmem:[%s1539 + $0x68] sm:$0xf]
    %v1567 = vld [vmem:[%s1539 + $0x6c] sm:$0xf]
    %v1568 = vld [vmem:[%s1539 + $0x70] sm:$0xf]
    %v1569 = vld [vmem:[%s1539 + $0x74] sm:$0xf]
    %v1570 = vld [vmem:[%s1539 + $0x78] sm:$0xf]
    %v1571 = vld [vmem:[%s1539 + $0x7c] sm:$0xf]
    %v1573 = vshrl.u32 %v1537, 16
    %v1575 = vshll.u32 %v1537, 16
    %v1577 = vrot.slane %v1575, 1
    %v1578 = vor.u32 %v1573, %v1577
    %v1580 = vshrl.u32 %v1538, 16
    %v1582 = vshll.u32 %v1538, 16
    %v1584 = vrot.slane %v1582, 1
    %v1585 = vor.u32 %v1580, %v1584
    %v1620 = vunpack.c.l.b16 %v1540
    %v1621 = vunpack.c.l.b16 %v1541
    %v1622 = vunpack.c.l.b16 %v1542
    %v1623 = vunpack.c.l.b16 %v1543
    %v1624 = vunpack.c.l.b16 %v1544
    %v1625 = vunpack.c.l.b16 %v1545
    %v1626 = vunpack.c.l.b16 %v1546
    %v1627 = vunpack.c.l.b16 %v1547
    %v1628 = vunpack.c.l.b16 %v1548
    %v1629 = vunpack.c.l.b16 %v1549
    %v1630 = vunpack.c.l.b16 %v1550
    %v1631 = vunpack.c.l.b16 %v1551
    %v1632 = vunpack.c.l.b16 %v1552
    %v1633 = vunpack.c.l.b16 %v1553
    %v1634 = vunpack.c.l.b16 %v1554
    %v1635 = vunpack.c.l.b16 %v1555
    %v1636 = vunpack.c.l.b16 %v1556
    %v1637 = vunpack.c.l.b16 %v1557
    %v1638 = vunpack.c.l.b16 %v1558
    %v1639 = vunpack.c.l.b16 %v1559
    %v1640 = vunpack.c.l.b16 %v1560
    %v1641 = vunpack.c.l.b16 %v1561
    %v1642 = vunpack.c.l.b16 %v1562
    %v1643 = vunpack.c.l.b16 %v1563
    %v1644 = vunpack.c.l.b16 %v1564
    %v1645 = vunpack.c.l.b16 %v1565
    %v1646 = vunpack.c.l.b16 %v1566
    %v1647 = vunpack.c.l.b16 %v1567
    %v1648 = vunpack.c.l.b16 %v1568
    %v1649 = vunpack.c.l.b16 %v1569
    %v1650 = vunpack.c.l.b16 %v1570
    %v1651 = vunpack.c.l.b16 %v1571
    %v1652 = vpack.c.b16 %v1621, %v1620
    %v1653 = vpack.c.b16 %v1623, %v1622
    %v1654 = vpack.c.b16 %v1625, %v1624
    %v1655 = vpack.c.b16 %v1627, %v1626
    %v1656 = vpack.c.b16 %v1629, %v1628
    %v1657 = vpack.c.b16 %v1631, %v1630
    %v1658 = vpack.c.b16 %v1633, %v1632
    %v1659 = vpack.c.b16 %v1635, %v1634
    %v1660 = vpack.c.b16 %v1637, %v1636
    %v1661 = vpack.c.b16 %v1639, %v1638
    %v1662 = vpack.c.b16 %v1641, %v1640
    %v1663 = vpack.c.b16 %v1643, %v1642
    %v1664 = vpack.c.b16 %v1645, %v1644
    %v1665 = vpack.c.b16 %v1647, %v1646
    %v1666 = vpack.c.b16 %v1649, %v1648
    %v1667 = vpack.c.b16 %v1651, %v1650
    %1684 = vmatprep.subr.bf16.mxu0 0
    %1685 = vmatpush1.bf16.msra.mxu0 %v1652
    %1686 = vmatprep.subr.bf16.mxu0 0
    %1687 = vmatpush1.bf16.msra.mxu0 %v1653
    %1688 = vmatprep.subr.bf16.mxu0 0
    %1689 = vmatpush1.bf16.msra.mxu0 %v1654
    %1690 = vmatprep.subr.bf16.mxu0 0
    %1691 = vmatpush1.bf16.msra.mxu0 %v1655
    %1692 = vmatprep.subr.bf16.mxu0 0
    %1693 = vmatpush1.bf16.msra.mxu0 %v1656
    %1694 = vmatprep.subr.bf16.mxu0 0
    %1695 = vmatpush1.bf16.msra.mxu0 %v1657
    %1696 = vmatprep.subr.bf16.mxu0 0
    %1697 = vmatpush1.bf16.msra.mxu0 %v1658
    %1698 = vmatprep.subr.bf16.mxu0 0
    %1699 = vmatpush1.bf16.msra.mxu0 %v1659
    %1700 = vmatprep.subr.bf16.mxu0 0
    %1701 = vmatpush1.bf16.msra.mxu0 %v1660
    %1702 = vmatprep.subr.bf16.mxu0 0
    %1703 = vmatpush1.bf16.msra.mxu0 %v1661
    %1704 = vmatprep.subr.bf16.mxu0 0
    %1705 = vmatpush1.bf16.msra.mxu0 %v1662
    %1706 = vmatprep.subr.bf16.mxu0 0
    %1707 = vmatpush1.bf16.msra.mxu0 %v1663
    %1708 = vmatprep.subr.bf16.mxu0 0
    %1709 = vmatpush1.bf16.msra.mxu0 %v1664
    %1710 = vmatprep.subr.bf16.mxu0 0
    %1711 = vmatpush1.bf16.msra.mxu0 %v1665
    %1712 = vmatprep.subr.bf16.mxu0 0
    %1713 = vmatpush1.bf16.msra.mxu0 %v1666
    %1714 = vmatprep.subr.bf16.mxu0 0
    %1715 = vmatpush1.bf16.msra.mxu0 %v1667
    %1716 = vmatprep.mubr.bf16.mxu0 %v1585
    %1717 = vmatmul.mubr.bf16.gmra.mrb[0].mxu0 %v1578
    %v1718 = vpop.f32.mrb[0].mxu0
    %v1719 = vadd.f32 0.0, %v1718
    %v1720 = vpop.f32.mrb[0].mxu0
    %v1721 = vpop.f32.mrb[0].mxu0
    %v1722 = vpop.f32.mrb[0].mxu0
    %1723 = vdwg.mxu0
    %v1724 = vadd.f32 %v1532, %v1719
    %v1725 = vpack.c.bf16 0.0, %v1195
    %v1726 = vpack.c.bf16 0.0, %v1196
    %s1727 = scalar_lea.vmem %s13, 128
    %v1728 = vld [vmem:[%s1727] sm:$0xf]
    %v1729 = vld [vmem:[%s1727 + $0x4] sm:$0xf]
    %v1730 = vld [vmem:[%s1727 + $0x8] sm:$0xf]
    %v1731 = vld [vmem:[%s1727 + $0xc] sm:$0xf]
    %v1732 = vld [vmem:[%s1727 + $0x10] sm:$0xf]
    %v1733 = vld [vmem:[%s1727 + $0x14] sm:$0xf]
    %v1734 = vld [vmem:[%s1727 + $0x18] sm:$0xf]
    %v1735 = vld [vmem:[%s1727 + $0x1c] sm:$0xf]
    %v1736 = vld [vmem:[%s1727 + $0x20] sm:$0xf]
    %v1737 = vld [vmem:[%s1727 + $0x24] sm:$0xf]
    %v1738 = vld [vmem:[%s1727 + $0x28] sm:$0xf]
    %v1739 = vld [vmem:[%s1727 + $0x2c] sm:$0xf]
    %v1740 = vld [vmem:[%s1727 + $0x30] sm:$0xf]
    %v1741 = vld [vmem:[%s1727 + $0x34] sm:$0xf]
    %v1742 = vld [vmem:[%s1727 + $0x38] sm:$0xf]
    %v1743 = vld [vmem:[%s1727 + $0x3c] sm:$0xf]
    %v1744 = vld [vmem:[%s1727 + $0x40] sm:$0xf]
    %v1745 = vld [vmem:[%s1727 + $0x44] sm:$0xf]
    %v1746 = vld [vmem:[%s1727 + $0x48] sm:$0xf]
    %v1747 = vld [vmem:[%s1727 + $0x4c] sm:$0xf]
    %v1748 = vld [vmem:[%s1727 + $0x50] sm:$0xf]
    %v1749 = vld [vmem:[%s1727 + $0x54] sm:$0xf]
    %v1750 = vld [vmem:[%s1727 + $0x58] sm:$0xf]
    %v1751 = vld [vmem:[%s1727 + $0x5c] sm:$0xf]
    %v1752 = vld [vmem:[%s1727 + $0x60] sm:$0xf]
    %v1753 = vld [vmem:[%s1727 + $0x64] sm:$0xf]
    %v1754 = vld [vmem:[%s1727 + $0x68] sm:$0xf]
    %v1755 = vld [vmem:[%s1727 + $0x6c] sm:$0xf]
    %v1756 = vld [vmem:[%s1727 + $0x70] sm:$0xf]
    %v1757 = vld [vmem:[%s1727 + $0x74] sm:$0xf]
    %v1758 = vld [vmem:[%s1727 + $0x78] sm:$0xf]
    %v1759 = vld [vmem:[%s1727 + $0x7c] sm:$0xf]
    %v1761 = vshrl.u32 %v1725, 16
    %v1763 = vshll.u32 %v1725, 16
    %v1765 = vrot.slane %v1763, 1
    %v1766 = vor.u32 %v1761, %v1765
    %v1768 = vshrl.u32 %v1726, 16
    %v1770 = vshll.u32 %v1726, 16
    %v1772 = vrot.slane %v1770, 1
    %v1773 = vor.u32 %v1768, %v1772
    %v1808 = vunpack.c.l.b16 %v1728
    %v1809 = vunpack.c.l.b16 %v1729
    %v1810 = vunpack.c.l.b16 %v1730
    %v1811 = vunpack.c.l.b16 %v1731
    %v1812 = vunpack.c.l.b16 %v1732
    %v1813 = vunpack.c.l.b16 %v1733
    %v1814 = vunpack.c.l.b16 %v1734
    %v1815 = vunpack.c.l.b16 %v1735
    %v1816 = vunpack.c.l.b16 %v1736
    %v1817 = vunpack.c.l.b16 %v1737
    %v1818 = vunpack.c.l.b16 %v1738
    %v1819 = vunpack.c.l.b16 %v1739
    %v1820 = vunpack.c.l.b16 %v1740
    %v1821 = vunpack.c.l.b16 %v1741
    %v1822 = vunpack.c.l.b16 %v1742
    %v1823 = vunpack.c.l.b16 %v1743
    %v1824 = vunpack.c.l.b16 %v1744
    %v1825 = vunpack.c.l.b16 %v1745
    %v1826 = vunpack.c.l.b16 %v1746
    %v1827 = vunpack.c.l.b16 %v1747
    %v1828 = vunpack.c.l.b16 %v1748
    %v1829 = vunpack.c.l.b16 %v1749
    %v1830 = vunpack.c.l.b16 %v1750
    %v1831 = vunpack.c.l.b16 %v1751
    %v1832 = vunpack.c.l.b16 %v1752
    %v1833 = vunpack.c.l.b16 %v1753
    %v1834 = vunpack.c.l.b16 %v1754
    %v1835 = vunpack.c.l.b16 %v1755
    %v1836 = vunpack.c.l.b16 %v1756
    %v1837 = vunpack.c.l.b16 %v1757
    %v1838 = vunpack.c.l.b16 %v1758
    %v1839 = vunpack.c.l.b16 %v1759
    %v1840 = vpack.c.b16 %v1809, %v1808
    %v1841 = vpack.c.b16 %v1811, %v1810
    %v1842 = vpack.c.b16 %v1813, %v1812
    %v1843 = vpack.c.b16 %v1815, %v1814
    %v1844 = vpack.c.b16 %v1817, %v1816
    %v1845 = vpack.c.b16 %v1819, %v1818
    %v1846 = vpack.c.b16 %v1821, %v1820
    %v1847 = vpack.c.b16 %v1823, %v1822
    %v1848 = vpack.c.b16 %v1825, %v1824
    %v1849 = vpack.c.b16 %v1827, %v1826
    %v1850 = vpack.c.b16 %v1829, %v1828
    %v1851 = vpack.c.b16 %v1831, %v1830
    %v1852 = vpack.c.b16 %v1833, %v1832
    %v1853 = vpack.c.b16 %v1835, %v1834
    %v1854 = vpack.c.b16 %v1837, %v1836
    %v1855 = vpack.c.b16 %v1839, %v1838
    %1872 = vmatprep.subr.bf16.mxu0 0
    %1873 = vmatpush1.bf16.msra.mxu0 %v1840
    %1874 = vmatprep.subr.bf16.mxu0 0
    %1875 = vmatpush1.bf16.msra.mxu0 %v1841
    %1876 = vmatprep.subr.bf16.mxu0 0
    %1877 = vmatpush1.bf16.msra.mxu0 %v1842
    %1878 = vmatprep.subr.bf16.mxu0 0
    %1879 = vmatpush1.bf16.msra.mxu0 %v1843
    %1880 = vmatprep.subr.bf16.mxu0 0
    %1881 = vmatpush1.bf16.msra.mxu0 %v1844
    %1882 = vmatprep.subr.bf16.mxu0 0
    %1883 = vmatpush1.bf16.msra.mxu0 %v1845
    %1884 = vmatprep.subr.bf16.mxu0 0
    %1885 = vmatpush1.bf16.msra.mxu0 %v1846
    %1886 = vmatprep.subr.bf16.mxu0 0
    %1887 = vmatpush1.bf16.msra.mxu0 %v1847
    %1888 = vmatprep.subr.bf16.mxu0 0
    %1889 = vmatpush1.bf16.msra.mxu0 %v1848
    %1890 = vmatprep.subr.bf16.mxu0 0
    %1891 = vmatpush1.bf16.msra.mxu0 %v1849
    %1892 = vmatprep.subr.bf16.mxu0 0
    %1893 = vmatpush1.bf16.msra.mxu0 %v1850
    %1894 = vmatprep.subr.bf16.mxu0 0
    %1895 = vmatpush1.bf16.msra.mxu0 %v1851
    %1896 = vmatprep.subr.bf16.mxu0 0
    %1897 = vmatpush1.bf16.msra.mxu0 %v1852
    %1898 = vmatprep.subr.bf16.mxu0 0
    %1899 = vmatpush1.bf16.msra.mxu0 %v1853
    %1900 = vmatprep.subr.bf16.mxu0 0
    %1901 = vmatpush1.bf16.msra.mxu0 %v1854
    %1902 = vmatprep.subr.bf16.mxu0 0
    %1903 = vmatpush1.bf16.msra.mxu0 %v1855
    %1904 = vmatprep.mubr.bf16.mxu0 %v1773
    %1905 = vmatmul.mubr.bf16.gmra.mrb[0].mxu0 %v1766
    %v1906 = vpop.f32.mrb[0].mxu0
    %v1907 = vadd.f32 0.0, %v1906
    %v1908 = vpop.f32.mrb[0].mxu0
    %v1909 = vpop.f32.mrb[0].mxu0
    %v1910 = vpop.f32.mrb[0].mxu0
    %1911 = vdwg.mxu0
    %v1912 = vadd.f32 %v1724, %v1907
    %s1913 = scalar_lea.vmem %s12, 256
    %v1914 = vld [vmem:[%s1913] sm:$0xf]
    %v1915 = vld [vmem:[%s1913 + $0x4] sm:$0xf]
    %v1916 = vld [vmem:[%s1913 + $0x8] sm:$0xf]
    %v1917 = vld [vmem:[%s1913 + $0xc] sm:$0xf]
    %v1918 = vld [vmem:[%s1913 + $0x10] sm:$0xf]
    %v1919 = vld [vmem:[%s1913 + $0x14] sm:$0xf]
    %v1920 = vld [vmem:[%s1913 + $0x18] sm:$0xf]
    %v1921 = vld [vmem:[%s1913 + $0x1c] sm:$0xf]
    %v1922 = vld [vmem:[%s1913 + $0x20] sm:$0xf]
    %v1923 = vld [vmem:[%s1913 + $0x24] sm:$0xf]
    %v1924 = vld [vmem:[%s1913 + $0x28] sm:$0xf]
    %v1925 = vld [vmem:[%s1913 + $0x2c] sm:$0xf]
    %v1926 = vld [vmem:[%s1913 + $0x30] sm:$0xf]
    %v1927 = vld [vmem:[%s1913 + $0x34] sm:$0xf]
    %v1928 = vld [vmem:[%s1913 + $0x38] sm:$0xf]
    %v1929 = vld [vmem:[%s1913 + $0x3c] sm:$0xf]
    %v1930 = vld [vmem:[%s1913 + $0x40] sm:$0xf]
    %v1931 = vld [vmem:[%s1913 + $0x44] sm:$0xf]
    %v1932 = vld [vmem:[%s1913 + $0x48] sm:$0xf]
    %v1933 = vld [vmem:[%s1913 + $0x4c] sm:$0xf]
    %v1934 = vld [vmem:[%s1913 + $0x50] sm:$0xf]
    %v1935 = vld [vmem:[%s1913 + $0x54] sm:$0xf]
    %v1936 = vld [vmem:[%s1913 + $0x58] sm:$0xf]
    %v1937 = vld [vmem:[%s1913 + $0x5c] sm:$0xf]
    %v1938 = vld [vmem:[%s1913 + $0x60] sm:$0xf]
    %v1939 = vld [vmem:[%s1913 + $0x64] sm:$0xf]
    %v1940 = vld [vmem:[%s1913 + $0x68] sm:$0xf]
    %v1941 = vld [vmem:[%s1913 + $0x6c] sm:$0xf]
    %v1942 = vld [vmem:[%s1913 + $0x70] sm:$0xf]
    %v1943 = vld [vmem:[%s1913 + $0x74] sm:$0xf]
    %v1944 = vld [vmem:[%s1913 + $0x78] sm:$0xf]
    %v1945 = vld [vmem:[%s1913 + $0x7c] sm:$0xf]
    %v1948 = vrot.slane %v1537, 1
    %v1949 = vrot.slane %v1538, 1
    %v1984 = vunpack.c.l.b16 %v1914
    %v1985 = vunpack.c.l.b16 %v1915
    %v1986 = vunpack.c.l.b16 %v1916
    %v1987 = vunpack.c.l.b16 %v1917
    %v1988 = vunpack.c.l.b16 %v1918
    %v1989 = vunpack.c.l.b16 %v1919
    %v1990 = vunpack.c.l.b16 %v1920
    %v1991 = vunpack.c.l.b16 %v1921
    %v1992 = vunpack.c.l.b16 %v1922
    %v1993 = vunpack.c.l.b16 %v1923
    %v1994 = vunpack.c.l.b16 %v1924
    %v1995 = vunpack.c.l.b16 %v1925
    %v1996 = vunpack.c.l.b16 %v1926
    %v1997 = vunpack.c.l.b16 %v1927
    %v1998 = vunpack.c.l.b16 %v1928
    %v1999 = vunpack.c.l.b16 %v1929
    %v2000 = vunpack.c.l.b16 %v1930
    %v2001 = vunpack.c.l.b16 %v1931
    %v2002 = vunpack.c.l.b16 %v1932
    %v2003 = vunpack.c.l.b16 %v1933
    %v2004 = vunpack.c.l.b16 %v1934
    %v2005 = vunpack.c.l.b16 %v1935
    %v2006 = vunpack.c.l.b16 %v1936
    %v2007 = vunpack.c.l.b16 %v1937
    %v2008 = vunpack.c.l.b16 %v1938
    %v2009 = vunpack.c.l.b16 %v1939
    %v2010 = vunpack.c.l.b16 %v1940
    %v2011 = vunpack.c.l.b16 %v1941
    %v2012 = vunpack.c.l.b16 %v1942
    %v2013 = vunpack.c.l.b16 %v1943
    %v2014 = vunpack.c.l.b16 %v1944
    %v2015 = vunpack.c.l.b16 %v1945
    %v2016 = vpack.c.b16 %v1985, %v1984
    %v2017 = vpack.c.b16 %v1987, %v1986
    %v2018 = vpack.c.b16 %v1989, %v1988
    %v2019 = vpack.c.b16 %v1991, %v1990
    %v2020 = vpack.c.b16 %v1993, %v1992
    %v2021 = vpack.c.b16 %v1995, %v1994
    %v2022 = vpack.c.b16 %v1997, %v1996
    %v2023 = vpack.c.b16 %v1999, %v1998
    %v2024 = vpack.c.b16 %v2001, %v2000
    %v2025 = vpack.c.b16 %v2003, %v2002
    %v2026 = vpack.c.b16 %v2005, %v2004
    %v2027 = vpack.c.b16 %v2007, %v2006
    %v2028 = vpack.c.b16 %v2009, %v2008
    %v2029 = vpack.c.b16 %v2011, %v2010
    %v2030 = vpack.c.b16 %v2013, %v2012
    %v2031 = vpack.c.b16 %v2015, %v2014
    %2048 = vmatprep.subr.bf16.mxu0 0
    %2049 = vmatpush1.bf16.msra.mxu0 %v2016
    %2050 = vmatprep.subr.bf16.mxu0 0
    %2051 = vmatpush1.bf16.msra.mxu0 %v2017
    %2052 = vmatprep.subr.bf16.mxu0 0
    %2053 = vmatpush1.bf16.msra.mxu0 %v2018
    %2054 = vmatprep.subr.bf16.mxu0 0
    %2055 = vmatpush1.bf16.msra.mxu0 %v2019
    %2056 = vmatprep.subr.bf16.mxu0 0
    %2057 = vmatpush1.bf16.msra.mxu0 %v2020
    %2058 = vmatprep.subr.bf16.mxu0 0
    %2059 = vmatpush1.bf16.msra.mxu0 %v2021
    %2060 = vmatprep.subr.bf16.mxu0 0
    %2061 = vmatpush1.bf16.msra.mxu0 %v2022
    %2062 = vmatprep.subr.bf16.mxu0 0
    %2063 = vmatpush1.bf16.msra.mxu0 %v2023
    %2064 = vmatprep.subr.bf16.mxu0 0
    %2065 = vmatpush1.bf16.msra.mxu0 %v2024
    %2066 = vmatprep.subr.bf16.mxu0 0
    %2067 = vmatpush1.bf16.msra.mxu0 %v2025
    %2068 = vmatprep.subr.bf16.mxu0 0
    %2069 = vmatpush1.bf16.msra.mxu0 %v2026
    %2070 = vmatprep.subr.bf16.mxu0 0
    %2071 = vmatpush1.bf16.msra.mxu0 %v2027
    %2072 = vmatprep.subr.bf16.mxu0 0
    %2073 = vmatpush1.bf16.msra.mxu0 %v2028
    %2074 = vmatprep.subr.bf16.mxu0 0
    %2075 = vmatpush1.bf16.msra.mxu0 %v2029
    %2076 = vmatprep.subr.bf16.mxu0 0
    %2077 = vmatpush1.bf16.msra.mxu0 %v2030
    %2078 = vmatprep.subr.bf16.mxu0 0
    %2079 = vmatpush1.bf16.msra.mxu0 %v2031
    %2080 = vmatprep.mubr.bf16.mxu0 %v1949
    %2081 = vmatmul.mubr.bf16.gmra.mrb[0].mxu0 %v1948
    %v2082 = vpop.f32.mrb[0].mxu0
    %v2083 = vadd.f32 0.0, %v2082
    %v2084 = vpop.f32.mrb[0].mxu0
    %v2085 = vpop.f32.mrb[0].mxu0
    %v2086 = vpop.f32.mrb[0].mxu0
    %2087 = vdwg.mxu0
    %v2088 = vadd.f32 %v1912, %v2083
    %s2089 = scalar_lea.vmem %s13, 256
    %v2090 = vld [vmem:[%s2089] sm:$0xf]
    %v2091 = vld [vmem:[%s2089 + $0x4] sm:$0xf]
    %v2092 = vld [vmem:[%s2089 + $0x8] sm:$0xf]
    %v2093 = vld [vmem:[%s2089 + $0xc] sm:$0xf]
    %v2094 = vld [vmem:[%s2089 + $0x10] sm:$0xf]
    %v2095 = vld [vmem:[%s2089 + $0x14] sm:$0xf]
    %v2096 = vld [vmem:[%s2089 + $0x18] sm:$0xf]
    %v2097 = vld [vmem:[%s2089 + $0x1c] sm:$0xf]
    %v2098 = vld [vmem:[%s2089 + $0x20] sm:$0xf]
    %v2099 = vld [vmem:[%s2089 + $0x24] sm:$0xf]
    %v2100 = vld [vmem:[%s2089 + $0x28] sm:$0xf]
    %v2101 = vld [vmem:[%s2089 + $0x2c] sm:$0xf]
    %v2102 = vld [vmem:[%s2089 + $0x30] sm:$0xf]
    %v2103 = vld [vmem:[%s2089 + $0x34] sm:$0xf]
    %v2104 = vld [vmem:[%s2089 + $0x38] sm:$0xf]
    %v2105 = vld [vmem:[%s2089 + $0x3c] sm:$0xf]
    %v2106 = vld [vmem:[%s2089 + $0x40] sm:$0xf]
    %v2107 = vld [vmem:[%s2089 + $0x44] sm:$0xf]
    %v2108 = vld [vmem:[%s2089 + $0x48] sm:$0xf]
    %v2109 = vld [vmem:[%s2089 + $0x4c] sm:$0xf]
    %v2110 = vld [vmem:[%s2089 + $0x50] sm:$0xf]
    %v2111 = vld [vmem:[%s2089 + $0x54] sm:$0xf]
    %v2112 = vld [vmem:[%s2089 + $0x58] sm:$0xf]
    %v2113 = vld [vmem:[%s2089 + $0x5c] sm:$0xf]
    %v2114 = vld [vmem:[%s2089 + $0x60] sm:$0xf]
    %v2115 = vld [vmem:[%s2089 + $0x64] sm:$0xf]
    %v2116 = vld [vmem:[%s2089 + $0x68] sm:$0xf]
    %v2117 = vld [vmem:[%s2089 + $0x6c] sm:$0xf]
    %v2118 = vld [vmem:[%s2089 + $0x70] sm:$0xf]
    %v2119 = vld [vmem:[%s2089 + $0x74] sm:$0xf]
    %v2120 = vld [vmem:[%s2089 + $0x78] sm:$0xf]
    %v2121 = vld [vmem:[%s2089 + $0x7c] sm:$0xf]
    %v2124 = vrot.slane %v1725, 1
    %v2125 = vrot.slane %v1726, 1
    %v2160 = vunpack.c.l.b16 %v2090
    %v2161 = vunpack.c.l.b16 %v2091
    %v2162 = vunpack.c.l.b16 %v2092
    %v2163 = vunpack.c.l.b16 %v2093
    %v2164 = vunpack.c.l.b16 %v2094
    %v2165 = vunpack.c.l.b16 %v2095
    %v2166 = vunpack.c.l.b16 %v2096
    %v2167 = vunpack.c.l.b16 %v2097
    %v2168 = vunpack.c.l.b16 %v2098
    %v2169 = vunpack.c.l.b16 %v2099
    %v2170 = vunpack.c.l.b16 %v2100
    %v2171 = vunpack.c.l.b16 %v2101
    %v2172 = vunpack.c.l.b16 %v2102
    %v2173 = vunpack.c.l.b16 %v2103
    %v2174 = vunpack.c.l.b16 %v2104
    %v2175 = vunpack.c.l.b16 %v2105
    %v2176 = vunpack.c.l.b16 %v2106
    %v2177 = vunpack.c.l.b16 %v2107
    %v2178 = vunpack.c.l.b16 %v2108
    %v2179 = vunpack.c.l.b16 %v2109
    %v2180 = vunpack.c.l.b16 %v2110
    %v2181 = vunpack.c.l.b16 %v2111
    %v2182 = vunpack.c.l.b16 %v2112
    %v2183 = vunpack.c.l.b16 %v2113
    %v2184 = vunpack.c.l.b16 %v2114
    %v2185 = vunpack.c.l.b16 %v2115
    %v2186 = vunpack.c.l.b16 %v2116
    %v2187 = vunpack.c.l.b16 %v2117
    %v2188 = vunpack.c.l.b16 %v2118
    %v2189 = vunpack.c.l.b16 %v2119
    %v2190 = vunpack.c.l.b16 %v2120
    %v2191 = vunpack.c.l.b16 %v2121
    %v2192 = vpack.c.b16 %v2161, %v2160
    %v2193 = vpack.c.b16 %v2163, %v2162
    %v2194 = vpack.c.b16 %v2165, %v2164
    %v2195 = vpack.c.b16 %v2167, %v2166
    %v2196 = vpack.c.b16 %v2169, %v2168
    %v2197 = vpack.c.b16 %v2171, %v2170
    %v2198 = vpack.c.b16 %v2173, %v2172
    %v2199 = vpack.c.b16 %v2175, %v2174
    %v2200 = vpack.c.b16 %v2177, %v2176
    %v2201 = vpack.c.b16 %v2179, %v2178
    %v2202 = vpack.c.b16 %v2181, %v2180
    %v2203 = vpack.c.b16 %v2183, %v2182
    %v2204 = vpack.c.b16 %v2185, %v2184
    %v2205 = vpack.c.b16 %v2187, %v2186
    %v2206 = vpack.c.b16 %v2189, %v2188
    %v2207 = vpack.c.b16 %v2191, %v2190
    %2224 = vmatprep.subr.bf16.mxu0 0
    %2225 = vmatpush1.bf16.msra.mxu0 %v2192
    %2226 = vmatprep.subr.bf16.mxu0 0
    %2227 = vmatpush1.bf16.msra.mxu0 %v2193
    %2228 = vmatprep.subr.bf16.mxu0 0
    %2229 = vmatpush1.bf16.msra.mxu0 %v2194
    %2230 = vmatprep.subr.bf16.mxu0 0
    %2231 = vmatpush1.bf16.msra.mxu0 %v2195
    %2232 = vmatprep.subr.bf16.mxu0 0
    %2233 = vmatpush1.bf16.msra.mxu0 %v2196
    %2234 = vmatprep.subr.bf16.mxu0 0
    %2235 = vmatpush1.bf16.msra.mxu0 %v2197
    %2236 = vmatprep.subr.bf16.mxu0 0
    %2237 = vmatpush1.bf16.msra.mxu0 %v2198
    %2238 = vmatprep.subr.bf16.mxu0 0
    %2239 = vmatpush1.bf16.msra.mxu0 %v2199
    %2240 = vmatprep.subr.bf16.mxu0 0
    %2241 = vmatpush1.bf16.msra.mxu0 %v2200
    %2242 = vmatprep.subr.bf16.mxu0 0
    %2243 = vmatpush1.bf16.msra.mxu0 %v2201
    %2244 = vmatprep.subr.bf16.mxu0 0
    %2245 = vmatpush1.bf16.msra.mxu0 %v2202
    %2246 = vmatprep.subr.bf16.mxu0 0
    %2247 = vmatpush1.bf16.msra.mxu0 %v2203
    %2248 = vmatprep.subr.bf16.mxu0 0
    %2249 = vmatpush1.bf16.msra.mxu0 %v2204
    %2250 = vmatprep.subr.bf16.mxu0 0
    %2251 = vmatpush1.bf16.msra.mxu0 %v2205
    %2252 = vmatprep.subr.bf16.mxu0 0
    %2253 = vmatpush1.bf16.msra.mxu0 %v2206
    %2254 = vmatprep.subr.bf16.mxu0 0
    %2255 = vmatpush1.bf16.msra.mxu0 %v2207
    %2256 = vmatprep.mubr.bf16.mxu0 %v2125
    %2257 = vmatmul.mubr.bf16.gmra.mrb[0].mxu0 %v2124
    %v2258 = vpop.f32.mrb[0].mxu0
    %v2259 = vadd.f32 0.0, %v2258
    %v2260 = vpop.f32.mrb[0].mxu0
    %v2261 = vpop.f32.mrb[0].mxu0
    %v2262 = vpop.f32.mrb[0].mxu0
    %2263 = vdwg.mxu0
    %v2264 = vadd.f32 %v2088, %v2259
    %v2265 = vld [vmem:[#allocation6] sm:$0x1]
    %v2267 = vlaneseq
    %v2268 = vshrl.u32 %v2267, 7
    %v2269 = vsub.s32 0, %v2268
    %v2270 = vrot.slane %v2265, %v2269
    %v2272 = vadd.f32 %v2264, %v2270
    %v2273 = vmax.f32 %v2272, 0.0
    %v2274 = vld [vmem:[#allocation7] sm:$0x1]
    %v2275 = vlaneseq
    %v2276 = vshrl.u32 %v2275, 7
    %v2277 = vsub.s32 0, %v2276
    %v2278 = vrot.slane %v2274, %v2277
    %v2279 = vmul.f32 %v2273, %v2278
    %v2280 = vld [vmem:[#allocation7 + $0x1] sm:$0x1]
    %v2281 = vlaneseq
    %v2282 = vshrl.u32 %v2281, 7
    %v2283 = vsub.s32 0, %v2282
    %v2284 = vrot.slane %v2280, %v2283
    %v2285 = vadd.f32 %v2279, %v2284
    %v2286 = vpack.c.bf16 %v2285, %v2285
    %v2287 = vld [vmem:[%s16] sm:$0xf]
    %v2288 = vld [vmem:[%s16 + $0x4] sm:$0xf]
    %v2289 = vld [vmem:[%s16 + $0x8] sm:$0xf]
    %v2290 = vld [vmem:[%s16 + $0xc] sm:$0xf]
    %v2291 = vpack.c.bf16 0.0, %v2285
    %s2292 = scalar_lea.vmem %s16, 16
    %v2293 = vld [vmem:[%s2292] sm:$0xf]
    %v2294 = vld [vmem:[%s2292 + $0x4] sm:$0xf]
    %v2295 = vld [vmem:[%s2292 + $0x8] sm:$0xf]
    %v2296 = vld [vmem:[%s2292 + $0xc] sm:$0xf]
    %v2298 = vshrl.u32 %v2291, 16
    %v2300 = vshll.u32 %v2291, 16
    %v2302 = vrot.slane %v2300, 1
    %v2303 = vor.u32 %v2298, %v2302
    %v2308 = vunpack.c.l.b16 %v2293
    %v2309 = vunpack.c.l.b16 %v2294
    %v2310 = vunpack.c.l.b16 %v2295
    %v2311 = vunpack.c.l.b16 %v2296
    %v2312 = vpack.c.b16 %v2309, %v2308
    %v2313 = vpack.c.b16 %v2311, %v2310
    %v2317 = vsel %vm182, %v2303, 0
    %2319 = vmatprep.subr.bf16.mxu0 0
    %2320 = vmatpush1.bf16.msra.mxu0 %v2312
    %2321 = vmatprep.subr.bf16.mxu0 0
    %2322 = vmatpush1.bf16.msra.mxu0 %v2313
    %2323 = vmatprep.subr.bf16.mxu0 0
    %2324 = vmatpush1.bf16.msra.mxu0 0
    %2325 = vmatprep.subr.bf16.mxu0 0
    %2326 = vmatpush1.bf16.msra.mxu0 0
    %2327 = vmatprep.subr.bf16.mxu0 0
    %2328 = vmatpush1.bf16.msra.mxu0 0
    %2329 = vmatprep.subr.bf16.mxu0 0
    %2330 = vmatpush1.bf16.msra.mxu0 0
    %2331 = vmatprep.subr.bf16.mxu0 0
    %2332 = vmatpush1.bf16.msra.mxu0 0
    %2333 = vmatprep.subr.bf16.mxu0 0
    %2334 = vmatpush1.bf16.msra.mxu0 0
    %2335 = vmatprep.subr.bf16.mxu0 0
    %2336 = vmatpush1.bf16.msra.mxu0 0
    %2337 = vmatprep.subr.bf16.mxu0 0
    %2338 = vmatpush1.bf16.msra.mxu0 0
    %2339 = vmatprep.subr.bf16.mxu0 0
    %2340 = vmatpush1.bf16.msra.mxu0 0
    %2341 = vmatprep.subr.bf16.mxu0 0
    %2342 = vmatpush1.bf16.msra.mxu0 0
    %2343 = vmatprep.subr.bf16.mxu0 0
    %2344 = vmatpush1.bf16.msra.mxu0 0
    %2345 = vmatprep.subr.bf16.mxu0 0
    %2346 = vmatpush1.bf16.msra.mxu0 0
    %2347 = vmatprep.subr.bf16.mxu0 0
    %2348 = vmatpush1.bf16.msra.mxu0 0
    %2349 = vmatprep.subr.bf16.mxu0 0
    %2350 = vmatpush1.bf16.msra.mxu0 0
    %2351 = vmatprep.mubr.bf16.mxu0 0
    %2352 = vmatmul.mubr.bf16.gmra.mrb[0].mxu0 %v2317
    %v2353 = vpop.f32.mrb[0].mxu0
    %v2354 = vadd.f32 0.0, %v2353
    %v2355 = vpop.f32.mrb[0].mxu0
    %v2356 = vpop.f32.mrb[0].mxu0
    %v2357 = vpop.f32.mrb[0].mxu0
    %2358 = vdwg.mxu0
    %v2363 = vunpack.c.l.b16 %v2287
    %v2364 = vunpack.c.l.b16 %v2288
    %v2365 = vunpack.c.l.b16 %v2289
    %v2366 = vunpack.c.l.b16 %v2290
    %v2367 = vpack.c.b16 %v2364, %v2363
    %v2368 = vpack.c.b16 %v2366, %v2365
    %v2372 = vsel %vm182, %v2286, 0
    %2374 = vmatprep.subr.bf16.mxu0 0
    %2375 = vmatpush1.bf16.msra.mxu0 %v2367
    %2376 = vmatprep.subr.bf16.mxu0 0
    %2377 = vmatpush1.bf16.msra.mxu0 %v2368
    %2378 = vmatprep.subr.bf16.mxu0 0
    %2379 = vmatpush1.bf16.msra.mxu0 0
    %2380 = vmatprep.subr.bf16.mxu0 0
    %2381 = vmatpush1.bf16.msra.mxu0 0
    %2382 = vmatprep.subr.bf16.mxu0 0
    %2383 = vmatpush1.bf16.msra.mxu0 0
    %2384 = vmatprep.subr.bf16.mxu0 0
    %2385 = vmatpush1.bf16.msra.mxu0 0
    %2386 = vmatprep.subr.bf16.mxu0 0
    %2387 = vmatpush1.bf16.msra.mxu0 0
    %2388 = vmatprep.subr.bf16.mxu0 0
    %2389 = vmatpush1.bf16.msra.mxu0 0
    %2390 = vmatprep.subr.bf16.mxu0 0
    %2391 = vmatpush1.bf16.msra.mxu0 0
    %2392 = vmatprep.subr.bf16.mxu0 0
    %2393 = vmatpush1.bf16.msra.mxu0 0
    %2394 = vmatprep.subr.bf16.mxu0 0
    %2395 = vmatpush1.bf16.msra.mxu0 0
    %2396 = vmatprep.subr.bf16.mxu0 0
    %2397 = vmatpush1.bf16.msra.mxu0 0
    %2398 = vmatprep.subr.bf16.mxu0 0
    %2399 = vmatpush1.bf16.msra.mxu0 0
    %2400 = vmatprep.subr.bf16.mxu0 0
    %2401 = vmatpush1.bf16.msra.mxu0 0
    %2402 = vmatprep.subr.bf16.mxu0 0
    %2403 = vmatpush1.bf16.msra.mxu0 0
    %2404 = vmatprep.subr.bf16.mxu0 0
    %2405 = vmatpush1.bf16.msra.mxu0 0
    %2406 = vmatprep.mubr.bf16.mxu0 0
    %2407 = vmatmul.mubr.bf16.gmra.mrb[0].mxu0 %v2372
    %v2408 = vpop.f32.mrb[0].mxu0
    %v2409 = vadd.f32 %v2354, %v2408
    %v2410 = vpop.f32.mrb[0].mxu0
    %v2411 = vpop.f32.mrb[0].mxu0
    %v2412 = vpop.f32.mrb[0].mxu0
    %2413 = vdwg.mxu0
    %s2414 = scalar_lea.vmem %s16, 32
    %v2415 = vld [vmem:[%s2414] sm:$0xf]
    %v2416 = vld [vmem:[%s2414 + $0x4] sm:$0xf]
    %v2417 = vld [vmem:[%s2414 + $0x8] sm:$0xf]
    %v2418 = vld [vmem:[%s2414 + $0xc] sm:$0xf]
    %v2420 = vrot.slane %v2291, 1
    %v2425 = vunpack.c.l.b16 %v2415
    %v2426 = vunpack.c.l.b16 %v2416
    %v2427 = vunpack.c.l.b16 %v2417
    %v2428 = vunpack.c.l.b16 %v2418
    %v2429 = vpack.c.b16 %v2426, %v2425
    %v2430 = vpack.c.b16 %v2428, %v2427
    %v2434 = vsel %vm182, %v2420, 0
    %2436 = vmatprep.subr.bf16.mxu0 0
    %2437 = vmatpush1.bf16.msra.mxu0 %v2429
    %2438 = vmatprep.subr.bf16.mxu0 0
    %2439 = vmatpush1.bf16.msra.mxu0 %v2430
    %2440 = vmatprep.subr.bf16.mxu0 0
    %2441 = vmatpush1.bf16.msra.mxu0 0
    %2442 = vmatprep.subr.bf16.mxu0 0
    %2443 = vmatpush1.bf16.msra.mxu0 0
    %2444 = vmatprep.subr.bf16.mxu0 0
    %2445 = vmatpush1.bf16.msra.mxu0 0
    %2446 = vmatprep.subr.bf16.mxu0 0
    %2447 = vmatpush1.bf16.msra.mxu0 0
    %2448 = vmatprep.subr.bf16.mxu0 0
    %2449 = vmatpush1.bf16.msra.mxu0 0
    %2450 = vmatprep.subr.bf16.mxu0 0
    %2451 = vmatpush1.bf16.msra.mxu0 0
    %2452 = vmatprep.subr.bf16.mxu0 0
    %2453 = vmatpush1.bf16.msra.mxu0 0
    %2454 = vmatprep.subr.bf16.mxu0 0
    %2455 = vmatpush1.bf16.msra.mxu0 0
    %2456 = vmatprep.subr.bf16.mxu0 0
    %2457 = vmatpush1.bf16.msra.mxu0 0
    %2458 = vmatprep.subr.bf16.mxu0 0
    %2459 = vmatpush1.bf16.msra.mxu0 0
    %2460 = vmatprep.subr.bf16.mxu0 0
    %2461 = vmatpush1.bf16.msra.mxu0 0
    %2462 = vmatprep.subr.bf16.mxu0 0
    %2463 = vmatpush1.bf16.msra.mxu0 0
    %2464 = vmatprep.subr.bf16.mxu0 0
    %2465 = vmatpush1.bf16.msra.mxu0 0
    %2466 = vmatprep.subr.bf16.mxu0 0
    %2467 = vmatpush1.bf16.msra.mxu0 0
    %2468 = vmatprep.mubr.bf16.mxu0 0
    %2469 = vmatmul.mubr.bf16.gmra.mrb[0].mxu0 %v2434
    %v2470 = vpop.f32.mrb[0].mxu0
    %v2471 = vadd.f32 0.0, %v2470
    %v2472 = vpop.f32.mrb[0].mxu0
    %v2473 = vpop.f32.mrb[0].mxu0
    %v2474 = vpop.f32.mrb[0].mxu0
    %2475 = vdwg.mxu0
    %v2476 = vadd.f32 %v2409, %v2471
    %v2477 = vld [vmem:[#allocation9] sm:$0x1]
    %v2479 = vlaneseq
    %v2480 = vshrl.u32 %v2479, 7
    %v2481 = vsub.s32 0, %v2480
    %v2482 = vrot.slane %v2477, %v2481
    %v2484 = vadd.f32 %v2476, %v2482
    %v2485 = vadd.f32 %v2484, %v294
    %v2486 = vld [vmem:[%s18] sm:$0xf]
    %v2487 = vld [vmem:[%s18 + $0x4] sm:$0xf]
    %v2488 = vld [vmem:[%s18 + $0x8] sm:$0xf]
    %v2489 = vld [vmem:[%s18 + $0xc] sm:$0xf]
    %v2490 = vpack.c.bf16 %v2485, %v2485
    %v2491 = vld [vmem:[#allocation10] sm:$0x1]
    %v2493 = vlaneseq
    %v2494 = vshrl.u32 %v2493, 7
    %v2495 = vsub.s32 0, %v2494
    %v2496 = vrot.slane %v2491, %v2495
    %v2502 = vunpack.c.l.b16 %v2486
    %v2503 = vunpack.c.l.b16 %v2487
    %v2504 = vunpack.c.l.b16 %v2488
    %v2505 = vunpack.c.l.b16 %v2489
    %v2506 = vpack.c.b16 %v2503, %v2502
    %v2507 = vpack.c.b16 %v2505, %v2504
    %v2511 = vsel %vm182, %v2490, 0
    %2513 = vmatprep.subr.bf16.mxu0 0
    %2514 = vmatpush1.bf16.msra.mxu0 %v2506
    %2515 = vmatprep.subr.bf16.mxu0 0
    %2516 = vmatpush1.bf16.msra.mxu0 %v2507
    %2517 = vmatprep.subr.bf16.mxu0 0
    %2518 = vmatpush1.bf16.msra.mxu0 0
    %2519 = vmatprep.subr.bf16.mxu0 0
    %2520 = vmatpush1.bf16.msra.mxu0 0
    %2521 = vmatprep.subr.bf16.mxu0 0
    %2522 = vmatpush1.bf16.msra.mxu0 0
    %2523 = vmatprep.subr.bf16.mxu0 0
    %2524 = vmatpush1.bf16.msra.mxu0 0
    %2525 = vmatprep.subr.bf16.mxu0 0
    %2526 = vmatpush1.bf16.msra.mxu0 0
    %2527 = vmatprep.subr.bf16.mxu0 0
    %2528 = vmatpush1.bf16.msra.mxu0 0
    %2529 = vmatprep.subr.bf16.mxu0 0
    %2530 = vmatpush1.bf16.msra.mxu0 0
    %2531 = vmatprep.subr.bf16.mxu0 0
    %2532 = vmatpush1.bf16.msra.mxu0 0
    %2533 = vmatprep.subr.bf16.mxu0 0
    %2534 = vmatpush1.bf16.msra.mxu0 0
    %2535 = vmatprep.subr.bf16.mxu0 0
    %2536 = vmatpush1.bf16.msra.mxu0 0
    %2537 = vmatprep.subr.bf16.mxu0 0
    %2538 = vmatpush1.bf16.msra.mxu0 0
    %2539 = vmatprep.subr.bf16.mxu0 0
    %2540 = vmatpush1.bf16.msra.mxu0 0
    %2541 = vmatprep.subr.bf16.mxu0 0
    %2542 = vmatpush1.bf16.msra.mxu0 0
    %2543 = vmatprep.subr.bf16.mxu0 0
    %2544 = vmatpush1.bf16.msra.mxu0 0
    %2545 = vmatprep.mubr.bf16.mxu0 0
    %2546 = vmatmul.mubr.bf16.gmra.mrb[0].mxu0 %v2511
    %v2547 = vpop.f32.mrb[0].mxu0
    %v2548 = vadd.f32 %v2496, %v2547
    %v2549 = vpop.f32.mrb[0].mxu0
    %v2550 = vpop.f32.mrb[0].mxu0
    %v2551 = vpop.f32.mrb[0].mxu0
    %2552 = vdwg.mxu0
    %v2553 = vxor.u32 %v2548, 2147483648
    %v2554 = vmul.f32 %v2553, 1.442695
    %v2555 = vpow.pop %v2554
    %v2556 = vadd.f32 %v2555, 1.0
    %v2557 = vrcp.pop %v2556
    %v2558 = vmul.f32 1.0, %v2557
    %v2559 = vmax.f32 %v2548, 0.0
    %2561 = vrot.lane.b32.xlu0 %v2559, 96
    %v2562 = vpop.permute.xlu0 %2561
    %v2564 = vmul.f32 %v2558, %v2562
    %v2565 = vsub.f32 1.0, %v2558
    %2567 = vrot.lane.b32.xlu0 %v2548, 64
    %v2568 = vpop.permute.xlu0 %2567
    %v2570 = vmul.f32 %v2565, %v2568
    %v2571 = vadd.f32 %v2564, %v2570
    %s2572 = scalar_lea.vmem %s18, 16
    %v2573 = vld [vmem:[%s2572] sm:$0xf]
    %v2574 = vld [vmem:[%s2572 + $0x4] sm:$0xf]
    %v2575 = vld [vmem:[%s2572 + $0x8] sm:$0xf]
    %v2576 = vld [vmem:[%s2572 + $0xc] sm:$0xf]
    %v2577 = vpack.c.bf16 %v2571, %v2571
    %s2578 = scalar_lea.vmem [#allocation10], 1
    %v2579 = vld [vmem:[%s2578] sm:$0x1]
    %v2581 = vlaneseq
    %v2582 = vshrl.u32 %v2581, 7
    %v2583 = vsub.s32 0, %v2582
    %v2584 = vrot.slane %v2579, %v2583
    %v2590 = vunpack.c.l.b16 %v2573
    %v2591 = vunpack.c.l.b16 %v2574
    %v2592 = vunpack.c.l.b16 %v2575
    %v2593 = vunpack.c.l.b16 %v2576
    %v2594 = vpack.c.b16 %v2591, %v2590
    %v2595 = vpack.c.b16 %v2593, %v2592
    %v2599 = vsel %vm182, %v2577, 0
    %2601 = vmatprep.subr.bf16.mxu0 0
    %2602 = vmatpush1.bf16.msra.mxu0 %v2594
    %2603 = vmatprep.subr.bf16.mxu0 0
    %2604 = vmatpush1.bf16.msra.mxu0 %v2595
    %2605 = vmatprep.subr.bf16.mxu0 0
    %2606 = vmatpush1.bf16.msra.mxu0 0
    %2607 = vmatprep.subr.bf16.mxu0 0
    %2608 = vmatpush1.bf16.msra.mxu0 0
    %2609 = vmatprep.subr.bf16.mxu0 0
    %2610 = vmatpush1.bf16.msra.mxu0 0
    %2611 = vmatprep.subr.bf16.mxu0 0
    %2612 = vmatpush1.bf16.msra.mxu0 0
    %2613 = vmatprep.subr.bf16.mxu0 0
    %2614 = vmatpush1.bf16.msra.mxu0 0
    %2615 = vmatprep.subr.bf16.mxu0 0
    %2616 = vmatpush1.bf16.msra.mxu0 0
    %2617 = vmatprep.subr.bf16.mxu0 0
    %2618 = vmatpush1.bf16.msra.mxu0 0
    %2619 = vmatprep.subr.bf16.mxu0 0
    %2620 = vmatpush1.bf16.msra.mxu0 0
    %2621 = vmatprep.subr.bf16.mxu0 0
    %2622 = vmatpush1.bf16.msra.mxu0 0
    %2623 = vmatprep.subr.bf16.mxu0 0
    %2624 = vmatpush1.bf16.msra.mxu0 0
    %2625 = vmatprep.subr.bf16.mxu0 0
    %2626 = vmatpush1.bf16.msra.mxu0 0
    %2627 = vmatprep.subr.bf16.mxu0 0
    %2628 = vmatpush1.bf16.msra.mxu0 0
    %2629 = vmatprep.subr.bf16.mxu0 0
    %2630 = vmatpush1.bf16.msra.mxu0 0
    %2631 = vmatprep.subr.bf16.mxu0 0
    %2632 = vmatpush1.bf16.msra.mxu0 0
    %2633 = vmatprep.mubr.bf16.mxu0 0
    %2634 = vmatmul.mubr.bf16.gmra.mrb[0].mxu0 %v2599
    %v2635 = vpop.f32.mrb[0].mxu0
    %v2636 = vadd.f32 %v2584, %v2635
    %v2637 = vpop.f32.mrb[0].mxu0
    %v2638 = vpop.f32.mrb[0].mxu0
    %v2639 = vpop.f32.mrb[0].mxu0
    %2640 = vdwg.mxu0
    %v2641 = vxor.u32 %v2636, 2147483648
    %v2642 = vmul.f32 %v2641, 1.442695
    %v2643 = vpow.pop %v2642
    %v2644 = vadd.f32 %v2643, 1.0
    %v2645 = vrcp.pop %v2644
    %v2646 = vmul.f32 1.0, %v2645
    %v2647 = vmax.f32 %v2636, 0.0
    %2649 = vrot.lane.b32.xlu0 %v2647, 96
    %v2650 = vpop.permute.xlu0 %2649
    %v2652 = vmul.f32 %v2646, %v2650
    %v2653 = vsub.f32 1.0, %v2646
    %2655 = vrot.lane.b32.xlu0 %v2636, 64
    %v2656 = vpop.permute.xlu0 %2655
    %v2658 = vmul.f32 %v2653, %v2656
    %v2659 = vadd.f32 %v2652, %v2658
    %s2660 = scalar_lea.vmem %s18, 32
    %v2661 = vld [vmem:[%s2660] sm:$0xf]
    %v2662 = vld [vmem:[%s2660 + $0x4] sm:$0xf]
    %v2663 = vld [vmem:[%s2660 + $0x8] sm:$0xf]
    %v2664 = vld [vmem:[%s2660 + $0xc] sm:$0xf]
    %v2665 = vpack.c.bf16 %v2659, %v2659
    %s2666 = scalar_lea.vmem [#allocation10], 2
    %v2667 = vld [vmem:[%s2666] sm:$0x1]
    %v2669 = vlaneseq
    %v2670 = vshrl.u32 %v2669, 7
    %v2671 = vsub.s32 0, %v2670
    %v2672 = vrot.slane %v2667, %v2671
    %v2678 = vunpack.c.l.b16 %v2661
    %v2679 = vunpack.c.l.b16 %v2662
    %v2680 = vunpack.c.l.b16 %v2663
    %v2681 = vunpack.c.l.b16 %v2664
    %v2682 = vpack.c.b16 %v2679, %v2678
    %v2683 = vpack.c.b16 %v2681, %v2680
    %v2687 = vsel %vm182, %v2665, 0
    %2689 = vmatprep.subr.bf16.mxu0 0
    %2690 = vmatpush1.bf16.msra.mxu0 %v2682
    %2691 = vmatprep.subr.bf16.mxu0 0
    %2692 = vmatpush1.bf16.msra.mxu0 %v2683
    %2693 = vmatprep.subr.bf16.mxu0 0
    %2694 = vmatpush1.bf16.msra.mxu0 0
    %2695 = vmatprep.subr.bf16.mxu0 0
    %2696 = vmatpush1.bf16.msra.mxu0 0
    %2697 = vmatprep.subr.bf16.mxu0 0
    %2698 = vmatpush1.bf16.msra.mxu0 0
    %2699 = vmatprep.subr.bf16.mxu0 0
    %2700 = vmatpush1.bf16.msra.mxu0 0
    %2701 = vmatprep.subr.bf16.mxu0 0
    %2702 = vmatpush1.bf16.msra.mxu0 0
    %2703 = vmatprep.subr.bf16.mxu0 0
    %2704 = vmatpush1.bf16.msra.mxu0 0
    %2705 = vmatprep.subr.bf16.mxu0 0
    %2706 = vmatpush1.bf16.msra.mxu0 0
    %2707 = vmatprep.subr.bf16.mxu0 0
    %2708 = vmatpush1.bf16.msra.mxu0 0
    %2709 = vmatprep.subr.bf16.mxu0 0
    %2710 = vmatpush1.bf16.msra.mxu0 0
    %2711 = vmatprep.subr.bf16.mxu0 0
    %2712 = vmatpush1.bf16.msra.mxu0 0
    %2713 = vmatprep.subr.bf16.mxu0 0
    %2714 = vmatpush1.bf16.msra.mxu0 0
    %2715 = vmatprep.subr.bf16.mxu0 0
    %2716 = vmatpush1.bf16.msra.mxu0 0
    %2717 = vmatprep.subr.bf16.mxu0 0
    %2718 = vmatpush1.bf16.msra.mxu0 0
    %2719 = vmatprep.subr.bf16.mxu0 0
    %2720 = vmatpush1.bf16.msra.mxu0 0
    %2721 = vmatprep.mubr.bf16.mxu0 0
    %2722 = vmatmul.mubr.bf16.gmra.mrb[0].mxu0 %v2687
    %v2723 = vpop.f32.mrb[0].mxu0
    %v2724 = vadd.f32 %v2672, %v2723
    %v2725 = vpop.f32.mrb[0].mxu0
    %v2726 = vpop.f32.mrb[0].mxu0
    %v2727 = vpop.f32.mrb[0].mxu0
    %2728 = vdwg.mxu0
    %v2729 = vxor.u32 %v2724, 2147483648
    %v2730 = vmul.f32 %v2729, 1.442695
    %v2731 = vpow.pop %v2730
    %v2732 = vadd.f32 %v2731, 1.0
    %v2733 = vrcp.pop %v2732
    %v2734 = vmul.f32 1.0, %v2733
    %v2735 = vmax.f32 %v2724, 0.0
    %2737 = vrot.lane.b32.xlu0 %v2735, 96
    %v2738 = vpop.permute.xlu0 %2737
    %v2740 = vmul.f32 %v2734, %v2738
    %v2741 = vsub.f32 1.0, %v2734
    %2743 = vrot.lane.b32.xlu0 %v2724, 64
    %v2744 = vpop.permute.xlu0 %2743
    %v2746 = vmul.f32 %v2741, %v2744
    %v2747 = vadd.f32 %v2740, %v2746
    %s2748 = scalar_lea.vmem %s18, 48
    %v2749 = vld [vmem:[%s2748] sm:$0xf]
    %v2750 = vld [vmem:[%s2748 + $0x4] sm:$0xf]
    %v2751 = vld [vmem:[%s2748 + $0x8] sm:$0xf]
    %v2752 = vld [vmem:[%s2748 + $0xc] sm:$0xf]
    %v2753 = vpack.c.bf16 %v2747, %v2747
    %s2754 = scalar_lea.vmem [#allocation10], 3
    %v2755 = vld [vmem:[%s2754] sm:$0x1]
    %v2757 = vlaneseq
    %v2758 = vshrl.u32 %v2757, 7
    %v2759 = vsub.s32 0, %v2758
    %v2760 = vrot.slane %v2755, %v2759
    %v2766 = vunpack.c.l.b16 %v2749
    %v2767 = vunpack.c.l.b16 %v2750
    %v2768 = vunpack.c.l.b16 %v2751
    %v2769 = vunpack.c.l.b16 %v2752
    %v2770 = vpack.c.b16 %v2767, %v2766
    %v2771 = vpack.c.b16 %v2769, %v2768
    %v2775 = vsel %vm182, %v2753, 0
    %2777 = vmatprep.subr.bf16.mxu0 0
    %2778 = vmatpush1.bf16.msra.mxu0 %v2770
    %2779 = vmatprep.subr.bf16.mxu0 0
    %2780 = vmatpush1.bf16.msra.mxu0 %v2771
    %2781 = vmatprep.subr.bf16.mxu0 0
    %2782 = vmatpush1.bf16.msra.mxu0 0
    %2783 = vmatprep.subr.bf16.mxu0 0
    %2784 = vmatpush1.bf16.msra.mxu0 0
    %2785 = vmatprep.subr.bf16.mxu0 0
    %2786 = vmatpush1.bf16.msra.mxu0 0
    %2787 = vmatprep.subr.bf16.mxu0 0
    %2788 = vmatpush1.bf16.msra.mxu0 0
    %2789 = vmatprep.subr.bf16.mxu0 0
    %2790 = vmatpush1.bf16.msra.mxu0 0
    %2791 = vmatprep.subr.bf16.mxu0 0
    %2792 = vmatpush1.bf16.msra.mxu0 0
    %2793 = vmatprep.subr.bf16.mxu0 0
    %2794 = vmatpush1.bf16.msra.mxu0 0
    %2795 = vmatprep.subr.bf16.mxu0 0
    %2796 = vmatpush1.bf16.msra.mxu0 0
    %2797 = vmatprep.subr.bf16.mxu0 0
    %2798 = vmatpush1.bf16.msra.mxu0 0
    %2799 = vmatprep.subr.bf16.mxu0 0
    %2800 = vmatpush1.bf16.msra.mxu0 0
    %2801 = vmatprep.subr.bf16.mxu0 0
    %2802 = vmatpush1.bf16.msra.mxu0 0
    %2803 = vmatprep.subr.bf16.mxu0 0
    %2804 = vmatpush1.bf16.msra.mxu0 0
    %2805 = vmatprep.subr.bf16.mxu0 0
    %2806 = vmatpush1.bf16.msra.mxu0 0
    %2807 = vmatprep.subr.bf16.mxu0 0
    %2808 = vmatpush1.bf16.msra.mxu0 0
    %2809 = vmatprep.mubr.bf16.mxu0 0
    %2810 = vmatmul.mubr.bf16.gmra.mrb[0].mxu0 %v2775
    %v2811 = vpop.f32.mrb[0].mxu0
    %v2812 = vadd.f32 %v2760, %v2811
    %v2813 = vpop.f32.mrb[0].mxu0
    %v2814 = vpop.f32.mrb[0].mxu0
    %v2815 = vpop.f32.mrb[0].mxu0
    %2816 = vdwg.mxu0
    %v2817 = vxor.u32 %v2812, 2147483648
    %v2818 = vmul.f32 %v2817, 1.442695
    %v2819 = vpow.pop %v2818
    %v2820 = vadd.f32 %v2819, 1.0
    %v2821 = vrcp.pop %v2820
    %v2822 = vmul.f32 1.0, %v2821
    %v2823 = vmax.f32 %v2812, 0.0
    %2825 = vrot.lane.b32.xlu0 %v2823, 96
    %v2826 = vpop.permute.xlu0 %2825
    %v2828 = vmul.f32 %v2822, %v2826
    %v2829 = vsub.f32 1.0, %v2822
    %2831 = vrot.lane.b32.xlu0 %v2812, 64
    %v2832 = vpop.permute.xlu0 %2831
    %v2834 = vmul.f32 %v2829, %v2832
    %v2835 = vadd.f32 %v2828, %v2834
    %v2836 = vld [vmem:[%s20] sm:$0xff]
    %v2837 = vld [vmem:[%s20 + $0x8] sm:$0xff]
    %v2838 = vld [vmem:[%s20 + $0x10] sm:$0xff]
    %v2839 = vld [vmem:[%s20 + $0x18] sm:$0xff]
    %v2840 = vpack.c.bf16 %v2835, %v2835
    %v2841 = vld [vmem:[#allocation12] sm:$0x3]
    %v2843 = vlaneseq
    %v2844 = vshrl.u32 %v2843, 7
    %v2845 = vsub.s32 0, %v2844
    %v2846 = vrot.slane %v2841, %v2845
    %v2847 = vlaneseq
    %v2848 = vshrl.u32 %v2847, 7
    %v2849 = vsub.s32 1, %v2848
    %v2850 = vrot.slane %v2841, %v2849
    %v2857 = vunpack.c.l.b16 %v2836
    %v2858 = vunpack.c.h.b16 %v2836
    %v2859 = vunpack.c.l.b16 %v2837
    %v2860 = vunpack.c.h.b16 %v2837
    %v2861 = vunpack.c.l.b16 %v2838
    %v2862 = vunpack.c.h.b16 %v2838
    %v2863 = vunpack.c.l.b16 %v2839
    %v2864 = vunpack.c.h.b16 %v2839
    %v2865 = vpack.c.b16 %v2859, %v2857
    %v2866 = vpack.c.b16 %v2860, %v2858
    %v2867 = vpack.c.b16 %v2863, %v2861
    %v2868 = vpack.c.b16 %v2864, %v2862
    %v2874 = vsel %vm182, %v2840, 0
    %2876 = vmatprep.subr.bf16.mxu0 %v2866
    %2877 = vmatpush1.bf16.msra.mxu0 %v2865
    %2878 = vmatprep.subr.bf16.mxu0 %v2868
    %2879 = vmatpush1.bf16.msra.mxu0 %v2867
    %2880 = vmatprep.subr.bf16.mxu0 0
    %2881 = vmatpush1.bf16.msra.mxu0 0
    %2882 = vmatprep.subr.bf16.mxu0 0
    %2883 = vmatpush1.bf16.msra.mxu0 0
    %2884 = vmatprep.subr.bf16.mxu0 0
    %2885 = vmatpush1.bf16.msra.mxu0 0
    %2886 = vmatprep.subr.bf16.mxu0 0
    %2887 = vmatpush1.bf16.msra.mxu0 0
    %2888 = vmatprep.subr.bf16.mxu0 0
    %2889 = vmatpush1.bf16.msra.mxu0 0
    %2890 = vmatprep.subr.bf16.mxu0 0
    %2891 = vmatpush1.bf16.msra.mxu0 0
    %2892 = vmatprep.subr.bf16.mxu0 0
    %2893 = vmatpush1.bf16.msra.mxu0 0
    %2894 = vmatprep.subr.bf16.mxu0 0
    %2895 = vmatpush1.bf16.msra.mxu0 0
    %2896 = vmatprep.subr.bf16.mxu0 0
    %2897 = vmatpush1.bf16.msra.mxu0 0
    %2898 = vmatprep.subr.bf16.mxu0 0
    %2899 = vmatpush1.bf16.msra.mxu0 0
    %2900 = vmatprep.subr.bf16.mxu0 0
    %2901 = vmatpush1.bf16.msra.mxu0 0
    %2902 = vmatprep.subr.bf16.mxu0 0
    %2903 = vmatpush1.bf16.msra.mxu0 0
    %2904 = vmatprep.subr.bf16.mxu0 0
    %2905 = vmatpush1.bf16.msra.mxu0 0
    %2906 = vmatprep.subr.bf16.mxu0 0
    %2907 = vmatpush1.bf16.msra.mxu0 0
    %2908 = vmatprep.mubr.bf16.mxu0 0
    %2909 = vmatmul.mubr.bf16.gmra.mrb[0].mxu0 %v2874
    %v2910 = vpop.f32.mrb[0].mxu0
    %v2911 = vadd.f32 %v2846, %v2910
    %v2912 = vpop.f32.mrb[0].mxu0
    %v2913 = vadd.f32 %v2850, %v2912
    %v2914 = vpop.f32.mrb[0].mxu0
    %v2915 = vpop.f32.mrb[0].mxu0
    %2916 = vdwg.mxu0
    %2917 = vst [vmem:[%s22] sm:$0xff] %v2911
    %2918 = vst [vmem:[%s23] sm:$0xff] %v2913
    // Predicated region
    $region118: #{encoder_cbhl_forward.2} parent=1 // pred_check
      _
    $region119: #{encoder_cbhl_forward.2} parent=1 // pred_check_branch
      %2920 = sbr.rel (0) target = $region121
    $region120: #{encoder_cbhl_forward.2} parent=1 // pred_region
      _
    $region121: #{encoder_cbhl_forward.2} parent=1 // pred_fallthru
      _
    // Predicated region
    $region122: #{encoder_cbhl_forward.2} parent=1 // pred_check
      _
    $region123: #{encoder_cbhl_forward.2} parent=1 // pred_check_branch
      %2922 = sbr.rel (0) target = $region125
    $region124: #{encoder_cbhl_forward.2} parent=1 // pred_region
      _
    $region125: #{encoder_cbhl_forward.2} parent=1 // pred_fallthru
      _
    // Predicated region
    $region126: #{encoder_cbhl_forward.2} parent=1 // pred_check
      _
    $region127: #{encoder_cbhl_forward.2} parent=1 // pred_check_branch
      %2924 = sbr.rel (0) target = $region129
    $region128: #{encoder_cbhl_forward.2} parent=1 // pred_region
      _
    $region129: #{encoder_cbhl_forward.2} parent=1 // pred_fallthru
      _
    // Predicated region
    $region130: #{encoder_cbhl_forward.2} parent=1 // pred_check
      _
    $region131: #{encoder_cbhl_forward.2} parent=1 // pred_check_branch
      %2926 = sbr.rel (0) target = $region133
    $region132: #{encoder_cbhl_forward.2} parent=1 // pred_region
      _
    $region133: #{encoder_cbhl_forward.2} parent=1 // pred_fallthru
      _
    %2927 = vsyncpa [#allocation3], 1
    %2928 = vsyncpa [#allocation5], 1
    %2929 = vsyncpa [#allocation8], 1
    %2930 = vsyncpa [#allocation11], 1

</llo_original>
